<compile_context>
chip_gen: v5e
topology: v5e:2x2
jax: 0.10.0
libtpu: 0.0.40
codegen_flags: <defaults>
</compile_context>

<pallas_src>
import functools
import math

import jax
import jax.numpy as jnp
from jax import lax
from jax.experimental import pallas as pl
from jax.experimental.pallas import tpu as pltpu

# ---------------------------- config (small) ---------------------------------
BATCH = 2
SEQ = 8            # sequence length T
EMB = 32           # embedding_size E
HIDDEN = 32        # hidden_size H
NUM_LAYERS = 2
DROPOUT_PROB = 0.1  # unused at inference (eval mode)


def _round_up(x, m):
    return ((x + m - 1) // m) * m


# ----------------------------- Pallas kernel ---------------------------------
def _make_gru4rec_kernel(num_layers, Bp, T, E, Hp, Ep):
    off_whh0 = E
    off_fused = E + Hp
    off_wd = off_fused + (num_layers - 1) * 2 * Hp
    off_bd = off_wd + Hp

    def kernel(x_ref, len_ref, w_ref, out_ref, gi_scr):
        f32 = jnp.float32
        bf16 = jnp.bfloat16

        # Weight views: static, sublane/lane-aligned row slices of the packed
        # bf16 slab (hoisted out of the time loop).
        wih0 = w_ref[0:E, :]                               # (E, 4Hp)
        whh0 = w_ref[off_whh0:off_whh0 + Hp, :]            # (Hp, 4Hp)
        fused = [w_ref[off_fused + (l - 1) * 2 * Hp:
                       off_fused + l * 2 * Hp, :]          # (2Hp, 4Hp)
                 for l in range(1, num_layers)]
        wd = w_ref[off_wd:off_wd + Hp, 0:Ep]               # (Hp, Ep)
        bd = w_ref[off_bd:off_bd + Bp, 0:Ep].astype(f32)   # (Bp, Ep), replicated rows

        # Layer-0 input-gate projections for ALL time steps: one MXU call
        # (M = T*Bp), staged in VMEM scratch so per-step reads are aligned
        # 8-row blocks.
        gi_scr[...] = jnp.dot(x_ref[...], wih0, preferred_element_type=f32)

        # Gather mask operand, pre-broadcast in the wrapper (no per-step
        # broadcast_in_dim inside the unrolled loop).
        lens_b = len_ref[...]                              # (Bp, Hp) int32

        h = [jnp.zeros((Bp, Hp), f32) for _ in range(num_layers)]
        sel = jnp.zeros((Bp, Hp), f32)

        def gru_cell(s, h_prev):
            # s blocks (128-lane aligned): [r_pre | z_pre | gi_n | gh_n]
            r = jax.nn.sigmoid(s[:, 0:Hp])
            z = jax.nn.sigmoid(s[:, Hp:2 * Hp])
            n = jnp.tanh(s[:, 2 * Hp:3 * Hp] + r * s[:, 3 * Hp:4 * Hp])
            return (1.0 - z) * n + z * h_prev

        for t in range(T):                                 # static unroll: T small
            # Layer 0: staged input projection + ONE recurrent matmul.
            gi = gi_scr[t * Bp:(t + 1) * Bp, :]            # (Bp, 4Hp), 8-row aligned
            gh = jnp.dot(h[0].astype(bf16), whh0, preferred_element_type=f32)
            h[0] = gru_cell(gi + gh, h[0])
            # Upper layers: ONE fused matmul each ([h_{l-1} | h_l] @ W_fused).
            for l in range(1, num_layers):
                lhs = jnp.concatenate([h[l - 1], h[l]], axis=1).astype(bf16)
                s = jnp.dot(lhs, fused[l - 1], preferred_element_type=f32)
                h[l] = gru_cell(s, h[l])
            # gather_indexes: keep last-layer h where t == item_seq_len - 1.
            sel = jnp.where(lens_b == (t + 1), h[num_layers - 1], sel)

        # dense(h_gathered): (Bp, Hp) @ (Hp, Ep) + bias -> lane-dense f32 slab.
        out_ref[...] = jnp.dot(sel.astype(bf16), wd,
                               preferred_element_type=f32) + bd

    return kernel


# ------------------------- wrapper-side weight packing ------------------------
def _pack_weight_slab(params, E, H, Hp, Bp, num_layers):
    """Pack GRU + dense weights into ONE bf16 slab (single DMA).

    Columns: 4*Hp, four 128-lane blocks [r | z | n_input | n_hidden]; each
    gate's H real columns sit at the start of its block.  Row segments (all
    16-row aligned for the given sizes):
      [0, E)             wih_0        blocks [r | z | n_i | 0]
      [E, E+Hp)          whh_0        blocks [r | z | 0 | n_h]  (rows >= H zero)
      per upper layer l: 2*Hp rows: rows [0,Hp)=wih_l, rows [Hp,2Hp)=whh_l
      next Hp rows       dense W      (H, E) at [:H, :E]
      last rows          dense bias   replicated across rows, at [:, :E]
    """
    G4 = 4 * Hp
    f32 = jnp.float32

    def four_block(w, n_block):
        # w: (in_dim, 3H) with PyTorch gate order [r | z | n].
        in_dim = w.shape[0]
        out = jnp.zeros((in_dim, G4), f32)
        out = out.at[:, 0 * Hp:0 * Hp + H].set(w[:, 0:H])
        out = out.at[:, 1 * Hp:1 * Hp + H].set(w[:, H:2 * H])
        out = out.at[:, n_block * Hp:n_block * Hp + H].set(w[:, 2 * H:3 * H])
        return out

    segs = [four_block(params["wih"][0], 2)]                               # (E, G4)
    segs.append(jnp.zeros((Hp, G4), f32).at[:H].set(
        four_block(params["whh"][0], 3)))                                  # (Hp, G4)
    for l in range(1, num_layers):
        blk = jnp.zeros((2 * Hp, G4), f32)
        blk = blk.at[:H].set(four_block(params["wih"][l], 2))
        blk = blk.at[Hp:Hp + H].set(four_block(params["whh"][l], 3))
        segs.append(blk)                                                   # (2Hp, G4)
    segs.append(jnp.zeros((Hp, G4), f32).at[:H, :E].set(params["wd"]))     # (Hp, G4)
    bias_rows = _round_up(max(Bp, 16), 16)
    segs.append(jnp.zeros((bias_rows, G4), f32).at[:, :E].set(
        jnp.broadcast_to(params["bd"], (bias_rows, E))))
    return jnp.concatenate(segs, axis=0).astype(jnp.bfloat16)


def gru4rec_pallas(item_seq_emb, item_seq_len, params, num_layers):
    B, T, E = item_seq_emb.shape
    H = params["whh"][0].shape[0]
    assert E % 8 == 0, "embedding size assumed sublane-aligned for slab packing"

    Bp = _round_up(B, 8)      # sublane-aligned batch rows
    Hp = _round_up(H, 128)    # lane-aligned per-gate width
    Ep = _round_up(E, 128)    # lane-aligned output width

    # Layout plumbing (wrapper side): time-major, batch zero-padded to Bp,
    # bf16 activations; gather mask pre-broadcast to (Bp, Hp).
    x = jnp.transpose(item_seq_emb, (1, 0, 2))                  # (T, B, E)
    x = jnp.pad(x, ((0, 0), (0, Bp - B), (0, 0)))                # (T, Bp, E)
    x_tm = x.reshape(T * Bp, E).astype(jnp.bfloat16)

    lens = jnp.pad(item_seq_len.astype(jnp.int32), (0, Bp - B))  # padded rows: 0
    lens_b = jnp.broadcast_to(lens[:, None], (Bp, Hp))

    wslab = _pack_weight_slab(params, E, H, Hp, Bp, num_layers)
    R = wslab.shape[0]

    kernel = _make_gru4rec_kernel(num_layers, Bp, T, E, Hp, Ep)
    out = pl.pallas_call(
        kernel,
        out_shape=jax.ShapeDtypeStruct((Bp, Ep), jnp.float32),
        grid_spec=pltpu.PrefetchScalarGridSpec(
            num_scalar_prefetch=0,
            grid=(1,),                       # whole problem in one grid step
            in_specs=[pl.BlockSpec((T * Bp, E), lambda i: (0, 0)),
                      pl.BlockSpec((Bp, Hp), lambda i: (0, 0)),
                      pl.BlockSpec((R, 4 * Hp), lambda i: (0, 0))],
            out_specs=pl.BlockSpec((Bp, Ep), lambda i: (0, 0)),
            scratch_shapes=[pltpu.VMEM((T * Bp, 4 * Hp), jnp.float32)],
        ),
        compiler_params=pltpu.CompilerParams(
            dimension_semantics=("arbitrary",)),
    )(x_tm, lens_b, wslab)
    return out[:B, :E]


# -------------------------- model-level forward -------------------------------
def user_gru4rec_forward(item_seq_emb, item_seq_len, params, num_layers):
    # TODO(synk): emb_dropout (nn.Dropout) is identity in eval/inference mode;
    # training-mode stochastic dropout is not implemented in-kernel.
    # Note: for item_seq_len < 1 or > T the kernel returns bias-only (mask
    # never fires), whereas PyTorch's gather would index out of range.
    return gru4rec_pallas(item_seq_emb, item_seq_len, params, num_layers)


# --------------------------- pure-JAX reference -------------------------------
def gru4rec_reference(item_seq_emb, item_seq_len, params, num_layers):
    """Matches the PyTorch forward literally: GRU -> dense on all positions ->
    gather at item_seq_len - 1 (f32, HIGHEST precision)."""
    B, T, E = item_seq_emb.shape
    H = params["whh"][0].shape[0]
    hp = lax.Precision.HIGHEST
    h = [jnp.zeros((B, H), jnp.float32) for _ in range(num_layers)]
    outs = []
    for t in range(T):
        inp = item_seq_emb[:, t, :]
        for l in range(num_layers):
            gi = jnp.dot(inp, params["wih"][l], precision=hp)
            gh = jnp.dot(h[l], params["whh"][l], precision=hp)
            r = jax.nn.sigmoid(gi[:, :H] + gh[:, :H])
            z = jax.nn.sigmoid(gi[:, H:2 * H] + gh[:, H:2 * H])
            n = jnp.tanh(gi[:, 2 * H:] + r * gh[:, 2 * H:])
            h[l] = (1.0 - z) * n + z * h[l]
            inp = h[l]
        outs.append(h[-1])
    gru_out = jnp.stack(outs, axis=1)                                  # (B,T,H)
    dense_out = jnp.dot(gru_out, params["wd"], precision=hp) + params["bd"]
    idx = item_seq_len.astype(jnp.int32) - 1
    return dense_out[jnp.arange(B), idx]                               # (B,E)


# ------------------------------ params / main ---------------------------------
def init_params(key, E, H, num_layers):
    keys = jax.random.split(key, 2 * num_layers + 2)
    wih, whh = [], []
    for l in range(num_layers):
        in_dim = E if l == 0 else H
        b_ih = math.sqrt(6.0 / (3 * H + in_dim))   # xavier_uniform-ish
        b_hh = math.sqrt(6.0 / (3 * H + H))
        wih.append(jax.random.uniform(keys[2 * l], (in_dim, 3 * H),
                                      jnp.float32, -b_ih, b_ih))
        whh.append(jax.random.uniform(keys[2 * l + 1], (H, 3 * H),
                                      jnp.float32, -b_hh, b_hh))
    bd_bound = 1.0 / math.sqrt(H)
    wd = jax.random.uniform(keys[-2], (H, E), jnp.float32, -bd_bound, bd_bound)
    bd = jax.random.uniform(keys[-1], (1, E), jnp.float32, -bd_bound, bd_bound)
    return {"wih": wih, "whh": whh, "wd": wd, "bd": bd}


if __name__ == "__main__":
    key = jax.random.PRNGKey(0)
    pkey, xkey = jax.random.split(key)
    params = init_params(pkey, EMB, HIDDEN, NUM_LAYERS)

    item_seq_emb = jax.random.normal(xkey, (BATCH, SEQ, EMB), jnp.float32)
    item_seq_len = jnp.array([SEQ, SEQ - 3], dtype=jnp.int32)  # deterministic

    fwd = jax.jit(functools.partial(user_gru4rec_forward,
                                    params=params, num_layers=NUM_LAYERS))
    out = fwd(item_seq_emb, item_seq_len)
    jax.block_until_ready(out)

    assert out.shape == (BATCH, EMB) and out.dtype == jnp.float32

    ref = gru4rec_reference(item_seq_emb, item_seq_len, params, NUM_LAYERS)
    # Kernel uses bf16 MXU operands (f32 accumulation); reference is f32 at
    # HIGHEST precision, so allow a bf16-scale tolerance.
    err = float(jnp.max(jnp.abs(out - ref)))
    assert jnp.allclose(out, ref, atol=2e-2, rtol=2e-2), ("max abs err", err)

    print("KERNEL_OK")
</pallas_src>

<mosaic_0001>
module attributes {stable_mosaic.version = 11 : i64} {
  func.func @kernel(%arg0: i32, %arg1: memref<64x32xbf16, #tpu.memory_space<vmem>>, %arg2: memref<8x128xi32, #tpu.memory_space<vmem>>, %arg3: memref<560x512xbf16, #tpu.memory_space<vmem>>, %arg4: memref<8x128xf32, #tpu.memory_space<vmem>>, %arg5: memref<64x512xf32, #tpu.memory_space<vmem>>) attributes {dimension_semantics = [#tpu.dimension_semantics<arbitrary>], iteration_bounds = array<i64: 1>, scalar_prefetch = 0 : i64, scratch_operands = 1 : i64, tpu.core_type = #tpu.core_type<tc>, window_params = [{pipeline_mode = #tpu.pipeline_mode<synchronous>, transform_indices = @transform_0, window_bounds = array<i64: 64, 32>}, {pipeline_mode = #tpu.pipeline_mode<synchronous>, transform_indices = @transform_1, window_bounds = array<i64: 8, 128>}, {pipeline_mode = #tpu.pipeline_mode<synchronous>, transform_indices = @transform_2, window_bounds = array<i64: 560, 512>}, {pipeline_mode = #tpu.pipeline_mode<synchronous>, transform_indices = @transform_3, window_bounds = array<i64: 8, 128>}]} {
    %c0 = arith.constant 0 : index
    %c0_0 = arith.constant 0 : index
    %0 = vector.load %arg3[%c0, %c0_0] : memref<560x512xbf16, #tpu.memory_space<vmem>>, vector<32x512xbf16>
    %c32 = arith.constant 32 : index
    %c0_1 = arith.constant 0 : index
    %1 = vector.load %arg3[%c32, %c0_1] : memref<560x512xbf16, #tpu.memory_space<vmem>>, vector<128x512xbf16>
    %c160 = arith.constant 160 : index
    %c0_2 = arith.constant 0 : index
    %2 = vector.load %arg3[%c160, %c0_2] : memref<560x512xbf16, #tpu.memory_space<vmem>>, vector<256x512xbf16>
    %c416 = arith.constant 416 : index
    %c0_3 = arith.constant 0 : index
    %3 = vector.load %arg3[%c416, %c0_3] : memref<560x512xbf16, #tpu.memory_space<vmem>>, vector<128x128xbf16>
    %c544 = arith.constant 544 : index
    %c0_4 = arith.constant 0 : index
    %4 = vector.load %arg3[%c544, %c0_4] : memref<560x512xbf16, #tpu.memory_space<vmem>>, vector<8x128xbf16>
    %5 = arith.extf %4 : vector<8x128xbf16> to vector<8x128xf32>
    %c0_5 = arith.constant 0 : index
    %c0_6 = arith.constant 0 : index
    %6 = vector.load %arg1[%c0_5, %c0_6] : memref<64x32xbf16, #tpu.memory_space<vmem>>, vector<64x32xbf16>
    %cst = arith.constant dense<0.000000e+00> : vector<64x512xf32>
    %7 = tpu.matmul %6, %0, %cst {dimension_numbers = #tpu.dot_dimension_numbers<[1], [0], [0], [1], [0, 0, 1, 1], [], []>} : vector<64x32xbf16>, vector<32x512xbf16>, vector<64x512xf32> -> vector<64x512xf32>
    %c0_7 = arith.constant 0 : index
    %c0_8 = arith.constant 0 : index
    %8 = vector.load %arg5[%c0_7, %c0_8] : memref<64x512xf32, #tpu.memory_space<vmem>>, vector<64x512xf32>
    tpu.vector_store %arg5[%c0_7, %c0_8], %7 {strides = array<i32>} : memref<64x512xf32, #tpu.memory_space<vmem>>, vector<64x512xf32>,
    %c0_9 = arith.constant 0 : index
    %c0_10 = arith.constant 0 : index
    %9 = vector.load %arg2[%c0_9, %c0_10] : memref<8x128xi32, #tpu.memory_space<vmem>>, vector<8x128xi32>
    %cst_11 = arith.constant 0.000000e+00 : f32
    %10 = vector.broadcast %cst_11 : f32 to vector<8x128xf32>
    %cst_12 = arith.constant 0.000000e+00 : f32
    %11 = vector.broadcast %cst_12 : f32 to vector<8x128xf32>
    %cst_13 = arith.constant 0.000000e+00 : f32
    %12 = vector.broadcast %cst_13 : f32 to vector<8x128xf32>
    %c0_14 = arith.constant 0 : index
    %c0_15 = arith.constant 0 : index
    %13 = vector.load %arg5[%c0_14, %c0_15] : memref<64x512xf32, #tpu.memory_space<vmem>>, vector<8x512xf32>
    %14 = arith.truncf %10 : vector<8x128xf32> to vector<8x128xbf16>
    %cst_16 = arith.constant dense<0.000000e+00> : vector<8x512xf32>
    %15 = tpu.matmul %14, %1, %cst_16 {dimension_numbers = #tpu.dot_dimension_numbers<[1], [0], [0], [1], [0, 0, 1, 1], [], []>} : vector<8x128xbf16>, vector<128x512xbf16>, vector<8x512xf32> -> vector<8x512xf32>
    %16 = arith.addf %13, %15 : vector<8x512xf32>
    %17 = vector.extract_strided_slice %16 {offsets = [0, 0], sizes = [8, 128], strides = [1, 1]} : vector<8x512xf32> to vector<8x128xf32>
    %18 = arith.negf %17 : vector<8x128xf32>
    %19 = math.exp %18 : vector<8x128xf32>
    %cst_17 = arith.constant 1.000000e+00 : f32
    %20 = vector.broadcast %cst_17 : f32 to vector<8x128xf32>
    %21 = arith.addf %20, %19 : vector<8x128xf32>
    %22 = arith.divf %20, %21 : vector<8x128xf32>
    %23 = vector.extract_strided_slice %16 {offsets = [0, 128], sizes = [8, 128], strides = [1, 1]} : vector<8x512xf32> to vector<8x128xf32>
    %24 = arith.negf %23 : vector<8x128xf32>
    %25 = math.exp %24 : vector<8x128xf32>
    %cst_18 = arith.constant 1.000000e+00 : f32
    %26 = vector.broadcast %cst_18 : f32 to vector<8x128xf32>
    %27 = arith.addf %26, %25 : vector<8x128xf32>
    %28 = arith.divf %26, %27 : vector<8x128xf32>
    %29 = vector.extract_strided_slice %16 {offsets = [0, 256], sizes = [8, 128], strides = [1, 1]} : vector<8x512xf32> to vector<8x128xf32>
    %30 = vector.extract_strided_slice %16 {offsets = [0, 384], sizes = [8, 128], strides = [1, 1]} : vector<8x512xf32> to vector<8x128xf32>
    %31 = arith.mulf %22, %30 : vector<8x128xf32>
    %32 = arith.addf %29, %31 : vector<8x128xf32>
    %33 = math.tanh %32 : vector<8x128xf32>
    %cst_19 = arith.constant 1.000000e+00 : f32
    %34 = vector.broadcast %cst_19 : f32 to vector<8x128xf32>
    %35 = arith.subf %34, %28 : vector<8x128xf32>
    %36 = arith.mulf %35, %33 : vector<8x128xf32>
    %37 = arith.mulf %28, %10 : vector<8x128xf32>
    %38 = arith.addf %36, %37 : vector<8x128xf32>
    %39 = tpu.concatenate %38, %11 in 1 : vector<8x128xf32>, vector<8x128xf32> -> vector<8x256xf32>
    %40 = arith.truncf %39 : vector<8x256xf32> to vector<8x256xbf16>
    %cst_20 = arith.constant dense<0.000000e+00> : vector<8x512xf32>
    %41 = tpu.matmul %40, %2, %cst_20 {dimension_numbers = #tpu.dot_dimension_numbers<[1], [0], [0], [1], [0, 0, 1, 1], [], []>} : vector<8x256xbf16>, vector<256x512xbf16>, vector<8x512xf32> -> vector<8x512xf32>
    %42 = vector.extract_strided_slice %41 {offsets = [0, 0], sizes = [8, 128], strides = [1, 1]} : vector<8x512xf32> to vector<8x128xf32>
    %43 = arith.negf %42 : vector<8x128xf32>
    %44 = math.exp %43 : vector<8x128xf32>
    %cst_21 = arith.constant 1.000000e+00 : f32
    %45 = vector.broadcast %cst_21 : f32 to vector<8x128xf32>
    %46 = arith.addf %45, %44 : vector<8x128xf32>
    %47 = arith.divf %45, %46 : vector<8x128xf32>
    %48 = vector.extract_strided_slice %41 {offsets = [0, 128], sizes = [8, 128], strides = [1, 1]} : vector<8x512xf32> to vector<8x128xf32>
    %49 = arith.negf %48 : vector<8x128xf32>
    %50 = math.exp %49 : vector<8x128xf32>
    %cst_22 = arith.constant 1.000000e+00 : f32
    %51 = vector.broadcast %cst_22 : f32 to vector<8x128xf32>
    %52 = arith.addf %51, %50 : vector<8x128xf32>
    %53 = arith.divf %51, %52 : vector<8x128xf32>
    %54 = vector.extract_strided_slice %41 {offsets = [0, 256], sizes = [8, 128], strides = [1, 1]} : vector<8x512xf32> to vector<8x128xf32>
    %55 = vector.extract_strided_slice %41 {offsets = [0, 384], sizes = [8, 128], strides = [1, 1]} : vector<8x512xf32> to vector<8x128xf32>
    %56 = arith.mulf %47, %55 : vector<8x128xf32>
    %57 = arith.addf %54, %56 : vector<8x128xf32>
    %58 = math.tanh %57 : vector<8x128xf32>
    %cst_23 = arith.constant 1.000000e+00 : f32
    %59 = vector.broadcast %cst_23 : f32 to vector<8x128xf32>
    %60 = arith.subf %59, %53 : vector<8x128xf32>
    %61 = arith.mulf %60, %58 : vector<8x128xf32>
    %62 = arith.mulf %53, %11 : vector<8x128xf32>
    %63 = arith.addf %61, %62 : vector<8x128xf32>
    %c1_i32 = arith.constant 1 : i32
    %64 = vector.broadcast %c1_i32 : i32 to vector<8x128xi32>
    %65 = arith.cmpi eq, %9, %64 : vector<8x128xi32>
    %66 = arith.select %65, %63, %12 : vector<8x128xi1>, vector<8x128xf32>
    %c8 = arith.constant 8 : index
    %c0_24 = arith.constant 0 : index
    %67 = vector.load %arg5[%c8, %c0_24] : memref<64x512xf32, #tpu.memory_space<vmem>>, vector<8x512xf32>
    %68 = arith.truncf %38 : vector<8x128xf32> to vector<8x128xbf16>
    %cst_25 = arith.constant dense<0.000000e+00> : vector<8x512xf32>
    %69 = tpu.matmul %68, %1, %cst_25 {dimension_numbers = #tpu.dot_dimension_numbers<[1], [0], [0], [1], [0, 0, 1, 1], [], []>} : vector<8x128xbf16>, vector<128x512xbf16>, vector<8x512xf32> -> vector<8x512xf32>
    %70 = arith.addf %67, %69 : vector<8x512xf32>
    %71 = vector.extract_strided_slice %70 {offsets = [0, 0], sizes = [8, 128], strides = [1, 1]} : vector<8x512xf32> to vector<8x128xf32>
    %72 = arith.negf %71 : vector<8x128xf32>
    %73 = math.exp %72 : vector<8x128xf32>
    %cst_26 = arith.constant 1.000000e+00 : f32
    %74 = vector.broadcast %cst_26 : f32 to vector<8x128xf32>
    %75 = arith.addf %74, %73 : vector<8x128xf32>
    %76 = arith.divf %74, %75 : vector<8x128xf32>
    %77 = vector.extract_strided_slice %70 {offsets = [0, 128], sizes = [8, 128], strides = [1, 1]} : vector<8x512xf32> to vector<8x128xf32>
    %78 = arith.negf %77 : vector<8x128xf32>
    %79 = math.exp %78 : vector<8x128xf32>
    %cst_27 = arith.constant 1.000000e+00 : f32
    %80 = vector.broadcast %cst_27 : f32 to vector<8x128xf32>
    %81 = arith.addf %80, %79 : vector<8x128xf32>
    %82 = arith.divf %80, %81 : vector<8x128xf32>
    %83 = vector.extract_strided_slice %70 {offsets = [0, 256], sizes = [8, 128], strides = [1, 1]} : vector<8x512xf32> to vector<8x128xf32>
    %84 = vector.extract_strided_slice %70 {offsets = [0, 384], sizes = [8, 128], strides = [1, 1]} : vector<8x512xf32> to vector<8x128xf32>
    %85 = arith.mulf %76, %84 : vector<8x128xf32>
    %86 = arith.addf %83, %85 : vector<8x128xf32>
    %87 = math.tanh %86 : vector<8x128xf32>
    %cst_28 = arith.constant 1.000000e+00 : f32
    %88 = vector.broadcast %cst_28 : f32 to vector<8x128xf32>
    %89 = arith.subf %88, %82 : vector<8x128xf32>
    %90 = arith.mulf %89, %87 : vector<8x128xf32>
    %91 = arith.mulf %82, %38 : vector<8x128xf32>
    %92 = arith.addf %90, %91 : vector<8x128xf32>
    %93 = tpu.concatenate %92, %63 in 1 : vector<8x128xf32>, vector<8x128xf32> -> vector<8x256xf32>
    %94 = arith.truncf %93 : vector<8x256xf32> to vector<8x256xbf16>
    %cst_29 = arith.constant dense<0.000000e+00> : vector<8x512xf32>
    %95 = tpu.matmul %94, %2, %cst_29 {dimension_numbers = #tpu.dot_dimension_numbers<[1], [0], [0], [1], [0, 0, 1, 1], [], []>} : vector<8x256xbf16>, vector<256x512xbf16>, vector<8x512xf32> -> vector<8x512xf32>
    %96 = vector.extract_strided_slice %95 {offsets = [0, 0], sizes = [8, 128], strides = [1, 1]} : vector<8x512xf32> to vector<8x128xf32>
    %97 = arith.negf %96 : vector<8x128xf32>
    %98 = math.exp %97 : vector<8x128xf32>
    %cst_30 = arith.constant 1.000000e+00 : f32
    %99 = vector.broadcast %cst_30 : f32 to vector<8x128xf32>
    %100 = arith.addf %99, %98 : vector<8x128xf32>
    %101 = arith.divf %99, %100 : vector<8x128xf32>
    %102 = vector.extract_strided_slice %95 {offsets = [0, 128], sizes = [8, 128], strides = [1, 1]} : vector<8x512xf32> to vector<8x128xf32>
    %103 = arith.negf %102 : vector<8x128xf32>
    %104 = math.exp %103 : vector<8x128xf32>
    %cst_31 = arith.constant 1.000000e+00 : f32
    %105 = vector.broadcast %cst_31 : f32 to vector<8x128xf32>
    %106 = arith.addf %105, %104 : vector<8x128xf32>
    %107 = arith.divf %105, %106 : vector<8x128xf32>
    %108 = vector.extract_strided_slice %95 {offsets = [0, 256], sizes = [8, 128], strides = [1, 1]} : vector<8x512xf32> to vector<8x128xf32>
    %109 = vector.extract_strided_slice %95 {offsets = [0, 384], sizes = [8, 128], strides = [1, 1]} : vector<8x512xf32> to vector<8x128xf32>
    %110 = arith.mulf %101, %109 : vector<8x128xf32>
    %111 = arith.addf %108, %110 : vector<8x128xf32>
    %112 = math.tanh %111 : vector<8x128xf32>
    %cst_32 = arith.constant 1.000000e+00 : f32
    %113 = vector.broadcast %cst_32 : f32 to vector<8x128xf32>
    %114 = arith.subf %113, %107 : vector<8x128xf32>
    %115 = arith.mulf %114, %112 : vector<8x128xf32>
    %116 = arith.mulf %107, %63 : vector<8x128xf32>
    %117 = arith.addf %115, %116 : vector<8x128xf32>
    %c2_i32 = arith.constant 2 : i32
    %118 = vector.broadcast %c2_i32 : i32 to vector<8x128xi32>
    %119 = arith.cmpi eq, %9, %118 : vector<8x128xi32>
    %120 = arith.select %119, %117, %66 : vector<8x128xi1>, vector<8x128xf32>
    %c16 = arith.constant 16 : index
    %c0_33 = arith.constant 0 : index
    %121 = vector.load %arg5[%c16, %c0_33] : memref<64x512xf32, #tpu.memory_space<vmem>>, vector<8x512xf32>
    %122 = arith.truncf %92 : vector<8x128xf32> to vector<8x128xbf16>
    %cst_34 = arith.constant dense<0.000000e+00> : vector<8x512xf32>
    %123 = tpu.matmul %122, %1, %cst_34 {dimension_numbers = #tpu.dot_dimension_numbers<[1], [0], [0], [1], [0, 0, 1, 1], [], []>} : vector<8x128xbf16>, vector<128x512xbf16>, vector<8x512xf32> -> vector<8x512xf32>
    %124 = arith.addf %121, %123 : vector<8x512xf32>
    %125 = vector.extract_strided_slice %124 {offsets = [0, 0], sizes = [8, 128], strides = [1, 1]} : vector<8x512xf32> to vector<8x128xf32>
    %126 = arith.negf %125 : vector<8x128xf32>
    %127 = math.exp %126 : vector<8x128xf32>
    %cst_35 = arith.constant 1.000000e+00 : f32
    %128 = vector.broadcast %cst_35 : f32 to vector<8x128xf32>
    %129 = arith.addf %128, %127 : vector<8x128xf32>
    %130 = arith.divf %128, %129 : vector<8x128xf32>
    %131 = vector.extract_strided_slice %124 {offsets = [0, 128], sizes = [8, 128], strides = [1, 1]} : vector<8x512xf32> to vector<8x128xf32>
    %132 = arith.negf %131 : vector<8x128xf32>
    %133 = math.exp %132 : vector<8x128xf32>
    %cst_36 = arith.constant 1.000000e+00 : f32
    %134 = vector.broadcast %cst_36 : f32 to vector<8x128xf32>
    %135 = arith.addf %134, %133 : vector<8x128xf32>
    %136 = arith.divf %134, %135 : vector<8x128xf32>
    %137 = vector.extract_strided_slice %124 {offsets = [0, 256], sizes = [8, 128], strides = [1, 1]} : vector<8x512xf32> to vector<8x128xf32>
    %138 = vector.extract_strided_slice %124 {offsets = [0, 384], sizes = [8, 128], strides = [1, 1]} : vector<8x512xf32> to vector<8x128xf32>
    %139 = arith.mulf %130, %138 : vector<8x128xf32>
    %140 = arith.addf %137, %139 : vector<8x128xf32>
    %141 = math.tanh %140 : vector<8x128xf32>
    %cst_37 = arith.constant 1.000000e+00 : f32
    %142 = vector.broadcast %cst_37 : f32 to vector<8x128xf32>
    %143 = arith.subf %142, %136 : vector<8x128xf32>
    %144 = arith.mulf %143, %141 : vector<8x128xf32>
    %145 = arith.mulf %136, %92 : vector<8x128xf32>
    %146 = arith.addf %144, %145 : vector<8x128xf32>
    %147 = tpu.concatenate %146, %117 in 1 : vector<8x128xf32>, vector<8x128xf32> -> vector<8x256xf32>
    %148 = arith.truncf %147 : vector<8x256xf32> to vector<8x256xbf16>
    %cst_38 = arith.constant dense<0.000000e+00> : vector<8x512xf32>
    %149 = tpu.matmul %148, %2, %cst_38 {dimension_numbers = #tpu.dot_dimension_numbers<[1], [0], [0], [1], [0, 0, 1, 1], [], []>} : vector<8x256xbf16>, vector<256x512xbf16>, vector<8x512xf32> -> vector<8x512xf32>
    %150 = vector.extract_strided_slice %149 {offsets = [0, 0], sizes = [8, 128], strides = [1, 1]} : vector<8x512xf32> to vector<8x128xf32>
    %151 = arith.negf %150 : vector<8x128xf32>
    %152 = math.exp %151 : vector<8x128xf32>
    %cst_39 = arith.constant 1.000000e+00 : f32
    %153 = vector.broadcast %cst_39 : f32 to vector<8x128xf32>
    %154 = arith.addf %153, %152 : vector<8x128xf32>
    %155 = arith.divf %153, %154 : vector<8x128xf32>
    %156 = vector.extract_strided_slice %149 {offsets = [0, 128], sizes = [8, 128], strides = [1, 1]} : vector<8x512xf32> to vector<8x128xf32>
    %157 = arith.negf %156 : vector<8x128xf32>
    %158 = math.exp %157 : vector<8x128xf32>
    %cst_40 = arith.constant 1.000000e+00 : f32
    %159 = vector.broadcast %cst_40 : f32 to vector<8x128xf32>
    %160 = arith.addf %159, %158 : vector<8x128xf32>
    %161 = arith.divf %159, %160 : vector<8x128xf32>
    %162 = vector.extract_strided_slice %149 {offsets = [0, 256], sizes = [8, 128], strides = [1, 1]} : vector<8x512xf32> to vector<8x128xf32>
    %163 = vector.extract_strided_slice %149 {offsets = [0, 384], sizes = [8, 128], strides = [1, 1]} : vector<8x512xf32> to vector<8x128xf32>
    %164 = arith.mulf %155, %163 : vector<8x128xf32>
    %165 = arith.addf %162, %164 : vector<8x128xf32>
    %166 = math.tanh %165 : vector<8x128xf32>
    %cst_41 = arith.constant 1.000000e+00 : f32
    %167 = vector.broadcast %cst_41 : f32 to vector<8x128xf32>
    %168 = arith.subf %167, %161 : vector<8x128xf32>
    %169 = arith.mulf %168, %166 : vector<8x128xf32>
    %170 = arith.mulf %161, %117 : vector<8x128xf32>
    %171 = arith.addf %169, %170 : vector<8x128xf32>
    %c3_i32 = arith.constant 3 : i32
    %172 = vector.broadcast %c3_i32 : i32 to vector<8x128xi32>
    %173 = arith.cmpi eq, %9, %172 : vector<8x128xi32>
    %174 = arith.select %173, %171, %120 : vector<8x128xi1>, vector<8x128xf32>
    %c24 = arith.constant 24 : index
    %c0_42 = arith.constant 0 : index
    %175 = vector.load %arg5[%c24, %c0_42] : memref<64x512xf32, #tpu.memory_space<vmem>>, vector<8x512xf32>
    %176 = arith.truncf %146 : vector<8x128xf32> to vector<8x128xbf16>
    %cst_43 = arith.constant dense<0.000000e+00> : vector<8x512xf32>
    %177 = tpu.matmul %176, %1, %cst_43 {dimension_numbers = #tpu.dot_dimension_numbers<[1], [0], [0], [1], [0, 0, 1, 1], [], []>} : vector<8x128xbf16>, vector<128x512xbf16>, vector<8x512xf32> -> vector<8x512xf32>
    %178 = arith.addf %175, %177 : vector<8x512xf32>
    %179 = vector.extract_strided_slice %178 {offsets = [0, 0], sizes = [8, 128], strides = [1, 1]} : vector<8x512xf32> to vector<8x128xf32>
    %180 = arith.negf %179 : vector<8x128xf32>
    %181 = math.exp %180 : vector<8x128xf32>
    %cst_44 = arith.constant 1.000000e+00 : f32
    %182 = vector.broadcast %cst_44 : f32 to vector<8x128xf32>
    %183 = arith.addf %182, %181 : vector<8x128xf32>
    %184 = arith.divf %182, %183 : vector<8x128xf32>
    %185 = vector.extract_strided_slice %178 {offsets = [0, 128], sizes = [8, 128], strides = [1, 1]} : vector<8x512xf32> to vector<8x128xf32>
    %186 = arith.negf %185 : vector<8x128xf32>
    %187 = math.exp %186 : vector<8x128xf32>
    %cst_45 = arith.constant 1.000000e+00 : f32
    %188 = vector.broadcast %cst_45 : f32 to vector<8x128xf32>
    %189 = arith.addf %188, %187 : vector<8x128xf32>
    %190 = arith.divf %188, %189 : vector<8x128xf32>
    %191 = vector.extract_strided_slice %178 {offsets = [0, 256], sizes = [8, 128], strides = [1, 1]} : vector<8x512xf32> to vector<8x128xf32>
    %192 = vector.extract_strided_slice %178 {offsets = [0, 384], sizes = [8, 128], strides = [1, 1]} : vector<8x512xf32> to vector<8x128xf32>
    %193 = arith.mulf %184, %192 : vector<8x128xf32>
    %194 = arith.addf %191, %193 : vector<8x128xf32>
    %195 = math.tanh %194 : vector<8x128xf32>
    %cst_46 = arith.constant 1.000000e+00 : f32
    %196 = vector.broadcast %cst_46 : f32 to vector<8x128xf32>
    %197 = arith.subf %196, %190 : vector<8x128xf32>
    %198 = arith.mulf %197, %195 : vector<8x128xf32>
    %199 = arith.mulf %190, %146 : vector<8x128xf32>
    %200 = arith.addf %198, %199 : vector<8x128xf32>
    %201 = tpu.concatenate %200, %171 in 1 : vector<8x128xf32>, vector<8x128xf32> -> vector<8x256xf32>
    %202 = arith.truncf %201 : vector<8x256xf32> to vector<8x256xbf16>
    %cst_47 = arith.constant dense<0.000000e+00> : vector<8x512xf32>
    %203 = tpu.matmul %202, %2, %cst_47 {dimension_numbers = #tpu.dot_dimension_numbers<[1], [0], [0], [1], [0, 0, 1, 1], [], []>} : vector<8x256xbf16>, vector<256x512xbf16>, vector<8x512xf32> -> vector<8x512xf32>
    %204 = vector.extract_strided_slice %203 {offsets = [0, 0], sizes = [8, 128], strides = [1, 1]} : vector<8x512xf32> to vector<8x128xf32>
    %205 = arith.negf %204 : vector<8x128xf32>
    %206 = math.exp %205 : vector<8x128xf32>
    %cst_48 = arith.constant 1.000000e+00 : f32
    %207 = vector.broadcast %cst_48 : f32 to vector<8x128xf32>
    %208 = arith.addf %207, %206 : vector<8x128xf32>
    %209 = arith.divf %207, %208 : vector<8x128xf32>
    %210 = vector.extract_strided_slice %203 {offsets = [0, 128], sizes = [8, 128], strides = [1, 1]} : vector<8x512xf32> to vector<8x128xf32>
    %211 = arith.negf %210 : vector<8x128xf32>
    %212 = math.exp %211 : vector<8x128xf32>
    %cst_49 = arith.constant 1.000000e+00 : f32
    %213 = vector.broadcast %cst_49 : f32 to vector<8x128xf32>
    %214 = arith.addf %213, %212 : vector<8x128xf32>
    %215 = arith.divf %213, %214 : vector<8x128xf32>
    %216 = vector.extract_strided_slice %203 {offsets = [0, 256], sizes = [8, 128], strides = [1, 1]} : vector<8x512xf32> to vector<8x128xf32>
    %217 = vector.extract_strided_slice %203 {offsets = [0, 384], sizes = [8, 128], strides = [1, 1]} : vector<8x512xf32> to vector<8x128xf32>
    %218 = arith.mulf %209, %217 : vector<8x128xf32>
    %219 = arith.addf %216, %218 : vector<8x128xf32>
    %220 = math.tanh %219 : vector<8x128xf32>
    %cst_50 = arith.constant 1.000000e+00 : f32
    %221 = vector.broadcast %cst_50 : f32 to vector<8x128xf32>
    %222 = arith.subf %221, %215 : vector<8x128xf32>
    %223 = arith.mulf %222, %220 : vector<8x128xf32>
    %224 = arith.mulf %215, %171 : vector<8x128xf32>
    %225 = arith.addf %223, %224 : vector<8x128xf32>
    %c4_i32 = arith.constant 4 : i32
    %226 = vector.broadcast %c4_i32 : i32 to vector<8x128xi32>
    %227 = arith.cmpi eq, %9, %226 : vector<8x128xi32>
    %228 = arith.select %227, %225, %174 : vector<8x128xi1>, vector<8x128xf32>
    %c32_51 = arith.constant 32 : index
    %c0_52 = arith.constant 0 : index
    %229 = vector.load %arg5[%c32_51, %c0_52] : memref<64x512xf32, #tpu.memory_space<vmem>>, vector<8x512xf32>
    %230 = arith.truncf %200 : vector<8x128xf32> to vector<8x128xbf16>
    %cst_53 = arith.constant dense<0.000000e+00> : vector<8x512xf32>
    %231 = tpu.matmul %230, %1, %cst_53 {dimension_numbers = #tpu.dot_dimension_numbers<[1], [0], [0], [1], [0, 0, 1, 1], [], []>} : vector<8x128xbf16>, vector<128x512xbf16>, vector<8x512xf32> -> vector<8x512xf32>
    %232 = arith.addf %229, %231 : vector<8x512xf32>
    %233 = vector.extract_strided_slice %232 {offsets = [0, 0], sizes = [8, 128], strides = [1, 1]} : vector<8x512xf32> to vector<8x128xf32>
    %234 = arith.negf %233 : vector<8x128xf32>
    %235 = math.exp %234 : vector<8x128xf32>
    %cst_54 = arith.constant 1.000000e+00 : f32
    %236 = vector.broadcast %cst_54 : f32 to vector<8x128xf32>
    %237 = arith.addf %236, %235 : vector<8x128xf32>
    %238 = arith.divf %236, %237 : vector<8x128xf32>
    %239 = vector.extract_strided_slice %232 {offsets = [0, 128], sizes = [8, 128], strides = [1, 1]} : vector<8x512xf32> to vector<8x128xf32>
    %240 = arith.negf %239 : vector<8x128xf32>
    %241 = math.exp %240 : vector<8x128xf32>
    %cst_55 = arith.constant 1.000000e+00 : f32
    %242 = vector.broadcast %cst_55 : f32 to vector<8x128xf32>
    %243 = arith.addf %242, %241 : vector<8x128xf32>
    %244 = arith.divf %242, %243 : vector<8x128xf32>
    %245 = vector.extract_strided_slice %232 {offsets = [0, 256], sizes = [8, 128], strides = [1, 1]} : vector<8x512xf32> to vector<8x128xf32>
    %246 = vector.extract_strided_slice %232 {offsets = [0, 384], sizes = [8, 128], strides = [1, 1]} : vector<8x512xf32> to vector<8x128xf32>
    %247 = arith.mulf %238, %246 : vector<8x128xf32>
    %248 = arith.addf %245, %247 : vector<8x128xf32>
    %249 = math.tanh %248 : vector<8x128xf32>
    %cst_56 = arith.constant 1.000000e+00 : f32
    %250 = vector.broadcast %cst_56 : f32 to vector<8x128xf32>
    %251 = arith.subf %250, %244 : vector<8x128xf32>
    %252 = arith.mulf %251, %249 : vector<8x128xf32>
    %253 = arith.mulf %244, %200 : vector<8x128xf32>
    %254 = arith.addf %252, %253 : vector<8x128xf32>
    %255 = tpu.concatenate %254, %225 in 1 : vector<8x128xf32>, vector<8x128xf32> -> vector<8x256xf32>
    %256 = arith.truncf %255 : vector<8x256xf32> to vector<8x256xbf16>
    %cst_57 = arith.constant dense<0.000000e+00> : vector<8x512xf32>
    %257 = tpu.matmul %256, %2, %cst_57 {dimension_numbers = #tpu.dot_dimension_numbers<[1], [0], [0], [1], [0, 0, 1, 1], [], []>} : vector<8x256xbf16>, vector<256x512xbf16>, vector<8x512xf32> -> vector<8x512xf32>
    %258 = vector.extract_strided_slice %257 {offsets = [0, 0], sizes = [8, 128], strides = [1, 1]} : vector<8x512xf32> to vector<8x128xf32>
    %259 = arith.negf %258 : vector<8x128xf32>
    %260 = math.exp %259 : vector<8x128xf32>
    %cst_58 = arith.constant 1.000000e+00 : f32
    %261 = vector.broadcast %cst_58 : f32 to vector<8x128xf32>
    %262 = arith.addf %261, %260 : vector<8x128xf32>
    %263 = arith.divf %261, %262 : vector<8x128xf32>
    %264 = vector.extract_strided_slice %257 {offsets = [0, 128], sizes = [8, 128], strides = [1, 1]} : vector<8x512xf32> to vector<8x128xf32>
    %265 = arith.negf %264 : vector<8x128xf32>
    %266 = math.exp %265 : vector<8x128xf32>
    %cst_59 = arith.constant 1.000000e+00 : f32
    %267 = vector.broadcast %cst_59 : f32 to vector<8x128xf32>
    %268 = arith.addf %267, %266 : vector<8x128xf32>
    %269 = arith.divf %267, %268 : vector<8x128xf32>
    %270 = vector.extract_strided_slice %257 {offsets = [0, 256], sizes = [8, 128], strides = [1, 1]} : vector<8x512xf32> to vector<8x128xf32>
    %271 = vector.extract_strided_slice %257 {offsets = [0, 384], sizes = [8, 128], strides = [1, 1]} : vector<8x512xf32> to vector<8x128xf32>
    %272 = arith.mulf %263, %271 : vector<8x128xf32>
    %273 = arith.addf %270, %272 : vector<8x128xf32>
    %274 = math.tanh %273 : vector<8x128xf32>
    %cst_60 = arith.constant 1.000000e+00 : f32
    %275 = vector.broadcast %cst_60 : f32 to vector<8x128xf32>
    %276 = arith.subf %275, %269 : vector<8x128xf32>
    %277 = arith.mulf %276, %274 : vector<8x128xf32>
    %278 = arith.mulf %269, %225 : vector<8x128xf32>
    %279 = arith.addf %277, %278 : vector<8x128xf32>
    %c5_i32 = arith.constant 5 : i32
    %280 = vector.broadcast %c5_i32 : i32 to vector<8x128xi32>
    %281 = arith.cmpi eq, %9, %280 : vector<8x128xi32>
    %282 = arith.select %281, %279, %228 : vector<8x128xi1>, vector<8x128xf32>
    %c40 = arith.constant 40 : index
    %c0_61 = arith.constant 0 : index
    %283 = vector.load %arg5[%c40, %c0_61] : memref<64x512xf32, #tpu.memory_space<vmem>>, vector<8x512xf32>
    %284 = arith.truncf %254 : vector<8x128xf32> to vector<8x128xbf16>
    %cst_62 = arith.constant dense<0.000000e+00> : vector<8x512xf32>
    %285 = tpu.matmul %284, %1, %cst_62 {dimension_numbers = #tpu.dot_dimension_numbers<[1], [0], [0], [1], [0, 0, 1, 1], [], []>} : vector<8x128xbf16>, vector<128x512xbf16>, vector<8x512xf32> -> vector<8x512xf32>
    %286 = arith.addf %283, %285 : vector<8x512xf32>
    %287 = vector.extract_strided_slice %286 {offsets = [0, 0], sizes = [8, 128], strides = [1, 1]} : vector<8x512xf32> to vector<8x128xf32>
    %288 = arith.negf %287 : vector<8x128xf32>
    %289 = math.exp %288 : vector<8x128xf32>
    %cst_63 = arith.constant 1.000000e+00 : f32
    %290 = vector.broadcast %cst_63 : f32 to vector<8x128xf32>
    %291 = arith.addf %290, %289 : vector<8x128xf32>
    %292 = arith.divf %290, %291 : vector<8x128xf32>
    %293 = vector.extract_strided_slice %286 {offsets = [0, 128], sizes = [8, 128], strides = [1, 1]} : vector<8x512xf32> to vector<8x128xf32>
    %294 = arith.negf %293 : vector<8x128xf32>
    %295 = math.exp %294 : vector<8x128xf32>
    %cst_64 = arith.constant 1.000000e+00 : f32
    %296 = vector.broadcast %cst_64 : f32 to vector<8x128xf32>
    %297 = arith.addf %296, %295 : vector<8x128xf32>
    %298 = arith.divf %296, %297 : vector<8x128xf32>
    %299 = vector.extract_strided_slice %286 {offsets = [0, 256], sizes = [8, 128], strides = [1, 1]} : vector<8x512xf32> to vector<8x128xf32>
    %300 = vector.extract_strided_slice %286 {offsets = [0, 384], sizes = [8, 128], strides = [1, 1]} : vector<8x512xf32> to vector<8x128xf32>
    %301 = arith.mulf %292, %300 : vector<8x128xf32>
    %302 = arith.addf %299, %301 : vector<8x128xf32>
    %303 = math.tanh %302 : vector<8x128xf32>
    %cst_65 = arith.constant 1.000000e+00 : f32
    %304 = vector.broadcast %cst_65 : f32 to vector<8x128xf32>
    %305 = arith.subf %304, %298 : vector<8x128xf32>
    %306 = arith.mulf %305, %303 : vector<8x128xf32>
    %307 = arith.mulf %298, %254 : vector<8x128xf32>
    %308 = arith.addf %306, %307 : vector<8x128xf32>
    %309 = tpu.concatenate %308, %279 in 1 : vector<8x128xf32>, vector<8x128xf32> -> vector<8x256xf32>
    %310 = arith.truncf %309 : vector<8x256xf32> to vector<8x256xbf16>
    %cst_66 = arith.constant dense<0.000000e+00> : vector<8x512xf32>
    %311 = tpu.matmul %310, %2, %cst_66 {dimension_numbers = #tpu.dot_dimension_numbers<[1], [0], [0], [1], [0, 0, 1, 1], [], []>} : vector<8x256xbf16>, vector<256x512xbf16>, vector<8x512xf32> -> vector<8x512xf32>
    %312 = vector.extract_strided_slice %311 {offsets = [0, 0], sizes = [8, 128], strides = [1, 1]} : vector<8x512xf32> to vector<8x128xf32>
    %313 = arith.negf %312 : vector<8x128xf32>
    %314 = math.exp %313 : vector<8x128xf32>
    %cst_67 = arith.constant 1.000000e+00 : f32
    %315 = vector.broadcast %cst_67 : f32 to vector<8x128xf32>
    %316 = arith.addf %315, %314 : vector<8x128xf32>
    %317 = arith.divf %315, %316 : vector<8x128xf32>
    %318 = vector.extract_strided_slice %311 {offsets = [0, 128], sizes = [8, 128], strides = [1, 1]} : vector<8x512xf32> to vector<8x128xf32>
    %319 = arith.negf %318 : vector<8x128xf32>
    %320 = math.exp %319 : vector<8x128xf32>
    %cst_68 = arith.constant 1.000000e+00 : f32
    %321 = vector.broadcast %cst_68 : f32 to vector<8x128xf32>
    %322 = arith.addf %321, %320 : vector<8x128xf32>
    %323 = arith.divf %321, %322 : vector<8x128xf32>
    %324 = vector.extract_strided_slice %311 {offsets = [0, 256], sizes = [8, 128], strides = [1, 1]} : vector<8x512xf32> to vector<8x128xf32>
    %325 = vector.extract_strided_slice %311 {offsets = [0, 384], sizes = [8, 128], strides = [1, 1]} : vector<8x512xf32> to vector<8x128xf32>
    %326 = arith.mulf %317, %325 : vector<8x128xf32>
    %327 = arith.addf %324, %326 : vector<8x128xf32>
    %328 = math.tanh %327 : vector<8x128xf32>
    %cst_69 = arith.constant 1.000000e+00 : f32
    %329 = vector.broadcast %cst_69 : f32 to vector<8x128xf32>
    %330 = arith.subf %329, %323 : vector<8x128xf32>
    %331 = arith.mulf %330, %328 : vector<8x128xf32>
    %332 = arith.mulf %323, %279 : vector<8x128xf32>
    %333 = arith.addf %331, %332 : vector<8x128xf32>
    %c6_i32 = arith.constant 6 : i32
    %334 = vector.broadcast %c6_i32 : i32 to vector<8x128xi32>
    %335 = arith.cmpi eq, %9, %334 : vector<8x128xi32>
    %336 = arith.select %335, %333, %282 : vector<8x128xi1>, vector<8x128xf32>
    %c48 = arith.constant 48 : index
    %c0_70 = arith.constant 0 : index
    %337 = vector.load %arg5[%c48, %c0_70] : memref<64x512xf32, #tpu.memory_space<vmem>>, vector<8x512xf32>
    %338 = arith.truncf %308 : vector<8x128xf32> to vector<8x128xbf16>
    %cst_71 = arith.constant dense<0.000000e+00> : vector<8x512xf32>
    %339 = tpu.matmul %338, %1, %cst_71 {dimension_numbers = #tpu.dot_dimension_numbers<[1], [0], [0], [1], [0, 0, 1, 1], [], []>} : vector<8x128xbf16>, vector<128x512xbf16>, vector<8x512xf32> -> vector<8x512xf32>
    %340 = arith.addf %337, %339 : vector<8x512xf32>
    %341 = vector.extract_strided_slice %340 {offsets = [0, 0], sizes = [8, 128], strides = [1, 1]} : vector<8x512xf32> to vector<8x128xf32>
    %342 = arith.negf %341 : vector<8x128xf32>
    %343 = math.exp %342 : vector<8x128xf32>
    %cst_72 = arith.constant 1.000000e+00 : f32
    %344 = vector.broadcast %cst_72 : f32 to vector<8x128xf32>
    %345 = arith.addf %344, %343 : vector<8x128xf32>
    %346 = arith.divf %344, %345 : vector<8x128xf32>
    %347 = vector.extract_strided_slice %340 {offsets = [0, 128], sizes = [8, 128], strides = [1, 1]} : vector<8x512xf32> to vector<8x128xf32>
    %348 = arith.negf %347 : vector<8x128xf32>
    %349 = math.exp %348 : vector<8x128xf32>
    %cst_73 = arith.constant 1.000000e+00 : f32
    %350 = vector.broadcast %cst_73 : f32 to vector<8x128xf32>
    %351 = arith.addf %350, %349 : vector<8x128xf32>
    %352 = arith.divf %350, %351 : vector<8x128xf32>
    %353 = vector.extract_strided_slice %340 {offsets = [0, 256], sizes = [8, 128], strides = [1, 1]} : vector<8x512xf32> to vector<8x128xf32>
    %354 = vector.extract_strided_slice %340 {offsets = [0, 384], sizes = [8, 128], strides = [1, 1]} : vector<8x512xf32> to vector<8x128xf32>
    %355 = arith.mulf %346, %354 : vector<8x128xf32>
    %356 = arith.addf %353, %355 : vector<8x128xf32>
    %357 = math.tanh %356 : vector<8x128xf32>
    %cst_74 = arith.constant 1.000000e+00 : f32
    %358 = vector.broadcast %cst_74 : f32 to vector<8x128xf32>
    %359 = arith.subf %358, %352 : vector<8x128xf32>
    %360 = arith.mulf %359, %357 : vector<8x128xf32>
    %361 = arith.mulf %352, %308 : vector<8x128xf32>
    %362 = arith.addf %360, %361 : vector<8x128xf32>
    %363 = tpu.concatenate %362, %333 in 1 : vector<8x128xf32>, vector<8x128xf32> -> vector<8x256xf32>
    %364 = arith.truncf %363 : vector<8x256xf32> to vector<8x256xbf16>
    %cst_75 = arith.constant dense<0.000000e+00> : vector<8x512xf32>
    %365 = tpu.matmul %364, %2, %cst_75 {dimension_numbers = #tpu.dot_dimension_numbers<[1], [0], [0], [1], [0, 0, 1, 1], [], []>} : vector<8x256xbf16>, vector<256x512xbf16>, vector<8x512xf32> -> vector<8x512xf32>
    %366 = vector.extract_strided_slice %365 {offsets = [0, 0], sizes = [8, 128], strides = [1, 1]} : vector<8x512xf32> to vector<8x128xf32>
    %367 = arith.negf %366 : vector<8x128xf32>
    %368 = math.exp %367 : vector<8x128xf32>
    %cst_76 = arith.constant 1.000000e+00 : f32
    %369 = vector.broadcast %cst_76 : f32 to vector<8x128xf32>
    %370 = arith.addf %369, %368 : vector<8x128xf32>
    %371 = arith.divf %369, %370 : vector<8x128xf32>
    %372 = vector.extract_strided_slice %365 {offsets = [0, 128], sizes = [8, 128], strides = [1, 1]} : vector<8x512xf32> to vector<8x128xf32>
    %373 = arith.negf %372 : vector<8x128xf32>
    %374 = math.exp %373 : vector<8x128xf32>
    %cst_77 = arith.constant 1.000000e+00 : f32
    %375 = vector.broadcast %cst_77 : f32 to vector<8x128xf32>
    %376 = arith.addf %375, %374 : vector<8x128xf32>
    %377 = arith.divf %375, %376 : vector<8x128xf32>
    %378 = vector.extract_strided_slice %365 {offsets = [0, 256], sizes = [8, 128], strides = [1, 1]} : vector<8x512xf32> to vector<8x128xf32>
    %379 = vector.extract_strided_slice %365 {offsets = [0, 384], sizes = [8, 128], strides = [1, 1]} : vector<8x512xf32> to vector<8x128xf32>
    %380 = arith.mulf %371, %379 : vector<8x128xf32>
    %381 = arith.addf %378, %380 : vector<8x128xf32>
    %382 = math.tanh %381 : vector<8x128xf32>
    %cst_78 = arith.constant 1.000000e+00 : f32
    %383 = vector.broadcast %cst_78 : f32 to vector<8x128xf32>
    %384 = arith.subf %383, %377 : vector<8x128xf32>
    %385 = arith.mulf %384, %382 : vector<8x128xf32>
    %386 = arith.mulf %377, %333 : vector<8x128xf32>
    %387 = arith.addf %385, %386 : vector<8x128xf32>
    %c7_i32 = arith.constant 7 : i32
    %388 = vector.broadcast %c7_i32 : i32 to vector<8x128xi32>
    %389 = arith.cmpi eq, %9, %388 : vector<8x128xi32>
    %390 = arith.select %389, %387, %336 : vector<8x128xi1>, vector<8x128xf32>
    %c56 = arith.constant 56 : index
    %c0_79 = arith.constant 0 : index
    %391 = vector.load %arg5[%c56, %c0_79] : memref<64x512xf32, #tpu.memory_space<vmem>>, vector<8x512xf32>
    %392 = arith.truncf %362 : vector<8x128xf32> to vector<8x128xbf16>
    %cst_80 = arith.constant dense<0.000000e+00> : vector<8x512xf32>
    %393 = tpu.matmul %392, %1, %cst_80 {dimension_numbers = #tpu.dot_dimension_numbers<[1], [0], [0], [1], [0, 0, 1, 1], [], []>} : vector<8x128xbf16>, vector<128x512xbf16>, vector<8x512xf32> -> vector<8x512xf32>
    %394 = arith.addf %391, %393 : vector<8x512xf32>
    %395 = vector.extract_strided_slice %394 {offsets = [0, 0], sizes = [8, 128], strides = [1, 1]} : vector<8x512xf32> to vector<8x128xf32>
    %396 = arith.negf %395 : vector<8x128xf32>
    %397 = math.exp %396 : vector<8x128xf32>
    %cst_81 = arith.constant 1.000000e+00 : f32
    %398 = vector.broadcast %cst_81 : f32 to vector<8x128xf32>
    %399 = arith.addf %398, %397 : vector<8x128xf32>
    %400 = arith.divf %398, %399 : vector<8x128xf32>
    %401 = vector.extract_strided_slice %394 {offsets = [0, 128], sizes = [8, 128], strides = [1, 1]} : vector<8x512xf32> to vector<8x128xf32>
    %402 = arith.negf %401 : vector<8x128xf32>
    %403 = math.exp %402 : vector<8x128xf32>
    %cst_82 = arith.constant 1.000000e+00 : f32
    %404 = vector.broadcast %cst_82 : f32 to vector<8x128xf32>
    %405 = arith.addf %404, %403 : vector<8x128xf32>
    %406 = arith.divf %404, %405 : vector<8x128xf32>
    %407 = vector.extract_strided_slice %394 {offsets = [0, 256], sizes = [8, 128], strides = [1, 1]} : vector<8x512xf32> to vector<8x128xf32>
    %408 = vector.extract_strided_slice %394 {offsets = [0, 384], sizes = [8, 128], strides = [1, 1]} : vector<8x512xf32> to vector<8x128xf32>
    %409 = arith.mulf %400, %408 : vector<8x128xf32>
    %410 = arith.addf %407, %409 : vector<8x128xf32>
    %411 = math.tanh %410 : vector<8x128xf32>
    %cst_83 = arith.constant 1.000000e+00 : f32
    %412 = vector.broadcast %cst_83 : f32 to vector<8x128xf32>
    %413 = arith.subf %412, %406 : vector<8x128xf32>
    %414 = arith.mulf %413, %411 : vector<8x128xf32>
    %415 = arith.mulf %406, %362 : vector<8x128xf32>
    %416 = arith.addf %414, %415 : vector<8x128xf32>
    %417 = tpu.concatenate %416, %387 in 1 : vector<8x128xf32>, vector<8x128xf32> -> vector<8x256xf32>
    %418 = arith.truncf %417 : vector<8x256xf32> to vector<8x256xbf16>
    %cst_84 = arith.constant dense<0.000000e+00> : vector<8x512xf32>
    %419 = tpu.matmul %418, %2, %cst_84 {dimension_numbers = #tpu.dot_dimension_numbers<[1], [0], [0], [1], [0, 0, 1, 1], [], []>} : vector<8x256xbf16>, vector<256x512xbf16>, vector<8x512xf32> -> vector<8x512xf32>
    %420 = vector.extract_strided_slice %419 {offsets = [0, 0], sizes = [8, 128], strides = [1, 1]} : vector<8x512xf32> to vector<8x128xf32>
    %421 = arith.negf %420 : vector<8x128xf32>
    %422 = math.exp %421 : vector<8x128xf32>
    %cst_85 = arith.constant 1.000000e+00 : f32
    %423 = vector.broadcast %cst_85 : f32 to vector<8x128xf32>
    %424 = arith.addf %423, %422 : vector<8x128xf32>
    %425 = arith.divf %423, %424 : vector<8x128xf32>
    %426 = vector.extract_strided_slice %419 {offsets = [0, 128], sizes = [8, 128], strides = [1, 1]} : vector<8x512xf32> to vector<8x128xf32>
    %427 = arith.negf %426 : vector<8x128xf32>
    %428 = math.exp %427 : vector<8x128xf32>
    %cst_86 = arith.constant 1.000000e+00 : f32
    %429 = vector.broadcast %cst_86 : f32 to vector<8x128xf32>
    %430 = arith.addf %429, %428 : vector<8x128xf32>
    %431 = arith.divf %429, %430 : vector<8x128xf32>
    %432 = vector.extract_strided_slice %419 {offsets = [0, 256], sizes = [8, 128], strides = [1, 1]} : vector<8x512xf32> to vector<8x128xf32>
    %433 = vector.extract_strided_slice %419 {offsets = [0, 384], sizes = [8, 128], strides = [1, 1]} : vector<8x512xf32> to vector<8x128xf32>
    %434 = arith.mulf %425, %433 : vector<8x128xf32>
    %435 = arith.addf %432, %434 : vector<8x128xf32>
    %436 = math.tanh %435 : vector<8x128xf32>
    %cst_87 = arith.constant 1.000000e+00 : f32
    %437 = vector.broadcast %cst_87 : f32 to vector<8x128xf32>
    %438 = arith.subf %437, %431 : vector<8x128xf32>
    %439 = arith.mulf %438, %436 : vector<8x128xf32>
    %440 = arith.mulf %431, %387 : vector<8x128xf32>
    %441 = arith.addf %439, %440 : vector<8x128xf32>
    %c8_i32 = arith.constant 8 : i32
    %442 = vector.broadcast %c8_i32 : i32 to vector<8x128xi32>
    %443 = arith.cmpi eq, %9, %442 : vector<8x128xi32>
    %444 = arith.select %443, %441, %390 : vector<8x128xi1>, vector<8x128xf32>
    %445 = arith.truncf %444 : vector<8x128xf32> to vector<8x128xbf16>
    %cst_88 = arith.constant dense<0.000000e+00> : vector<8x128xf32>
    %446 = tpu.matmul %445, %3, %cst_88 {dimension_numbers = #tpu.dot_dimension_numbers<[1], [0], [0], [1], [0, 0, 1, 1], [], []>} : vector<8x128xbf16>, vector<128x128xbf16>, vector<8x128xf32> -> vector<8x128xf32>
    %447 = arith.addf %446, %5 : vector<8x128xf32>
    %c0_89 = arith.constant 0 : index
    %c0_90 = arith.constant 0 : index
    %448 = vector.load %arg4[%c0_89, %c0_90] : memref<8x128xf32, #tpu.memory_space<vmem>>, vector<8x128xf32>
    tpu.vector_store %arg4[%c0_89, %c0_90], %447 {strides = array<i32>} : memref<8x128xf32, #tpu.memory_space<vmem>>, vector<8x128xf32>,
    return
  }
  func.func @transform_0(%arg0: i32) -> (i32, i32) {
    %c0_i32 = arith.constant 0 : i32
    %c0_i32_0 = arith.constant 0 : i32
    %c0_i32_1 = arith.constant 0 : i32
    return %c0_i32, %c0_i32_0 : i32, i32
  }
  func.func @transform_1(%arg0: i32) -> (i32, i32) {
    %c0_i32 = arith.constant 0 : i32
    %c0_i32_0 = arith.constant 0 : i32
    %c0_i32_1 = arith.constant 0 : i32
    return %c0_i32, %c0_i32_0 : i32, i32
  }
  func.func @transform_2(%arg0: i32) -> (i32, i32) {
    %c0_i32 = arith.constant 0 : i32
    %c0_i32_0 = arith.constant 0 : i32
    %c0_i32_1 = arith.constant 0 : i32
    return %c0_i32, %c0_i32_0 : i32, i32
  }
  func.func @transform_3(%arg0: i32) -> (i32, i32) {
    %c0_i32 = arith.constant 0 : i32
    %c0_i32_0 = arith.constant 0 : i32
    %c0_i32_1 = arith.constant 0 : i32
    return %c0_i32, %c0_i32_0 : i32, i32
  }
}

</mosaic_0001>

<llo_original>
// kernel: user_gru4rec_forward.1
$region0: #{user_gru4rec_forward.1}
  #allocation0 [shape = 'u32[]', space=smem, size = 0x4, offset = 0x4, fixed_abs, tag = 'smem constant byte address 0x4 - core index']
  #allocation1 [shape = 'u32[72,128]{1,0:T(1,128)}', space=vmem, size = 0x9000, scoped, tag = 'internal scratch']
  #allocation2 [shape = 'f32[64,512]{1,0:T(8,128)}', space=vmem, size = 0x20000, scoped, tag = 'scratch operand']
  %s0 = inlined_call_operand.vmem [shape: bf16[64,32], index: 0, kind: input, shape index: {}]
  %s1 = inlined_call_operand.vmem [shape: s32[8,128], index: 1, kind: input, shape index: {}]
  %s2 = inlined_call_operand.vmem [shape: bf16[560,512], index: 2, kind: input, shape index: {}]
  %s3 = inlined_call_operand.vmem [shape: f32[8,128], index: 3, kind: output, shape index: {}]
  %s4 = sld [smem:[#allocation0]]
  $region22: #{user_gru4rec_forward.1} parent=0
    _
  %s6 = ssub.s32 1, %s4
  %s7 = scalar_select 0, %s6, %s4
  // Predicated region
  $region2: #{user_gru4rec_forward.1} parent=0 // pred_check
    _
  $region3: #{user_gru4rec_forward.1} parent=0 // pred_check_branch
    %9 = sbr.rel (0) target = $region5
  $region4: #{user_gru4rec_forward.1} parent=0 // pred_region
    _
  $region5: #{user_gru4rec_forward.1} parent=0 // pred_fallthru
    _
  // Predicated region
  $region6: #{user_gru4rec_forward.1} parent=0 // pred_check
    _
  $region7: #{user_gru4rec_forward.1} parent=0 // pred_check_branch
    %11 = sbr.rel (0) target = $region9
  $region8: #{user_gru4rec_forward.1} parent=0 // pred_region
    _
  $region9: #{user_gru4rec_forward.1} parent=0 // pred_fallthru
    _
  // Predicated region
  $region10: #{user_gru4rec_forward.1} parent=0 // pred_check
    _
  $region11: #{user_gru4rec_forward.1} parent=0 // pred_check_branch
    %13 = sbr.rel (0) target = $region13
  $region12: #{user_gru4rec_forward.1} parent=0 // pred_region
    _
  $region13: #{user_gru4rec_forward.1} parent=0 // pred_fallthru
    _
  %v15 = vld [vmem:[%s2] sm:$0xff]
  %v16 = vld [vmem:[%s2 + $0x8] sm:$0xff]
  %v17 = vld [vmem:[%s2 + $0x10] sm:$0xff]
  %v18 = vld [vmem:[%s2 + $0x18] sm:$0xff]
  %v19 = vld [vmem:[%s2 + $0x20] sm:$0xff]
  %v20 = vld [vmem:[%s2 + $0x28] sm:$0xff]
  %v21 = vld [vmem:[%s2 + $0x30] sm:$0xff]
  %v22 = vld [vmem:[%s2 + $0x38] sm:$0xff]
  %v23 = vld [vmem:[%s2 + $0x40] sm:$0xff]
  %v24 = vld [vmem:[%s2 + $0x48] sm:$0xff]
  %v25 = vld [vmem:[%s2 + $0x50] sm:$0xff]
  %v26 = vld [vmem:[%s2 + $0x58] sm:$0xff]
  %v27 = vld [vmem:[%s2 + $0x60] sm:$0xff]
  %v28 = vld [vmem:[%s2 + $0x68] sm:$0xff]
  %v29 = vld [vmem:[%s2 + $0x70] sm:$0xff]
  %v30 = vld [vmem:[%s2 + $0x78] sm:$0xff]
  %v31 = vld [vmem:[%s2 + $0x80] sm:$0xff]
  %v32 = vld [vmem:[%s2 + $0x88] sm:$0xff]
  %v33 = vld [vmem:[%s2 + $0x90] sm:$0xff]
  %v34 = vld [vmem:[%s2 + $0x98] sm:$0xff]
  %v35 = vld [vmem:[%s2 + $0xa0] sm:$0xff]
  %v36 = vld [vmem:[%s2 + $0xa8] sm:$0xff]
  %v37 = vld [vmem:[%s2 + $0xb0] sm:$0xff]
  %v38 = vld [vmem:[%s2 + $0xb8] sm:$0xff]
  %v39 = vld [vmem:[%s2 + $0xc0] sm:$0xff]
  %v40 = vld [vmem:[%s2 + $0xc8] sm:$0xff]
  %v41 = vld [vmem:[%s2 + $0xd0] sm:$0xff]
  %v42 = vld [vmem:[%s2 + $0xd8] sm:$0xff]
  %v43 = vld [vmem:[%s2 + $0xe0] sm:$0xff]
  %v44 = vld [vmem:[%s2 + $0xe8] sm:$0xff]
  %v45 = vld [vmem:[%s2 + $0xf0] sm:$0xff]
  %v46 = vld [vmem:[%s2 + $0xf8] sm:$0xff]
  %v47 = vld [vmem:[%s2 + $0x100] sm:$0xff]
  %v48 = vld [vmem:[%s2 + $0x108] sm:$0xff]
  %v49 = vld [vmem:[%s2 + $0x110] sm:$0xff]
  %v50 = vld [vmem:[%s2 + $0x118] sm:$0xff]
  %v51 = vld [vmem:[%s2 + $0x120] sm:$0xff]
  %v52 = vld [vmem:[%s2 + $0x128] sm:$0xff]
  %v53 = vld [vmem:[%s2 + $0x130] sm:$0xff]
  %v54 = vld [vmem:[%s2 + $0x138] sm:$0xff]
  %v55 = vld [vmem:[%s2 + $0x140] sm:$0xff]
  %v56 = vld [vmem:[%s2 + $0x148] sm:$0xff]
  %v57 = vld [vmem:[%s2 + $0x150] sm:$0xff]
  %v58 = vld [vmem:[%s2 + $0x158] sm:$0xff]
  %v59 = vld [vmem:[%s2 + $0x160] sm:$0xff]
  %v60 = vld [vmem:[%s2 + $0x168] sm:$0xff]
  %v61 = vld [vmem:[%s2 + $0x170] sm:$0xff]
  %v62 = vld [vmem:[%s2 + $0x178] sm:$0xff]
  %v63 = vld [vmem:[%s2 + $0x180] sm:$0xff]
  %v64 = vld [vmem:[%s2 + $0x188] sm:$0xff]
  %v65 = vld [vmem:[%s2 + $0x190] sm:$0xff]
  %v66 = vld [vmem:[%s2 + $0x198] sm:$0xff]
  %v67 = vld [vmem:[%s2 + $0x1a0] sm:$0xff]
  %v68 = vld [vmem:[%s2 + $0x1a8] sm:$0xff]
  %v69 = vld [vmem:[%s2 + $0x1b0] sm:$0xff]
  %v70 = vld [vmem:[%s2 + $0x1b8] sm:$0xff]
  %v71 = vld [vmem:[%s2 + $0x1c0] sm:$0xff]
  %v72 = vld [vmem:[%s2 + $0x1c8] sm:$0xff]
  %v73 = vld [vmem:[%s2 + $0x1d0] sm:$0xff]
  %v74 = vld [vmem:[%s2 + $0x1d8] sm:$0xff]
  %v75 = vld [vmem:[%s2 + $0x1e0] sm:$0xff]
  %v76 = vld [vmem:[%s2 + $0x1e8] sm:$0xff]
  %v77 = vld [vmem:[%s2 + $0x1f0] sm:$0xff]
  %v78 = vld [vmem:[%s2 + $0x1f8] sm:$0xff]
  %v79 = vld [vmem:[%s2 + $0x200] sm:$0xff]
  %v80 = vld [vmem:[%s2 + $0x208] sm:$0xff]
  %v81 = vld [vmem:[%s2 + $0x210] sm:$0xff]
  %v82 = vld [vmem:[%s2 + $0x218] sm:$0xff]
  %v83 = vld [vmem:[%s2 + $0x220] sm:$0xff]
  %v84 = vld [vmem:[%s2 + $0x228] sm:$0xff]
  %v85 = vld [vmem:[%s2 + $0x230] sm:$0xff]
  %v86 = vld [vmem:[%s2 + $0x238] sm:$0xff]
  %v87 = vld [vmem:[%s2 + $0x240] sm:$0xff]
  %v88 = vld [vmem:[%s2 + $0x248] sm:$0xff]
  %v89 = vld [vmem:[%s2 + $0x250] sm:$0xff]
  %v90 = vld [vmem:[%s2 + $0x258] sm:$0xff]
  %v91 = vld [vmem:[%s2 + $0x260] sm:$0xff]
  %v92 = vld [vmem:[%s2 + $0x268] sm:$0xff]
  %v93 = vld [vmem:[%s2 + $0x270] sm:$0xff]
  %v94 = vld [vmem:[%s2 + $0x278] sm:$0xff]
  %v95 = vld [vmem:[%s2 + $0x280] sm:$0xff]
  %v96 = vld [vmem:[%s2 + $0x288] sm:$0xff]
  %v97 = vld [vmem:[%s2 + $0x290] sm:$0xff]
  %v98 = vld [vmem:[%s2 + $0x298] sm:$0xff]
  %v99 = vld [vmem:[%s2 + $0x2a0] sm:$0xff]
  %v100 = vld [vmem:[%s2 + $0x2a8] sm:$0xff]
  %v101 = vld [vmem:[%s2 + $0x2b0] sm:$0xff]
  %v102 = vld [vmem:[%s2 + $0x2b8] sm:$0xff]
  %v103 = vld [vmem:[%s2 + $0x2c0] sm:$0xff]
  %v104 = vld [vmem:[%s2 + $0x2c8] sm:$0xff]
  %v105 = vld [vmem:[%s2 + $0x2d0] sm:$0xff]
  %v106 = vld [vmem:[%s2 + $0x2d8] sm:$0xff]
  %v107 = vld [vmem:[%s2 + $0x2e0] sm:$0xff]
  %v108 = vld [vmem:[%s2 + $0x2e8] sm:$0xff]
  %v109 = vld [vmem:[%s2 + $0x2f0] sm:$0xff]
  %v110 = vld [vmem:[%s2 + $0x2f8] sm:$0xff]
  %v111 = vld [vmem:[%s2 + $0x300] sm:$0xff]
  %v112 = vld [vmem:[%s2 + $0x308] sm:$0xff]
  %v113 = vld [vmem:[%s2 + $0x310] sm:$0xff]
  %v114 = vld [vmem:[%s2 + $0x318] sm:$0xff]
  %v115 = vld [vmem:[%s2 + $0x320] sm:$0xff]
  %v116 = vld [vmem:[%s2 + $0x328] sm:$0xff]
  %v117 = vld [vmem:[%s2 + $0x330] sm:$0xff]
  %v118 = vld [vmem:[%s2 + $0x338] sm:$0xff]
  %v119 = vld [vmem:[%s2 + $0x340] sm:$0xf]
  %v120 = vld [vmem:[%s2 + $0x350] sm:$0xf]
  %v121 = vld [vmem:[%s2 + $0x360] sm:$0xf]
  %v122 = vld [vmem:[%s2 + $0x370] sm:$0xf]
  %v123 = vld [vmem:[%s2 + $0x380] sm:$0xf]
  %v124 = vld [vmem:[%s2 + $0x390] sm:$0xf]
  %v125 = vld [vmem:[%s2 + $0x3a0] sm:$0xf]
  %v126 = vld [vmem:[%s2 + $0x3b0] sm:$0xf]
  %v127 = vld [vmem:[%s2 + $0x3c0] sm:$0xf]
  %v128 = vld [vmem:[%s2 + $0x3d0] sm:$0xf]
  %v129 = vld [vmem:[%s2 + $0x3e0] sm:$0xf]
  %v130 = vld [vmem:[%s2 + $0x3f0] sm:$0xf]
  %v131 = vld [vmem:[%s2 + $0x400] sm:$0xf]
  %v132 = vld [vmem:[%s2 + $0x410] sm:$0xf]
  %v133 = vld [vmem:[%s2 + $0x420] sm:$0xf]
  %v134 = vld [vmem:[%s2 + $0x430] sm:$0xf]
  %v135 = vld [vmem:[%s2 + $0x440] sm:$0xf]
  %v136 = vunpack.c.l.bf16 %v135
  %v137 = vld [vmem:[%s0] sm:$0xf]
  %v138 = vld [vmem:[%s0 + $0x4] sm:$0xf]
  %v139 = vld [vmem:[%s0 + $0x8] sm:$0xf]
  %v140 = vld [vmem:[%s0 + $0xc] sm:$0xf]
  %v141 = vld [vmem:[%s0 + $0x10] sm:$0xf]
  %v142 = vld [vmem:[%s0 + $0x14] sm:$0xf]
  %v143 = vld [vmem:[%s0 + $0x18] sm:$0xf]
  %v144 = vld [vmem:[%s0 + $0x1c] sm:$0xf]
  %v153 = vunpack.c.l.b16 %v137
  %v154 = vunpack.c.l.b16 %v138
  %v155 = vunpack.c.l.b16 %v139
  %v156 = vunpack.c.l.b16 %v140
  %v157 = vunpack.c.l.b16 %v141
  %v158 = vunpack.c.l.b16 %v142
  %v159 = vunpack.c.l.b16 %v143
  %v160 = vunpack.c.l.b16 %v144
  %v161 = vpack.c.b16 %v154, %v153
  %v162 = vpack.c.b16 %v156, %v155
  %v163 = vpack.c.b16 %v158, %v157
  %v164 = vpack.c.b16 %v160, %v159
  %v173 = vunpack.c.l.b16 %v15
  %v174 = vunpack.c.h.b16 %v15
  %v175 = vunpack.c.l.b16 %v16
  %v176 = vunpack.c.h.b16 %v16
  %v177 = vunpack.c.l.b16 %v17
  %v178 = vunpack.c.h.b16 %v17
  %v179 = vunpack.c.l.b16 %v18
  %v180 = vunpack.c.h.b16 %v18
  %v181 = vunpack.c.l.b16 %v19
  %v182 = vunpack.c.h.b16 %v19
  %v183 = vunpack.c.l.b16 %v20
  %v184 = vunpack.c.h.b16 %v20
  %v185 = vunpack.c.l.b16 %v21
  %v186 = vunpack.c.h.b16 %v21
  %v187 = vunpack.c.l.b16 %v22
  %v188 = vunpack.c.h.b16 %v22
  %v189 = vpack.c.b16 %v177, %v173
  %v190 = vpack.c.b16 %v178, %v174
  %v191 = vpack.c.b16 %v179, %v175
  %v192 = vpack.c.b16 %v180, %v176
  %v193 = vpack.c.b16 %v185, %v181
  %v194 = vpack.c.b16 %v186, %v182
  %v195 = vpack.c.b16 %v187, %v183
  %v196 = vpack.c.b16 %v188, %v184
  %vm205 = vcmask 261120
  %v207 = vsel %vm205, %v161, 0
  %v210 = vsel %vm205, %v162, 0
  %v213 = vsel %vm205, %v163, 0
  %v216 = vsel %vm205, %v164, 0
  %218 = vmatpush.bf16.msra.mxu0 0
  %219 = vmatpush.bf16.msra.mxu0 0
  %220 = vmatpush.bf16.msra.mxu0 0
  %221 = vmatpush.bf16.msra.mxu0 0
  %222 = vmatpush.bf16.msra.mxu0 0
  %223 = vmatpush.bf16.msra.mxu0 0
  %224 = vmatpush.bf16.msra.mxu0 %v193
  %225 = vmatpush.bf16.msra.mxu0 %v189
  %226 = vmatmul.bf16.gmra.mxu0 %v207
  %v227 = vpop.f32.mrf.mxu0
  %v228 = vadd.f32 0.0, %v227
  %v229 = vpop.f32.mrf.mxu0
  %v230 = vadd.f32 0.0, %v229
  %231 = vmatmul.bf16.gmra.mxu0 %v210
  %v232 = vpop.f32.mrf.mxu0
  %v233 = vadd.f32 0.0, %v232
  %v234 = vpop.f32.mrf.mxu0
  %v235 = vadd.f32 0.0, %v234
  %236 = vmatmul.bf16.gmra.mxu0 %v213
  %v237 = vpop.f32.mrf.mxu0
  %v238 = vadd.f32 0.0, %v237
  %v239 = vpop.f32.mrf.mxu0
  %v240 = vadd.f32 0.0, %v239
  %241 = vmatmul.bf16.gmra.mxu0 %v216
  %v242 = vpop.f32.mrf.mxu0
  %v243 = vadd.f32 0.0, %v242
  %v244 = vpop.f32.mrf.mxu0
  %v245 = vadd.f32 0.0, %v244
  %246 = vdwg.mxu0
  %247 = vmatpush.bf16.msra.mxu0 0
  %248 = vmatpush.bf16.msra.mxu0 0
  %249 = vmatpush.bf16.msra.mxu0 0
  %250 = vmatpush.bf16.msra.mxu0 0
  %251 = vmatpush.bf16.msra.mxu0 0
  %252 = vmatpush.bf16.msra.mxu0 0
  %253 = vmatpush.bf16.msra.mxu0 %v194
  %254 = vmatpush.bf16.msra.mxu0 %v190
  %255 = vmatmul.bf16.gmra.mxu0 %v207
  %v256 = vpop.f32.mrf.mxu0
  %v257 = vadd.f32 0.0, %v256
  %v258 = vpop.f32.mrf.mxu0
  %v259 = vadd.f32 0.0, %v258
  %260 = vmatmul.bf16.gmra.mxu0 %v210
  %v261 = vpop.f32.mrf.mxu0
  %v262 = vadd.f32 0.0, %v261
  %v263 = vpop.f32.mrf.mxu0
  %v264 = vadd.f32 0.0, %v263
  %265 = vmatmul.bf16.gmra.mxu0 %v213
  %v266 = vpop.f32.mrf.mxu0
  %v267 = vadd.f32 0.0, %v266
  %v268 = vpop.f32.mrf.mxu0
  %v269 = vadd.f32 0.0, %v268
  %270 = vmatmul.bf16.gmra.mxu0 %v216
  %v271 = vpop.f32.mrf.mxu0
  %v272 = vadd.f32 0.0, %v271
  %v273 = vpop.f32.mrf.mxu0
  %v274 = vadd.f32 0.0, %v273
  %275 = vdwg.mxu0
  %276 = vmatpush.bf16.msra.mxu0 0
  %277 = vmatpush.bf16.msra.mxu0 0
  %278 = vmatpush.bf16.msra.mxu0 0
  %279 = vmatpush.bf16.msra.mxu0 0
  %280 = vmatpush.bf16.msra.mxu0 0
  %281 = vmatpush.bf16.msra.mxu0 0
  %282 = vmatpush.bf16.msra.mxu0 %v195
  %283 = vmatpush.bf16.msra.mxu0 %v191
  %284 = vmatmul.bf16.gmra.mxu0 %v207
  %v285 = vpop.f32.mrf.mxu0
  %v286 = vadd.f32 0.0, %v285
  %v287 = vpop.f32.mrf.mxu0
  %v288 = vadd.f32 0.0, %v287
  %289 = vmatmul.bf16.gmra.mxu0 %v210
  %v290 = vpop.f32.mrf.mxu0
  %v291 = vadd.f32 0.0, %v290
  %v292 = vpop.f32.mrf.mxu0
  %v293 = vadd.f32 0.0, %v292
  %294 = vmatmul.bf16.gmra.mxu0 %v213
  %v295 = vpop.f32.mrf.mxu0
  %v296 = vadd.f32 0.0, %v295
  %v297 = vpop.f32.mrf.mxu0
  %v298 = vadd.f32 0.0, %v297
  %299 = vmatmul.bf16.gmra.mxu0 %v216
  %v300 = vpop.f32.mrf.mxu0
  %v301 = vadd.f32 0.0, %v300
  %v302 = vpop.f32.mrf.mxu0
  %v303 = vadd.f32 0.0, %v302
  %304 = vdwg.mxu0
  %305 = vmatpush.bf16.msra.mxu0 0
  %306 = vmatpush.bf16.msra.mxu0 0
  %307 = vmatpush.bf16.msra.mxu0 0
  %308 = vmatpush.bf16.msra.mxu0 0
  %309 = vmatpush.bf16.msra.mxu0 0
  %310 = vmatpush.bf16.msra.mxu0 0
  %311 = vmatpush.bf16.msra.mxu0 %v196
  %312 = vmatpush.bf16.msra.mxu0 %v192
  %313 = vmatmul.bf16.gmra.mxu0 %v207
  %v314 = vpop.f32.mrf.mxu0
  %v315 = vadd.f32 0.0, %v314
  %v316 = vpop.f32.mrf.mxu0
  %v317 = vadd.f32 0.0, %v316
  %318 = vmatmul.bf16.gmra.mxu0 %v210
  %v319 = vpop.f32.mrf.mxu0
  %v320 = vadd.f32 0.0, %v319
  %v321 = vpop.f32.mrf.mxu0
  %v322 = vadd.f32 0.0, %v321
  %323 = vmatmul.bf16.gmra.mxu0 %v213
  %v324 = vpop.f32.mrf.mxu0
  %v325 = vadd.f32 0.0, %v324
  %v326 = vpop.f32.mrf.mxu0
  %v327 = vadd.f32 0.0, %v326
  %328 = vmatmul.bf16.gmra.mxu0 %v216
  %v329 = vpop.f32.mrf.mxu0
  %v330 = vadd.f32 0.0, %v329
  %v331 = vpop.f32.mrf.mxu0
  %v332 = vadd.f32 0.0, %v331
  %333 = vdwg.mxu0
  %334 = vst [vmem:[#allocation2] sm:$0xff] %v228
  %335 = vst [vmem:[#allocation2 + $0x8] sm:$0xff] %v257
  %336 = vst [vmem:[#allocation2 + $0x10] sm:$0xff] %v286
  %337 = vst [vmem:[#allocation2 + $0x18] sm:$0xff] %v315
  %338 = vst [vmem:[#allocation2 + $0x20] sm:$0xff] %v230
  %339 = vst [vmem:[#allocation2 + $0x28] sm:$0xff] %v259
  %340 = vst [vmem:[#allocation2 + $0x30] sm:$0xff] %v288
  %341 = vst [vmem:[#allocation2 + $0x38] sm:$0xff] %v317
  %342 = vst [vmem:[#allocation2 + $0x40] sm:$0xff] %v233
  %343 = vst [vmem:[#allocation2 + $0x48] sm:$0xff] %v262
  %344 = vst [vmem:[#allocation2 + $0x50] sm:$0xff] %v291
  %345 = vst [vmem:[#allocation2 + $0x58] sm:$0xff] %v320
  %346 = vst [vmem:[#allocation2 + $0x60] sm:$0xff] %v235
  %347 = vst [vmem:[#allocation2 + $0x68] sm:$0xff] %v264
  %348 = vst [vmem:[#allocation2 + $0x70] sm:$0xff] %v293
  %349 = vst [vmem:[#allocation2 + $0x78] sm:$0xff] %v322
  %350 = vst [vmem:[#allocation2 + $0x80] sm:$0xff] %v238
  %351 = vst [vmem:[#allocation2 + $0x88] sm:$0xff] %v267
  %352 = vst [vmem:[#allocation2 + $0x90] sm:$0xff] %v296
  %353 = vst [vmem:[#allocation2 + $0x98] sm:$0xff] %v325
  %354 = vst [vmem:[#allocation2 + $0xa0] sm:$0xff] %v240
  %355 = vst [vmem:[#allocation2 + $0xa8] sm:$0xff] %v269
  %356 = vst [vmem:[#allocation2 + $0xb0] sm:$0xff] %v298
  %357 = vst [vmem:[#allocation2 + $0xb8] sm:$0xff] %v327
  %358 = vst [vmem:[#allocation2 + $0xc0] sm:$0xff] %v243
  %359 = vst [vmem:[#allocation2 + $0xc8] sm:$0xff] %v272
  %360 = vst [vmem:[#allocation2 + $0xd0] sm:$0xff] %v301
  %361 = vst [vmem:[#allocation2 + $0xd8] sm:$0xff] %v330
  %362 = vst [vmem:[#allocation2 + $0xe0] sm:$0xff] %v245
  %363 = vst [vmem:[#allocation2 + $0xe8] sm:$0xff] %v274
  %364 = vst [vmem:[#allocation2 + $0xf0] sm:$0xff] %v303
  %365 = vst [vmem:[#allocation2 + $0xf8] sm:$0xff] %v332
  %v366 = vld [vmem:[%s1] sm:$0xff]
  %v367 = vld [vmem:[#allocation2] sm:$0xff]
  %v368 = vld [vmem:[#allocation2 + $0x8] sm:$0xff]
  %v369 = vld [vmem:[#allocation2 + $0x10] sm:$0xff]
  %v370 = vld [vmem:[#allocation2 + $0x18] sm:$0xff]
  %v403 = vunpack.c.l.b16 %v23
  %v404 = vunpack.c.h.b16 %v23
  %v405 = vunpack.c.l.b16 %v24
  %v406 = vunpack.c.h.b16 %v24
  %v407 = vunpack.c.l.b16 %v25
  %v408 = vunpack.c.h.b16 %v25
  %v409 = vunpack.c.l.b16 %v26
  %v410 = vunpack.c.h.b16 %v26
  %v411 = vunpack.c.l.b16 %v27
  %v412 = vunpack.c.h.b16 %v27
  %v413 = vunpack.c.l.b16 %v28
  %v414 = vunpack.c.h.b16 %v28
  %v415 = vunpack.c.l.b16 %v29
  %v416 = vunpack.c.h.b16 %v29
  %v417 = vunpack.c.l.b16 %v30
  %v418 = vunpack.c.h.b16 %v30
  %v419 = vunpack.c.l.b16 %v31
  %v420 = vunpack.c.h.b16 %v31
  %v421 = vunpack.c.l.b16 %v32
  %v422 = vunpack.c.h.b16 %v32
  %v423 = vunpack.c.l.b16 %v33
  %v424 = vunpack.c.h.b16 %v33
  %v425 = vunpack.c.l.b16 %v34
  %v426 = vunpack.c.h.b16 %v34
  %v427 = vunpack.c.l.b16 %v35
  %v428 = vunpack.c.h.b16 %v35
  %v429 = vunpack.c.l.b16 %v36
  %v430 = vunpack.c.h.b16 %v36
  %v431 = vunpack.c.l.b16 %v37
  %v432 = vunpack.c.h.b16 %v37
  %v433 = vunpack.c.l.b16 %v38
  %v434 = vunpack.c.h.b16 %v38
  %v435 = vunpack.c.l.b16 %v39
  %v436 = vunpack.c.h.b16 %v39
  %v437 = vunpack.c.l.b16 %v40
  %v438 = vunpack.c.h.b16 %v40
  %v439 = vunpack.c.l.b16 %v41
  %v440 = vunpack.c.h.b16 %v41
  %v441 = vunpack.c.l.b16 %v42
  %v442 = vunpack.c.h.b16 %v42
  %v443 = vunpack.c.l.b16 %v43
  %v444 = vunpack.c.h.b16 %v43
  %v445 = vunpack.c.l.b16 %v44
  %v446 = vunpack.c.h.b16 %v44
  %v447 = vunpack.c.l.b16 %v45
  %v448 = vunpack.c.h.b16 %v45
  %v449 = vunpack.c.l.b16 %v46
  %v450 = vunpack.c.h.b16 %v46
  %v451 = vunpack.c.l.b16 %v47
  %v452 = vunpack.c.h.b16 %v47
  %v453 = vunpack.c.l.b16 %v48
  %v454 = vunpack.c.h.b16 %v48
  %v455 = vunpack.c.l.b16 %v49
  %v456 = vunpack.c.h.b16 %v49
  %v457 = vunpack.c.l.b16 %v50
  %v458 = vunpack.c.h.b16 %v50
  %v459 = vunpack.c.l.b16 %v51
  %v460 = vunpack.c.h.b16 %v51
  %v461 = vunpack.c.l.b16 %v52
  %v462 = vunpack.c.h.b16 %v52
  %v463 = vunpack.c.l.b16 %v53
  %v464 = vunpack.c.h.b16 %v53
  %v465 = vunpack.c.l.b16 %v54
  %v466 = vunpack.c.h.b16 %v54
  %v467 = vpack.c.b16 %v407, %v403
  %v468 = vpack.c.b16 %v408, %v404
  %v469 = vpack.c.b16 %v409, %v405
  %v470 = vpack.c.b16 %v410, %v406
  %v471 = vpack.c.b16 %v415, %v411
  %v472 = vpack.c.b16 %v416, %v412
  %v473 = vpack.c.b16 %v417, %v413
  %v474 = vpack.c.b16 %v418, %v414
  %v475 = vpack.c.b16 %v423, %v419
  %v476 = vpack.c.b16 %v424, %v420
  %v477 = vpack.c.b16 %v425, %v421
  %v478 = vpack.c.b16 %v426, %v422
  %v479 = vpack.c.b16 %v431, %v427
  %v480 = vpack.c.b16 %v432, %v428
  %v481 = vpack.c.b16 %v433, %v429
  %v482 = vpack.c.b16 %v434, %v430
  %v483 = vpack.c.b16 %v439, %v435
  %v484 = vpack.c.b16 %v440, %v436
  %v485 = vpack.c.b16 %v441, %v437
  %v486 = vpack.c.b16 %v442, %v438
  %v487 = vpack.c.b16 %v447, %v443
  %v488 = vpack.c.b16 %v448, %v444
  %v489 = vpack.c.b16 %v449, %v445
  %v490 = vpack.c.b16 %v450, %v446
  %v491 = vpack.c.b16 %v455, %v451
  %v492 = vpack.c.b16 %v456, %v452
  %v493 = vpack.c.b16 %v457, %v453
  %v494 = vpack.c.b16 %v458, %v454
  %v495 = vpack.c.b16 %v463, %v459
  %v496 = vpack.c.b16 %v464, %v460
  %v497 = vpack.c.b16 %v465, %v461
  %v498 = vpack.c.b16 %v466, %v462
  %531 = vmatpush.bf16.msra.mxu0 %v495
  %532 = vmatpush.bf16.msra.mxu0 %v491
  %533 = vmatpush.bf16.msra.mxu0 %v487
  %534 = vmatpush.bf16.msra.mxu0 %v483
  %535 = vmatpush.bf16.msra.mxu0 %v479
  %536 = vmatpush.bf16.msra.mxu0 %v475
  %537 = vmatpush.bf16.msra.mxu0 %v471
  %538 = vmatpush.bf16.msra.mxu0 %v467
  %539 = vmatmul.bf16.gmra.mxu0 0
  %v540 = vpop.f32.mrf.mxu0
  %v541 = vadd.f32 0.0, %v540
  %v542 = vpop.f32.mrf.mxu0
  %543 = vdwg.mxu0
  %544 = vmatpush.bf16.msra.mxu0 %v496
  %545 = vmatpush.bf16.msra.mxu0 %v492
  %546 = vmatpush.bf16.msra.mxu0 %v488
  %547 = vmatpush.bf16.msra.mxu0 %v484
  %548 = vmatpush.bf16.msra.mxu0 %v480
  %549 = vmatpush.bf16.msra.mxu0 %v476
  %550 = vmatpush.bf16.msra.mxu0 %v472
  %551 = vmatpush.bf16.msra.mxu0 %v468
  %552 = vmatmul.bf16.gmra.mxu0 0
  %v553 = vpop.f32.mrf.mxu0
  %v554 = vadd.f32 0.0, %v553
  %v555 = vpop.f32.mrf.mxu0
  %556 = vdwg.mxu0
  %557 = vmatpush.bf16.msra.mxu0 %v497
  %558 = vmatpush.bf16.msra.mxu0 %v493
  %559 = vmatpush.bf16.msra.mxu0 %v489
  %560 = vmatpush.bf16.msra.mxu0 %v485
  %561 = vmatpush.bf16.msra.mxu0 %v481
  %562 = vmatpush.bf16.msra.mxu0 %v477
  %563 = vmatpush.bf16.msra.mxu0 %v473
  %564 = vmatpush.bf16.msra.mxu0 %v469
  %565 = vmatmul.bf16.gmra.mxu0 0
  %v566 = vpop.f32.mrf.mxu0
  %v567 = vadd.f32 0.0, %v566
  %v568 = vpop.f32.mrf.mxu0
  %569 = vdwg.mxu0
  %570 = vmatpush.bf16.msra.mxu0 %v498
  %571 = vmatpush.bf16.msra.mxu0 %v494
  %572 = vmatpush.bf16.msra.mxu0 %v490
  %573 = vmatpush.bf16.msra.mxu0 %v486
  %574 = vmatpush.bf16.msra.mxu0 %v482
  %575 = vmatpush.bf16.msra.mxu0 %v478
  %576 = vmatpush.bf16.msra.mxu0 %v474
  %577 = vmatpush.bf16.msra.mxu0 %v470
  %578 = vmatmul.bf16.gmra.mxu0 0
  %v579 = vpop.f32.mrf.mxu0
  %v580 = vadd.f32 0.0, %v579
  %v581 = vpop.f32.mrf.mxu0
  %582 = vdwg.mxu0
  %v583 = vadd.f32 %v367, %v541
  %v584 = vadd.f32 %v368, %v554
  %v585 = vadd.f32 %v369, %v567
  %v586 = vadd.f32 %v370, %v580
  %v587 = vxor.u32 %v583, 2147483648
  %v588 = vmul.f32 %v587, 1.442695
  %v589 = vpow.pop %v588
  %v590 = vadd.f32 %v589, 1.0
  %v591 = vrcp.pop %v590
  %v592 = vmul.f32 %v590, %v591
  %v593 = vsub.f32 1.0, %v592
  %v594 = vmul.f32 %v591, %v593
  %v595 = vadd.f32 %v591, %v594
  %vm596 = vweird.f32 %v590
  %vm597 = vweird.f32 %v591
  %vm598 = vmor %vm596, %vm597
  %v599 = vsel %vm598, %v591, %v595
  %v600 = vand.u32 2147483647, %v590
  %vm601 = vcmp.eq.f32.partialorder %v600, 8.507059e+37
  %v602 = vand.u32 %v590, 2147483648
  %v603 = vor.u32 1.1754944e-38, %v602
  %v604 = vsel %vm601, %v603, %v599
  %v605 = vmul.f32 1.0, %v604
  %v606 = vxor.u32 %v584, 2147483648
  %v607 = vmul.f32 %v606, 1.442695
  %v608 = vpow.pop %v607
  %v609 = vadd.f32 %v608, 1.0
  %v610 = vrcp.pop %v609
  %v611 = vmul.f32 %v609, %v610
  %v612 = vsub.f32 1.0, %v611
  %v613 = vmul.f32 %v610, %v612
  %v614 = vadd.f32 %v610, %v613
  %vm615 = vweird.f32 %v609
  %vm616 = vweird.f32 %v610
  %vm617 = vmor %vm615, %vm616
  %v618 = vsel %vm617, %v610, %v614
  %v619 = vand.u32 2147483647, %v609
  %vm620 = vcmp.eq.f32.partialorder %v619, 8.507059e+37
  %v621 = vand.u32 %v609, 2147483648
  %v622 = vor.u32 1.1754944e-38, %v621
  %v623 = vsel %vm620, %v622, %v618
  %v624 = vmul.f32 1.0, %v623
  %v625 = vmul.f32 %v605, %v586
  %v626 = vadd.f32 %v585, %v625
  %v627 = vtanh.pop %v626
  %v628 = vsub.f32 1.0, %v624
  %v629 = vmul.f32 %v628, %v627
  %v630 = vmul.f32 %v624, 0.0
  %v631 = vadd.f32 %v629, %v630
  %v632 = vpack.c.bf16 %v631, %v631
  %v633 = vpack.c.bf16 0.0, 0.0
  %v698 = vunpack.c.l.b16 %v55
  %v699 = vunpack.c.h.b16 %v55
  %v700 = vunpack.c.l.b16 %v56
  %v701 = vunpack.c.h.b16 %v56
  %v702 = vunpack.c.l.b16 %v57
  %v703 = vunpack.c.h.b16 %v57
  %v704 = vunpack.c.l.b16 %v58
  %v705 = vunpack.c.h.b16 %v58
  %v706 = vunpack.c.l.b16 %v59
  %v707 = vunpack.c.h.b16 %v59
  %v708 = vunpack.c.l.b16 %v60
  %v709 = vunpack.c.h.b16 %v60
  %v710 = vunpack.c.l.b16 %v61
  %v711 = vunpack.c.h.b16 %v61
  %v712 = vunpack.c.l.b16 %v62
  %v713 = vunpack.c.h.b16 %v62
  %v714 = vunpack.c.l.b16 %v63
  %v715 = vunpack.c.h.b16 %v63
  %v716 = vunpack.c.l.b16 %v64
  %v717 = vunpack.c.h.b16 %v64
  %v718 = vunpack.c.l.b16 %v65
  %v719 = vunpack.c.h.b16 %v65
  %v720 = vunpack.c.l.b16 %v66
  %v721 = vunpack.c.h.b16 %v66
  %v722 = vunpack.c.l.b16 %v67
  %v723 = vunpack.c.h.b16 %v67
  %v724 = vunpack.c.l.b16 %v68
  %v725 = vunpack.c.h.b16 %v68
  %v726 = vunpack.c.l.b16 %v69
  %v727 = vunpack.c.h.b16 %v69
  %v728 = vunpack.c.l.b16 %v70
  %v729 = vunpack.c.h.b16 %v70
  %v730 = vunpack.c.l.b16 %v71
  %v731 = vunpack.c.h.b16 %v71
  %v732 = vunpack.c.l.b16 %v72
  %v733 = vunpack.c.h.b16 %v72
  %v734 = vunpack.c.l.b16 %v73
  %v735 = vunpack.c.h.b16 %v73
  %v736 = vunpack.c.l.b16 %v74
  %v737 = vunpack.c.h.b16 %v74
  %v738 = vunpack.c.l.b16 %v75
  %v739 = vunpack.c.h.b16 %v75
  %v740 = vunpack.c.l.b16 %v76
  %v741 = vunpack.c.h.b16 %v76
  %v742 = vunpack.c.l.b16 %v77
  %v743 = vunpack.c.h.b16 %v77
  %v744 = vunpack.c.l.b16 %v78
  %v745 = vunpack.c.h.b16 %v78
  %v746 = vunpack.c.l.b16 %v79
  %v747 = vunpack.c.h.b16 %v79
  %v748 = vunpack.c.l.b16 %v80
  %v749 = vunpack.c.h.b16 %v80
  %v750 = vunpack.c.l.b16 %v81
  %v751 = vunpack.c.h.b16 %v81
  %v752 = vunpack.c.l.b16 %v82
  %v753 = vunpack.c.h.b16 %v82
  %v754 = vunpack.c.l.b16 %v83
  %v755 = vunpack.c.h.b16 %v83
  %v756 = vunpack.c.l.b16 %v84
  %v757 = vunpack.c.h.b16 %v84
  %v758 = vunpack.c.l.b16 %v85
  %v759 = vunpack.c.h.b16 %v85
  %v760 = vunpack.c.l.b16 %v86
  %v761 = vunpack.c.h.b16 %v86
  %v762 = vunpack.c.l.b16 %v87
  %v763 = vunpack.c.h.b16 %v87
  %v764 = vunpack.c.l.b16 %v88
  %v765 = vunpack.c.h.b16 %v88
  %v766 = vunpack.c.l.b16 %v89
  %v767 = vunpack.c.h.b16 %v89
  %v768 = vunpack.c.l.b16 %v90
  %v769 = vunpack.c.h.b16 %v90
  %v770 = vunpack.c.l.b16 %v91
  %v771 = vunpack.c.h.b16 %v91
  %v772 = vunpack.c.l.b16 %v92
  %v773 = vunpack.c.h.b16 %v92
  %v774 = vunpack.c.l.b16 %v93
  %v775 = vunpack.c.h.b16 %v93
  %v776 = vunpack.c.l.b16 %v94
  %v777 = vunpack.c.h.b16 %v94
  %v778 = vunpack.c.l.b16 %v95
  %v779 = vunpack.c.h.b16 %v95
  %v780 = vunpack.c.l.b16 %v96
  %v781 = vunpack.c.h.b16 %v96
  %v782 = vunpack.c.l.b16 %v97
  %v783 = vunpack.c.h.b16 %v97
  %v784 = vunpack.c.l.b16 %v98
  %v785 = vunpack.c.h.b16 %v98
  %v786 = vunpack.c.l.b16 %v99
  %v787 = vunpack.c.h.b16 %v99
  %v788 = vunpack.c.l.b16 %v100
  %v789 = vunpack.c.h.b16 %v100
  %v790 = vunpack.c.l.b16 %v101
  %v791 = vunpack.c.h.b16 %v101
  %v792 = vunpack.c.l.b16 %v102
  %v793 = vunpack.c.h.b16 %v102
  %v794 = vunpack.c.l.b16 %v103
  %v795 = vunpack.c.h.b16 %v103
  %v796 = vunpack.c.l.b16 %v104
  %v797 = vunpack.c.h.b16 %v104
  %v798 = vunpack.c.l.b16 %v105
  %v799 = vunpack.c.h.b16 %v105
  %v800 = vunpack.c.l.b16 %v106
  %v801 = vunpack.c.h.b16 %v106
  %v802 = vunpack.c.l.b16 %v107
  %v803 = vunpack.c.h.b16 %v107
  %v804 = vunpack.c.l.b16 %v108
  %v805 = vunpack.c.h.b16 %v108
  %v806 = vunpack.c.l.b16 %v109
  %v807 = vunpack.c.h.b16 %v109
  %v808 = vunpack.c.l.b16 %v110
  %v809 = vunpack.c.h.b16 %v110
  %v810 = vunpack.c.l.b16 %v111
  %v811 = vunpack.c.h.b16 %v111
  %v812 = vunpack.c.l.b16 %v112
  %v813 = vunpack.c.h.b16 %v112
  %v814 = vunpack.c.l.b16 %v113
  %v815 = vunpack.c.h.b16 %v113
  %v816 = vunpack.c.l.b16 %v114
  %v817 = vunpack.c.h.b16 %v114
  %v818 = vunpack.c.l.b16 %v115
  %v819 = vunpack.c.h.b16 %v115
  %v820 = vunpack.c.l.b16 %v116
  %v821 = vunpack.c.h.b16 %v116
  %v822 = vunpack.c.l.b16 %v117
  %v823 = vunpack.c.h.b16 %v117
  %v824 = vunpack.c.l.b16 %v118
  %v825 = vunpack.c.h.b16 %v118
  %v826 = vpack.c.b16 %v702, %v698
  %v827 = vpack.c.b16 %v703, %v699
  %v828 = vpack.c.b16 %v704, %v700
  %v829 = vpack.c.b16 %v705, %v701
  %v830 = vpack.c.b16 %v710, %v706
  %v831 = vpack.c.b16 %v711, %v707
  %v832 = vpack.c.b16 %v712, %v708
  %v833 = vpack.c.b16 %v713, %v709
  %v834 = vpack.c.b16 %v718, %v714
  %v835 = vpack.c.b16 %v719, %v715
  %v836 = vpack.c.b16 %v720, %v716
  %v837 = vpack.c.b16 %v721, %v717
  %v838 = vpack.c.b16 %v726, %v722
  %v839 = vpack.c.b16 %v727, %v723
  %v840 = vpack.c.b16 %v728, %v724
  %v841 = vpack.c.b16 %v729, %v725
  %v842 = vpack.c.b16 %v734, %v730
  %v843 = vpack.c.b16 %v735, %v731
  %v844 = vpack.c.b16 %v736, %v732
  %v845 = vpack.c.b16 %v737, %v733
  %v846 = vpack.c.b16 %v742, %v738
  %v847 = vpack.c.b16 %v743, %v739
  %v848 = vpack.c.b16 %v744, %v740
  %v849 = vpack.c.b16 %v745, %v741
  %v850 = vpack.c.b16 %v750, %v746
  %v851 = vpack.c.b16 %v751, %v747
  %v852 = vpack.c.b16 %v752, %v748
  %v853 = vpack.c.b16 %v753, %v749
  %v854 = vpack.c.b16 %v758, %v754
  %v855 = vpack.c.b16 %v759, %v755
  %v856 = vpack.c.b16 %v760, %v756
  %v857 = vpack.c.b16 %v761, %v757
  %v858 = vpack.c.b16 %v766, %v762
  %v859 = vpack.c.b16 %v767, %v763
  %v860 = vpack.c.b16 %v768, %v764
  %v861 = vpack.c.b16 %v769, %v765
  %v862 = vpack.c.b16 %v774, %v770
  %v863 = vpack.c.b16 %v775, %v771
  %v864 = vpack.c.b16 %v776, %v772
  %v865 = vpack.c.b16 %v777, %v773
  %v866 = vpack.c.b16 %v782, %v778
  %v867 = vpack.c.b16 %v783, %v779
  %v868 = vpack.c.b16 %v784, %v780
  %v869 = vpack.c.b16 %v785, %v781
  %v870 = vpack.c.b16 %v790, %v786
  %v871 = vpack.c.b16 %v791, %v787
  %v872 = vpack.c.b16 %v792, %v788
  %v873 = vpack.c.b16 %v793, %v789
  %v874 = vpack.c.b16 %v798, %v794
  %v875 = vpack.c.b16 %v799, %v795
  %v876 = vpack.c.b16 %v800, %v796
  %v877 = vpack.c.b16 %v801, %v797
  %v878 = vpack.c.b16 %v806, %v802
  %v879 = vpack.c.b16 %v807, %v803
  %v880 = vpack.c.b16 %v808, %v804
  %v881 = vpack.c.b16 %v809, %v805
  %v882 = vpack.c.b16 %v814, %v810
  %v883 = vpack.c.b16 %v815, %v811
  %v884 = vpack.c.b16 %v816, %v812
  %v885 = vpack.c.b16 %v817, %v813
  %v886 = vpack.c.b16 %v822, %v818
  %v887 = vpack.c.b16 %v823, %v819
  %v888 = vpack.c.b16 %v824, %v820
  %v889 = vpack.c.b16 %v825, %v821
  %954 = vmatpush.bf16.msra.mxu0 %v854
  %955 = vmatpush.bf16.msra.mxu0 %v850
  %956 = vmatpush.bf16.msra.mxu0 %v846
  %957 = vmatpush.bf16.msra.mxu0 %v842
  %958 = vmatpush.bf16.msra.mxu0 %v838
  %959 = vmatpush.bf16.msra.mxu0 %v834
  %960 = vmatpush.bf16.msra.mxu0 %v830
  %961 = vmatpush.bf16.msra.mxu0 %v826
  %962 = vmatmul.bf16.gmra.mxu0 %v632
  %v963 = vpop.f32.mrf.mxu0
  %v964 = vadd.f32 0.0, %v963
  %v965 = vpop.f32.mrf.mxu0
  %966 = vdwg.mxu0
  %967 = vmatpush.bf16.msra.mxu0 %v886
  %968 = vmatpush.bf16.msra.mxu0 %v882
  %969 = vmatpush.bf16.msra.mxu0 %v878
  %970 = vmatpush.bf16.msra.mxu0 %v874
  %971 = vmatpush.bf16.msra.mxu0 %v870
  %972 = vmatpush.bf16.msra.mxu0 %v866
  %973 = vmatpush.bf16.msra.mxu0 %v862
  %974 = vmatpush.bf16.msra.mxu0 %v858
  %975 = vmatmul.bf16.gmra.mxu0 %v633
  %v976 = vpop.f32.mrf.mxu0
  %v977 = vadd.f32 %v964, %v976
  %v978 = vpop.f32.mrf.mxu0
  %979 = vdwg.mxu0
  %980 = vmatpush.bf16.msra.mxu0 %v855
  %981 = vmatpush.bf16.msra.mxu0 %v851
  %982 = vmatpush.bf16.msra.mxu0 %v847
  %983 = vmatpush.bf16.msra.mxu0 %v843
  %984 = vmatpush.bf16.msra.mxu0 %v839
  %985 = vmatpush.bf16.msra.mxu0 %v835
  %986 = vmatpush.bf16.msra.mxu0 %v831
  %987 = vmatpush.bf16.msra.mxu0 %v827
  %988 = vmatmul.bf16.gmra.mxu0 %v632
  %v989 = vpop.f32.mrf.mxu0
  %v990 = vadd.f32 0.0, %v989
  %v991 = vpop.f32.mrf.mxu0
  %992 = vdwg.mxu0
  %993 = vmatpush.bf16.msra.mxu0 %v887
  %994 = vmatpush.bf16.msra.mxu0 %v883
  %995 = vmatpush.bf16.msra.mxu0 %v879
  %996 = vmatpush.bf16.msra.mxu0 %v875
  %997 = vmatpush.bf16.msra.mxu0 %v871
  %998 = vmatpush.bf16.msra.mxu0 %v867
  %999 = vmatpush.bf16.msra.mxu0 %v863
  %1000 = vmatpush.bf16.msra.mxu0 %v859
  %1001 = vmatmul.bf16.gmra.mxu0 %v633
  %v1002 = vpop.f32.mrf.mxu0
  %v1003 = vadd.f32 %v990, %v1002
  %v1004 = vpop.f32.mrf.mxu0
  %1005 = vdwg.mxu0
  %1006 = vmatpush.bf16.msra.mxu0 %v856
  %1007 = vmatpush.bf16.msra.mxu0 %v852
  %1008 = vmatpush.bf16.msra.mxu0 %v848
  %1009 = vmatpush.bf16.msra.mxu0 %v844
  %1010 = vmatpush.bf16.msra.mxu0 %v840
  %1011 = vmatpush.bf16.msra.mxu0 %v836
  %1012 = vmatpush.bf16.msra.mxu0 %v832
  %1013 = vmatpush.bf16.msra.mxu0 %v828
  %1014 = vmatmul.bf16.gmra.mxu0 %v632
  %v1015 = vpop.f32.mrf.mxu0
  %v1016 = vadd.f32 0.0, %v1015
  %v1017 = vpop.f32.mrf.mxu0
  %1018 = vdwg.mxu0
  %1019 = vmatpush.bf16.msra.mxu0 %v888
  %1020 = vmatpush.bf16.msra.mxu0 %v884
  %1021 = vmatpush.bf16.msra.mxu0 %v880
  %1022 = vmatpush.bf16.msra.mxu0 %v876
  %1023 = vmatpush.bf16.msra.mxu0 %v872
  %1024 = vmatpush.bf16.msra.mxu0 %v868
  %1025 = vmatpush.bf16.msra.mxu0 %v864
  %1026 = vmatpush.bf16.msra.mxu0 %v860
  %1027 = vmatmul.bf16.gmra.mxu0 %v633
  %v1028 = vpop.f32.mrf.mxu0
  %v1029 = vadd.f32 %v1016, %v1028
  %v1030 = vpop.f32.mrf.mxu0
  %1031 = vdwg.mxu0
  %1032 = vmatpush.bf16.msra.mxu0 %v857
  %1033 = vmatpush.bf16.msra.mxu0 %v853
  %1034 = vmatpush.bf16.msra.mxu0 %v849
  %1035 = vmatpush.bf16.msra.mxu0 %v845
  %1036 = vmatpush.bf16.msra.mxu0 %v841
  %1037 = vmatpush.bf16.msra.mxu0 %v837
  %1038 = vmatpush.bf16.msra.mxu0 %v833
  %1039 = vmatpush.bf16.msra.mxu0 %v829
  %1040 = vmatmul.bf16.gmra.mxu0 %v632
  %v1041 = vpop.f32.mrf.mxu0
  %v1042 = vadd.f32 0.0, %v1041
  %v1043 = vpop.f32.mrf.mxu0
  %1044 = vdwg.mxu0
  %1045 = vmatpush.bf16.msra.mxu0 %v889
  %1046 = vmatpush.bf16.msra.mxu0 %v885
  %1047 = vmatpush.bf16.msra.mxu0 %v881
  %1048 = vmatpush.bf16.msra.mxu0 %v877
  %1049 = vmatpush.bf16.msra.mxu0 %v873
  %1050 = vmatpush.bf16.msra.mxu0 %v869
  %1051 = vmatpush.bf16.msra.mxu0 %v865
  %1052 = vmatpush.bf16.msra.mxu0 %v861
  %1053 = vmatmul.bf16.gmra.mxu0 %v633
  %v1054 = vpop.f32.mrf.mxu0
  %v1055 = vadd.f32 %v1042, %v1054
  %v1056 = vpop.f32.mrf.mxu0
  %1057 = vdwg.mxu0
  %v1058 = vxor.u32 %v977, 2147483648
  %v1059 = vmul.f32 %v1058, 1.442695
  %v1060 = vpow.pop %v1059
  %v1061 = vadd.f32 %v1060, 1.0
  %v1062 = vrcp.pop %v1061
  %v1063 = vmul.f32 %v1061, %v1062
  %v1064 = vsub.f32 1.0, %v1063
  %v1065 = vmul.f32 %v1062, %v1064
  %v1066 = vadd.f32 %v1062, %v1065
  %vm1067 = vweird.f32 %v1061
  %vm1068 = vweird.f32 %v1062
  %vm1069 = vmor %vm1067, %vm1068
  %v1070 = vsel %vm1069, %v1062, %v1066
  %v1071 = vand.u32 2147483647, %v1061
  %vm1072 = vcmp.eq.f32.partialorder %v1071, 8.507059e+37
  %v1073 = vand.u32 %v1061, 2147483648
  %v1074 = vor.u32 1.1754944e-38, %v1073
  %v1075 = vsel %vm1072, %v1074, %v1070
  %v1076 = vmul.f32 1.0, %v1075
  %v1077 = vxor.u32 %v1003, 2147483648
  %v1078 = vmul.f32 %v1077, 1.442695
  %v1079 = vpow.pop %v1078
  %v1080 = vadd.f32 %v1079, 1.0
  %v1081 = vrcp.pop %v1080
  %v1082 = vmul.f32 %v1080, %v1081
  %v1083 = vsub.f32 1.0, %v1082
  %v1084 = vmul.f32 %v1081, %v1083
  %v1085 = vadd.f32 %v1081, %v1084
  %vm1086 = vweird.f32 %v1080
  %vm1087 = vweird.f32 %v1081
  %vm1088 = vmor %vm1086, %vm1087
  %v1089 = vsel %vm1088, %v1081, %v1085
  %v1090 = vand.u32 2147483647, %v1080
  %vm1091 = vcmp.eq.f32.partialorder %v1090, 8.507059e+37
  %v1092 = vand.u32 %v1080, 2147483648
  %v1093 = vor.u32 1.1754944e-38, %v1092
  %v1094 = vsel %vm1091, %v1093, %v1089
  %v1095 = vmul.f32 1.0, %v1094
  %v1096 = vmul.f32 %v1076, %v1055
  %v1097 = vadd.f32 %v1029, %v1096
  %v1098 = vtanh.pop %v1097
  %v1099 = vsub.f32 1.0, %v1095
  %v1100 = vmul.f32 %v1099, %v1098
  %v1101 = vmul.f32 %v1095, 0.0
  %v1102 = vadd.f32 %v1100, %v1101
  %vm1103 = vcmp.eq.s32.totalorder %v366, 1
  %v1104 = vsel %vm1103, %v1102, 0.0
  %v1105 = vld [vmem:[#allocation2 + $0x20] sm:$0xff]
  %v1106 = vld [vmem:[#allocation2 + $0x28] sm:$0xff]
  %v1107 = vld [vmem:[#allocation2 + $0x30] sm:$0xff]
  %v1108 = vld [vmem:[#allocation2 + $0x38] sm:$0xff]
  %1109 = vmatpush.bf16.msra.mxu0 %v495
  %1110 = vmatpush.bf16.msra.mxu0 %v491
  %1111 = vmatpush.bf16.msra.mxu0 %v487
  %1112 = vmatpush.bf16.msra.mxu0 %v483
  %1113 = vmatpush.bf16.msra.mxu0 %v479
  %1114 = vmatpush.bf16.msra.mxu0 %v475
  %1115 = vmatpush.bf16.msra.mxu0 %v471
  %1116 = vmatpush.bf16.msra.mxu0 %v467
  %1117 = vmatmul.bf16.gmra.mxu0 %v632
  %v1118 = vpop.f32.mrf.mxu0
  %v1119 = vadd.f32 0.0, %v1118
  %v1120 = vpop.f32.mrf.mxu0
  %1121 = vdwg.mxu0
  %1122 = vmatpush.bf16.msra.mxu0 %v496
  %1123 = vmatpush.bf16.msra.mxu0 %v492
  %1124 = vmatpush.bf16.msra.mxu0 %v488
  %1125 = vmatpush.bf16.msra.mxu0 %v484
  %1126 = vmatpush.bf16.msra.mxu0 %v480
  %1127 = vmatpush.bf16.msra.mxu0 %v476
  %1128 = vmatpush.bf16.msra.mxu0 %v472
  %1129 = vmatpush.bf16.msra.mxu0 %v468
  %1130 = vmatmul.bf16.gmra.mxu0 %v632
  %v1131 = vpop.f32.mrf.mxu0
  %v1132 = vadd.f32 0.0, %v1131
  %v1133 = vpop.f32.mrf.mxu0
  %1134 = vdwg.mxu0
  %1135 = vmatpush.bf16.msra.mxu0 %v497
  %1136 = vmatpush.bf16.msra.mxu0 %v493
  %1137 = vmatpush.bf16.msra.mxu0 %v489
  %1138 = vmatpush.bf16.msra.mxu0 %v485
  %1139 = vmatpush.bf16.msra.mxu0 %v481
  %1140 = vmatpush.bf16.msra.mxu0 %v477
  %1141 = vmatpush.bf16.msra.mxu0 %v473
  %1142 = vmatpush.bf16.msra.mxu0 %v469
  %1143 = vmatmul.bf16.gmra.mxu0 %v632
  %v1144 = vpop.f32.mrf.mxu0
  %v1145 = vadd.f32 0.0, %v1144
  %v1146 = vpop.f32.mrf.mxu0
  %1147 = vdwg.mxu0
  %1148 = vmatpush.bf16.msra.mxu0 %v498
  %1149 = vmatpush.bf16.msra.mxu0 %v494
  %1150 = vmatpush.bf16.msra.mxu0 %v490
  %1151 = vmatpush.bf16.msra.mxu0 %v486
  %1152 = vmatpush.bf16.msra.mxu0 %v482
  %1153 = vmatpush.bf16.msra.mxu0 %v478
  %1154 = vmatpush.bf16.msra.mxu0 %v474
  %1155 = vmatpush.bf16.msra.mxu0 %v470
  %1156 = vmatmul.bf16.gmra.mxu0 %v632
  %v1157 = vpop.f32.mrf.mxu0
  %v1158 = vadd.f32 0.0, %v1157
  %v1159 = vpop.f32.mrf.mxu0
  %1160 = vdwg.mxu0
  %v1161 = vadd.f32 %v1105, %v1119
  %v1162 = vadd.f32 %v1106, %v1132
  %v1163 = vadd.f32 %v1107, %v1145
  %v1164 = vadd.f32 %v1108, %v1158
  %v1165 = vxor.u32 %v1161, 2147483648
  %v1166 = vmul.f32 %v1165, 1.442695
  %v1167 = vpow.pop %v1166
  %v1168 = vadd.f32 %v1167, 1.0
  %v1169 = vrcp.pop %v1168
  %v1170 = vmul.f32 %v1168, %v1169
  %v1171 = vsub.f32 1.0, %v1170
  %v1172 = vmul.f32 %v1169, %v1171
  %v1173 = vadd.f32 %v1169, %v1172
  %vm1174 = vweird.f32 %v1168
  %vm1175 = vweird.f32 %v1169
  %vm1176 = vmor %vm1174, %vm1175
  %v1177 = vsel %vm1176, %v1169, %v1173
  %v1178 = vand.u32 2147483647, %v1168
  %vm1179 = vcmp.eq.f32.partialorder %v1178, 8.507059e+37
  %v1180 = vand.u32 %v1168, 2147483648
  %v1181 = vor.u32 1.1754944e-38, %v1180
  %v1182 = vsel %vm1179, %v1181, %v1177
  %v1183 = vmul.f32 1.0, %v1182
  %v1184 = vxor.u32 %v1162, 2147483648
  %v1185 = vmul.f32 %v1184, 1.442695
  %v1186 = vpow.pop %v1185
  %v1187 = vadd.f32 %v1186, 1.0
  %v1188 = vrcp.pop %v1187
  %v1189 = vmul.f32 %v1187, %v1188
  %v1190 = vsub.f32 1.0, %v1189
  %v1191 = vmul.f32 %v1188, %v1190
  %v1192 = vadd.f32 %v1188, %v1191
  %vm1193 = vweird.f32 %v1187
  %vm1194 = vweird.f32 %v1188
  %vm1195 = vmor %vm1193, %vm1194
  %v1196 = vsel %vm1195, %v1188, %v1192
  %v1197 = vand.u32 2147483647, %v1187
  %vm1198 = vcmp.eq.f32.partialorder %v1197, 8.507059e+37
  %v1199 = vand.u32 %v1187, 2147483648
  %v1200 = vor.u32 1.1754944e-38, %v1199
  %v1201 = vsel %vm1198, %v1200, %v1196
  %v1202 = vmul.f32 1.0, %v1201
  %v1203 = vmul.f32 %v1183, %v1164
  %v1204 = vadd.f32 %v1163, %v1203
  %v1205 = vtanh.pop %v1204
  %v1206 = vsub.f32 1.0, %v1202
  %v1207 = vmul.f32 %v1206, %v1205
  %v1208 = vmul.f32 %v1202, %v631
  %v1209 = vadd.f32 %v1207, %v1208
  %v1210 = vpack.c.bf16 %v1209, %v1209
  %v1211 = vpack.c.bf16 %v1102, %v1102
  %1212 = vmatpush.bf16.msra.mxu0 %v854
  %1213 = vmatpush.bf16.msra.mxu0 %v850
  %1214 = vmatpush.bf16.msra.mxu0 %v846
  %1215 = vmatpush.bf16.msra.mxu0 %v842
  %1216 = vmatpush.bf16.msra.mxu0 %v838
  %1217 = vmatpush.bf16.msra.mxu0 %v834
  %1218 = vmatpush.bf16.msra.mxu0 %v830
  %1219 = vmatpush.bf16.msra.mxu0 %v826
  %1220 = vmatmul.bf16.gmra.mxu0 %v1210
  %v1221 = vpop.f32.mrf.mxu0
  %v1222 = vadd.f32 0.0, %v1221
  %v1223 = vpop.f32.mrf.mxu0
  %1224 = vdwg.mxu0
  %1225 = vmatpush.bf16.msra.mxu0 %v886
  %1226 = vmatpush.bf16.msra.mxu0 %v882
  %1227 = vmatpush.bf16.msra.mxu0 %v878
  %1228 = vmatpush.bf16.msra.mxu0 %v874
  %1229 = vmatpush.bf16.msra.mxu0 %v870
  %1230 = vmatpush.bf16.msra.mxu0 %v866
  %1231 = vmatpush.bf16.msra.mxu0 %v862
  %1232 = vmatpush.bf16.msra.mxu0 %v858
  %1233 = vmatmul.bf16.gmra.mxu0 %v1211
  %v1234 = vpop.f32.mrf.mxu0
  %v1235 = vadd.f32 %v1222, %v1234
  %v1236 = vpop.f32.mrf.mxu0
  %1237 = vdwg.mxu0
  %1238 = vmatpush.bf16.msra.mxu0 %v855
  %1239 = vmatpush.bf16.msra.mxu0 %v851
  %1240 = vmatpush.bf16.msra.mxu0 %v847
  %1241 = vmatpush.bf16.msra.mxu0 %v843
  %1242 = vmatpush.bf16.msra.mxu0 %v839
  %1243 = vmatpush.bf16.msra.mxu0 %v835
  %1244 = vmatpush.bf16.msra.mxu0 %v831
  %1245 = vmatpush.bf16.msra.mxu0 %v827
  %1246 = vmatmul.bf16.gmra.mxu0 %v1210
  %v1247 = vpop.f32.mrf.mxu0
  %v1248 = vadd.f32 0.0, %v1247
  %v1249 = vpop.f32.mrf.mxu0
  %1250 = vdwg.mxu0
  %1251 = vmatpush.bf16.msra.mxu0 %v887
  %1252 = vmatpush.bf16.msra.mxu0 %v883
  %1253 = vmatpush.bf16.msra.mxu0 %v879
  %1254 = vmatpush.bf16.msra.mxu0 %v875
  %1255 = vmatpush.bf16.msra.mxu0 %v871
  %1256 = vmatpush.bf16.msra.mxu0 %v867
  %1257 = vmatpush.bf16.msra.mxu0 %v863
  %1258 = vmatpush.bf16.msra.mxu0 %v859
  %1259 = vmatmul.bf16.gmra.mxu0 %v1211
  %v1260 = vpop.f32.mrf.mxu0
  %v1261 = vadd.f32 %v1248, %v1260
  %v1262 = vpop.f32.mrf.mxu0
  %1263 = vdwg.mxu0
  %1264 = vmatpush.bf16.msra.mxu0 %v856
  %1265 = vmatpush.bf16.msra.mxu0 %v852
  %1266 = vmatpush.bf16.msra.mxu0 %v848
  %1267 = vmatpush.bf16.msra.mxu0 %v844
  %1268 = vmatpush.bf16.msra.mxu0 %v840
  %1269 = vmatpush.bf16.msra.mxu0 %v836
  %1270 = vmatpush.bf16.msra.mxu0 %v832
  %1271 = vmatpush.bf16.msra.mxu0 %v828
  %1272 = vmatmul.bf16.gmra.mxu0 %v1210
  %v1273 = vpop.f32.mrf.mxu0
  %v1274 = vadd.f32 0.0, %v1273
  %v1275 = vpop.f32.mrf.mxu0
  %1276 = vdwg.mxu0
  %1277 = vmatpush.bf16.msra.mxu0 %v888
  %1278 = vmatpush.bf16.msra.mxu0 %v884
  %1279 = vmatpush.bf16.msra.mxu0 %v880
  %1280 = vmatpush.bf16.msra.mxu0 %v876
  %1281 = vmatpush.bf16.msra.mxu0 %v872
  %1282 = vmatpush.bf16.msra.mxu0 %v868
  %1283 = vmatpush.bf16.msra.mxu0 %v864
  %1284 = vmatpush.bf16.msra.mxu0 %v860
  %1285 = vmatmul.bf16.gmra.mxu0 %v1211
  %v1286 = vpop.f32.mrf.mxu0
  %v1287 = vadd.f32 %v1274, %v1286
  %v1288 = vpop.f32.mrf.mxu0
  %1289 = vdwg.mxu0
  %1290 = vmatpush.bf16.msra.mxu0 %v857
  %1291 = vmatpush.bf16.msra.mxu0 %v853
  %1292 = vmatpush.bf16.msra.mxu0 %v849
  %1293 = vmatpush.bf16.msra.mxu0 %v845
  %1294 = vmatpush.bf16.msra.mxu0 %v841
  %1295 = vmatpush.bf16.msra.mxu0 %v837
  %1296 = vmatpush.bf16.msra.mxu0 %v833
  %1297 = vmatpush.bf16.msra.mxu0 %v829
  %1298 = vmatmul.bf16.gmra.mxu0 %v1210
  %v1299 = vpop.f32.mrf.mxu0
  %v1300 = vadd.f32 0.0, %v1299
  %v1301 = vpop.f32.mrf.mxu0
  %1302 = vdwg.mxu0
  %1303 = vmatpush.bf16.msra.mxu0 %v889
  %1304 = vmatpush.bf16.msra.mxu0 %v885
  %1305 = vmatpush.bf16.msra.mxu0 %v881
  %1306 = vmatpush.bf16.msra.mxu0 %v877
  %1307 = vmatpush.bf16.msra.mxu0 %v873
  %1308 = vmatpush.bf16.msra.mxu0 %v869
  %1309 = vmatpush.bf16.msra.mxu0 %v865
  %1310 = vmatpush.bf16.msra.mxu0 %v861
  %1311 = vmatmul.bf16.gmra.mxu0 %v1211
  %v1312 = vpop.f32.mrf.mxu0
  %v1313 = vadd.f32 %v1300, %v1312
  %v1314 = vpop.f32.mrf.mxu0
  %1315 = vdwg.mxu0
  %v1316 = vxor.u32 %v1235, 2147483648
  %v1317 = vmul.f32 %v1316, 1.442695
  %v1318 = vpow.pop %v1317
  %v1319 = vadd.f32 %v1318, 1.0
  %v1320 = vrcp.pop %v1319
  %v1321 = vmul.f32 %v1319, %v1320
  %v1322 = vsub.f32 1.0, %v1321
  %v1323 = vmul.f32 %v1320, %v1322
  %v1324 = vadd.f32 %v1320, %v1323
  %vm1325 = vweird.f32 %v1319
  %vm1326 = vweird.f32 %v1320
  %vm1327 = vmor %vm1325, %vm1326
  %v1328 = vsel %vm1327, %v1320, %v1324
  %v1329 = vand.u32 2147483647, %v1319
  %vm1330 = vcmp.eq.f32.partialorder %v1329, 8.507059e+37
  %v1331 = vand.u32 %v1319, 2147483648
  %v1332 = vor.u32 1.1754944e-38, %v1331
  %v1333 = vsel %vm1330, %v1332, %v1328
  %v1334 = vmul.f32 1.0, %v1333
  %v1335 = vxor.u32 %v1261, 2147483648
  %v1336 = vmul.f32 %v1335, 1.442695
  %v1337 = vpow.pop %v1336
  %v1338 = vadd.f32 %v1337, 1.0
  %v1339 = vrcp.pop %v1338
  %v1340 = vmul.f32 %v1338, %v1339
  %v1341 = vsub.f32 1.0, %v1340
  %v1342 = vmul.f32 %v1339, %v1341
  %v1343 = vadd.f32 %v1339, %v1342
  %vm1344 = vweird.f32 %v1338
  %vm1345 = vweird.f32 %v1339
  %vm1346 = vmor %vm1344, %vm1345
  %v1347 = vsel %vm1346, %v1339, %v1343
  %v1348 = vand.u32 2147483647, %v1338
  %vm1349 = vcmp.eq.f32.partialorder %v1348, 8.507059e+37
  %v1350 = vand.u32 %v1338, 2147483648
  %v1351 = vor.u32 1.1754944e-38, %v1350
  %v1352 = vsel %vm1349, %v1351, %v1347
  %v1353 = vmul.f32 1.0, %v1352
  %v1354 = vmul.f32 %v1334, %v1313
  %v1355 = vadd.f32 %v1287, %v1354
  %v1356 = vtanh.pop %v1355
  %v1357 = vsub.f32 1.0, %v1353
  %v1358 = vmul.f32 %v1357, %v1356
  %v1359 = vmul.f32 %v1353, %v1102
  %v1360 = vadd.f32 %v1358, %v1359
  %vm1361 = vcmp.eq.s32.totalorder %v366, 2
  %v1362 = vsel %vm1361, %v1360, %v1104
  %v1363 = vld [vmem:[#allocation2 + $0x40] sm:$0xff]
  %v1364 = vld [vmem:[#allocation2 + $0x48] sm:$0xff]
  %v1365 = vld [vmem:[#allocation2 + $0x50] sm:$0xff]
  %v1366 = vld [vmem:[#allocation2 + $0x58] sm:$0xff]
  %1367 = vmatpush.bf16.msra.mxu0 %v495
  %1368 = vmatpush.bf16.msra.mxu0 %v491
  %1369 = vmatpush.bf16.msra.mxu0 %v487
  %1370 = vmatpush.bf16.msra.mxu0 %v483
  %1371 = vmatpush.bf16.msra.mxu0 %v479
  %1372 = vmatpush.bf16.msra.mxu0 %v475
  %1373 = vmatpush.bf16.msra.mxu0 %v471
  %1374 = vmatpush.bf16.msra.mxu0 %v467
  %1375 = vmatmul.bf16.gmra.mxu0 %v1210
  %v1376 = vpop.f32.mrf.mxu0
  %v1377 = vadd.f32 0.0, %v1376
  %v1378 = vpop.f32.mrf.mxu0
  %1379 = vdwg.mxu0
  %1380 = vmatpush.bf16.msra.mxu0 %v496
  %1381 = vmatpush.bf16.msra.mxu0 %v492
  %1382 = vmatpush.bf16.msra.mxu0 %v488
  %1383 = vmatpush.bf16.msra.mxu0 %v484
  %1384 = vmatpush.bf16.msra.mxu0 %v480
  %1385 = vmatpush.bf16.msra.mxu0 %v476
  %1386 = vmatpush.bf16.msra.mxu0 %v472
  %1387 = vmatpush.bf16.msra.mxu0 %v468
  %1388 = vmatmul.bf16.gmra.mxu0 %v1210
  %v1389 = vpop.f32.mrf.mxu0
  %v1390 = vadd.f32 0.0, %v1389
  %v1391 = vpop.f32.mrf.mxu0
  %1392 = vdwg.mxu0
  %1393 = vmatpush.bf16.msra.mxu0 %v497
  %1394 = vmatpush.bf16.msra.mxu0 %v493
  %1395 = vmatpush.bf16.msra.mxu0 %v489
  %1396 = vmatpush.bf16.msra.mxu0 %v485
  %1397 = vmatpush.bf16.msra.mxu0 %v481
  %1398 = vmatpush.bf16.msra.mxu0 %v477
  %1399 = vmatpush.bf16.msra.mxu0 %v473
  %1400 = vmatpush.bf16.msra.mxu0 %v469
  %1401 = vmatmul.bf16.gmra.mxu0 %v1210
  %v1402 = vpop.f32.mrf.mxu0
  %v1403 = vadd.f32 0.0, %v1402
  %v1404 = vpop.f32.mrf.mxu0
  %1405 = vdwg.mxu0
  %1406 = vmatpush.bf16.msra.mxu0 %v498
  %1407 = vmatpush.bf16.msra.mxu0 %v494
  %1408 = vmatpush.bf16.msra.mxu0 %v490
  %1409 = vmatpush.bf16.msra.mxu0 %v486
  %1410 = vmatpush.bf16.msra.mxu0 %v482
  %1411 = vmatpush.bf16.msra.mxu0 %v478
  %1412 = vmatpush.bf16.msra.mxu0 %v474
  %1413 = vmatpush.bf16.msra.mxu0 %v470
  %1414 = vmatmul.bf16.gmra.mxu0 %v1210
  %v1415 = vpop.f32.mrf.mxu0
  %v1416 = vadd.f32 0.0, %v1415
  %v1417 = vpop.f32.mrf.mxu0
  %1418 = vdwg.mxu0
  %v1419 = vadd.f32 %v1363, %v1377
  %v1420 = vadd.f32 %v1364, %v1390
  %v1421 = vadd.f32 %v1365, %v1403
  %v1422 = vadd.f32 %v1366, %v1416
  %v1423 = vxor.u32 %v1419, 2147483648
  %v1424 = vmul.f32 %v1423, 1.442695
  %v1425 = vpow.pop %v1424
  %v1426 = vadd.f32 %v1425, 1.0
  %v1427 = vrcp.pop %v1426
  %v1428 = vmul.f32 %v1426, %v1427
  %v1429 = vsub.f32 1.0, %v1428
  %v1430 = vmul.f32 %v1427, %v1429
  %v1431 = vadd.f32 %v1427, %v1430
  %vm1432 = vweird.f32 %v1426
  %vm1433 = vweird.f32 %v1427
  %vm1434 = vmor %vm1432, %vm1433
  %v1435 = vsel %vm1434, %v1427, %v1431
  %v1436 = vand.u32 2147483647, %v1426
  %vm1437 = vcmp.eq.f32.partialorder %v1436, 8.507059e+37
  %v1438 = vand.u32 %v1426, 2147483648
  %v1439 = vor.u32 1.1754944e-38, %v1438
  %v1440 = vsel %vm1437, %v1439, %v1435
  %v1441 = vmul.f32 1.0, %v1440
  %v1442 = vxor.u32 %v1420, 2147483648
  %v1443 = vmul.f32 %v1442, 1.442695
  %v1444 = vpow.pop %v1443
  %v1445 = vadd.f32 %v1444, 1.0
  %v1446 = vrcp.pop %v1445
  %v1447 = vmul.f32 %v1445, %v1446
  %v1448 = vsub.f32 1.0, %v1447
  %v1449 = vmul.f32 %v1446, %v1448
  %v1450 = vadd.f32 %v1446, %v1449
  %vm1451 = vweird.f32 %v1445
  %vm1452 = vweird.f32 %v1446
  %vm1453 = vmor %vm1451, %vm1452
  %v1454 = vsel %vm1453, %v1446, %v1450
  %v1455 = vand.u32 2147483647, %v1445
  %vm1456 = vcmp.eq.f32.partialorder %v1455, 8.507059e+37
  %v1457 = vand.u32 %v1445, 2147483648
  %v1458 = vor.u32 1.1754944e-38, %v1457
  %v1459 = vsel %vm1456, %v1458, %v1454
  %v1460 = vmul.f32 1.0, %v1459
  %v1461 = vmul.f32 %v1441, %v1422
  %v1462 = vadd.f32 %v1421, %v1461
  %v1463 = vtanh.pop %v1462
  %v1464 = vsub.f32 1.0, %v1460
  %v1465 = vmul.f32 %v1464, %v1463
  %v1466 = vmul.f32 %v1460, %v1209
  %v1467 = vadd.f32 %v1465, %v1466
  %v1468 = vpack.c.bf16 %v1467, %v1467
  %v1469 = vpack.c.bf16 %v1360, %v1360
  %1470 = vmatpush.bf16.msra.mxu0 %v854
  %1471 = vmatpush.bf16.msra.mxu0 %v850
  %1472 = vmatpush.bf16.msra.mxu0 %v846
  %1473 = vmatpush.bf16.msra.mxu0 %v842
  %1474 = vmatpush.bf16.msra.mxu0 %v838
  %1475 = vmatpush.bf16.msra.mxu0 %v834
  %1476 = vmatpush.bf16.msra.mxu0 %v830
  %1477 = vmatpush.bf16.msra.mxu0 %v826
  %1478 = vmatmul.bf16.gmra.mxu0 %v1468
  %v1479 = vpop.f32.mrf.mxu0
  %v1480 = vadd.f32 0.0, %v1479
  %v1481 = vpop.f32.mrf.mxu0
  %1482 = vdwg.mxu0
  %1483 = vmatpush.bf16.msra.mxu0 %v886
  %1484 = vmatpush.bf16.msra.mxu0 %v882
  %1485 = vmatpush.bf16.msra.mxu0 %v878
  %1486 = vmatpush.bf16.msra.mxu0 %v874
  %1487 = vmatpush.bf16.msra.mxu0 %v870
  %1488 = vmatpush.bf16.msra.mxu0 %v866
  %1489 = vmatpush.bf16.msra.mxu0 %v862
  %1490 = vmatpush.bf16.msra.mxu0 %v858
  %1491 = vmatmul.bf16.gmra.mxu0 %v1469
  %v1492 = vpop.f32.mrf.mxu0
  %v1493 = vadd.f32 %v1480, %v1492
  %v1494 = vpop.f32.mrf.mxu0
  %1495 = vdwg.mxu0
  %1496 = vmatpush.bf16.msra.mxu0 %v855
  %1497 = vmatpush.bf16.msra.mxu0 %v851
  %1498 = vmatpush.bf16.msra.mxu0 %v847
  %1499 = vmatpush.bf16.msra.mxu0 %v843
  %1500 = vmatpush.bf16.msra.mxu0 %v839
  %1501 = vmatpush.bf16.msra.mxu0 %v835
  %1502 = vmatpush.bf16.msra.mxu0 %v831
  %1503 = vmatpush.bf16.msra.mxu0 %v827
  %1504 = vmatmul.bf16.gmra.mxu0 %v1468
  %v1505 = vpop.f32.mrf.mxu0
  %v1506 = vadd.f32 0.0, %v1505
  %v1507 = vpop.f32.mrf.mxu0
  %1508 = vdwg.mxu0
  %1509 = vmatpush.bf16.msra.mxu0 %v887
  %1510 = vmatpush.bf16.msra.mxu0 %v883
  %1511 = vmatpush.bf16.msra.mxu0 %v879
  %1512 = vmatpush.bf16.msra.mxu0 %v875
  %1513 = vmatpush.bf16.msra.mxu0 %v871
  %1514 = vmatpush.bf16.msra.mxu0 %v867
  %1515 = vmatpush.bf16.msra.mxu0 %v863
  %1516 = vmatpush.bf16.msra.mxu0 %v859
  %1517 = vmatmul.bf16.gmra.mxu0 %v1469
  %v1518 = vpop.f32.mrf.mxu0
  %v1519 = vadd.f32 %v1506, %v1518
  %v1520 = vpop.f32.mrf.mxu0
  %1521 = vdwg.mxu0
  %1522 = vmatpush.bf16.msra.mxu0 %v856
  %1523 = vmatpush.bf16.msra.mxu0 %v852
  %1524 = vmatpush.bf16.msra.mxu0 %v848
  %1525 = vmatpush.bf16.msra.mxu0 %v844
  %1526 = vmatpush.bf16.msra.mxu0 %v840
  %1527 = vmatpush.bf16.msra.mxu0 %v836
  %1528 = vmatpush.bf16.msra.mxu0 %v832
  %1529 = vmatpush.bf16.msra.mxu0 %v828
  %1530 = vmatmul.bf16.gmra.mxu0 %v1468
  %v1531 = vpop.f32.mrf.mxu0
  %v1532 = vadd.f32 0.0, %v1531
  %v1533 = vpop.f32.mrf.mxu0
  %1534 = vdwg.mxu0
  %1535 = vmatpush.bf16.msra.mxu0 %v888
  %1536 = vmatpush.bf16.msra.mxu0 %v884
  %1537 = vmatpush.bf16.msra.mxu0 %v880
  %1538 = vmatpush.bf16.msra.mxu0 %v876
  %1539 = vmatpush.bf16.msra.mxu0 %v872
  %1540 = vmatpush.bf16.msra.mxu0 %v868
  %1541 = vmatpush.bf16.msra.mxu0 %v864
  %1542 = vmatpush.bf16.msra.mxu0 %v860
  %1543 = vmatmul.bf16.gmra.mxu0 %v1469
  %v1544 = vpop.f32.mrf.mxu0
  %v1545 = vadd.f32 %v1532, %v1544
  %v1546 = vpop.f32.mrf.mxu0
  %1547 = vdwg.mxu0
  %1548 = vmatpush.bf16.msra.mxu0 %v857
  %1549 = vmatpush.bf16.msra.mxu0 %v853
  %1550 = vmatpush.bf16.msra.mxu0 %v849
  %1551 = vmatpush.bf16.msra.mxu0 %v845
  %1552 = vmatpush.bf16.msra.mxu0 %v841
  %1553 = vmatpush.bf16.msra.mxu0 %v837
  %1554 = vmatpush.bf16.msra.mxu0 %v833
  %1555 = vmatpush.bf16.msra.mxu0 %v829
  %1556 = vmatmul.bf16.gmra.mxu0 %v1468
  %v1557 = vpop.f32.mrf.mxu0
  %v1558 = vadd.f32 0.0, %v1557
  %v1559 = vpop.f32.mrf.mxu0
  %1560 = vdwg.mxu0
  %1561 = vmatpush.bf16.msra.mxu0 %v889
  %1562 = vmatpush.bf16.msra.mxu0 %v885
  %1563 = vmatpush.bf16.msra.mxu0 %v881
  %1564 = vmatpush.bf16.msra.mxu0 %v877
  %1565 = vmatpush.bf16.msra.mxu0 %v873
  %1566 = vmatpush.bf16.msra.mxu0 %v869
  %1567 = vmatpush.bf16.msra.mxu0 %v865
  %1568 = vmatpush.bf16.msra.mxu0 %v861
  %1569 = vmatmul.bf16.gmra.mxu0 %v1469
  %v1570 = vpop.f32.mrf.mxu0
  %v1571 = vadd.f32 %v1558, %v1570
  %v1572 = vpop.f32.mrf.mxu0
  %1573 = vdwg.mxu0
  %v1574 = vxor.u32 %v1493, 2147483648
  %v1575 = vmul.f32 %v1574, 1.442695
  %v1576 = vpow.pop %v1575
  %v1577 = vadd.f32 %v1576, 1.0
  %v1578 = vrcp.pop %v1577
  %v1579 = vmul.f32 %v1577, %v1578
  %v1580 = vsub.f32 1.0, %v1579
  %v1581 = vmul.f32 %v1578, %v1580
  %v1582 = vadd.f32 %v1578, %v1581
  %vm1583 = vweird.f32 %v1577
  %vm1584 = vweird.f32 %v1578
  %vm1585 = vmor %vm1583, %vm1584
  %v1586 = vsel %vm1585, %v1578, %v1582
  %v1587 = vand.u32 2147483647, %v1577
  %vm1588 = vcmp.eq.f32.partialorder %v1587, 8.507059e+37
  %v1589 = vand.u32 %v1577, 2147483648
  %v1590 = vor.u32 1.1754944e-38, %v1589
  %v1591 = vsel %vm1588, %v1590, %v1586
  %v1592 = vmul.f32 1.0, %v1591
  %v1593 = vxor.u32 %v1519, 2147483648
  %v1594 = vmul.f32 %v1593, 1.442695
  %v1595 = vpow.pop %v1594
  %v1596 = vadd.f32 %v1595, 1.0
  %v1597 = vrcp.pop %v1596
  %v1598 = vmul.f32 %v1596, %v1597
  %v1599 = vsub.f32 1.0, %v1598
  %v1600 = vmul.f32 %v1597, %v1599
  %v1601 = vadd.f32 %v1597, %v1600
  %vm1602 = vweird.f32 %v1596
  %vm1603 = vweird.f32 %v1597
  %vm1604 = vmor %vm1602, %vm1603
  %v1605 = vsel %vm1604, %v1597, %v1601
  %v1606 = vand.u32 2147483647, %v1596
  %vm1607 = vcmp.eq.f32.partialorder %v1606, 8.507059e+37
  %v1608 = vand.u32 %v1596, 2147483648
  %v1609 = vor.u32 1.1754944e-38, %v1608
  %v1610 = vsel %vm1607, %v1609, %v1605
  %v1611 = vmul.f32 1.0, %v1610
  %v1612 = vmul.f32 %v1592, %v1571
  %v1613 = vadd.f32 %v1545, %v1612
  %v1614 = vtanh.pop %v1613
  %v1615 = vsub.f32 1.0, %v1611
  %v1616 = vmul.f32 %v1615, %v1614
  %v1617 = vmul.f32 %v1611, %v1360
  %v1618 = vadd.f32 %v1616, %v1617
  %vm1619 = vcmp.eq.s32.totalorder %v366, 3
  %v1620 = vsel %vm1619, %v1618, %v1362
  %v1621 = vld [vmem:[#allocation2 + $0x60] sm:$0xff]
  %v1622 = vld [vmem:[#allocation2 + $0x68] sm:$0xff]
  %v1623 = vld [vmem:[#allocation2 + $0x70] sm:$0xff]
  %v1624 = vld [vmem:[#allocation2 + $0x78] sm:$0xff]
  %1625 = vmatpush.bf16.msra.mxu0 %v495
  %1626 = vmatpush.bf16.msra.mxu0 %v491
  %1627 = vmatpush.bf16.msra.mxu0 %v487
  %1628 = vmatpush.bf16.msra.mxu0 %v483
  %1629 = vmatpush.bf16.msra.mxu0 %v479
  %1630 = vmatpush.bf16.msra.mxu0 %v475
  %1631 = vmatpush.bf16.msra.mxu0 %v471
  %1632 = vmatpush.bf16.msra.mxu0 %v467
  %1633 = vmatmul.bf16.gmra.mxu0 %v1468
  %v1634 = vpop.f32.mrf.mxu0
  %v1635 = vadd.f32 0.0, %v1634
  %v1636 = vpop.f32.mrf.mxu0
  %1637 = vdwg.mxu0
  %1638 = vmatpush.bf16.msra.mxu0 %v496
  %1639 = vmatpush.bf16.msra.mxu0 %v492
  %1640 = vmatpush.bf16.msra.mxu0 %v488
  %1641 = vmatpush.bf16.msra.mxu0 %v484
  %1642 = vmatpush.bf16.msra.mxu0 %v480
  %1643 = vmatpush.bf16.msra.mxu0 %v476
  %1644 = vmatpush.bf16.msra.mxu0 %v472
  %1645 = vmatpush.bf16.msra.mxu0 %v468
  %1646 = vmatmul.bf16.gmra.mxu0 %v1468
  %v1647 = vpop.f32.mrf.mxu0
  %v1648 = vadd.f32 0.0, %v1647
  %v1649 = vpop.f32.mrf.mxu0
  %1650 = vdwg.mxu0
  %1651 = vmatpush.bf16.msra.mxu0 %v497
  %1652 = vmatpush.bf16.msra.mxu0 %v493
  %1653 = vmatpush.bf16.msra.mxu0 %v489
  %1654 = vmatpush.bf16.msra.mxu0 %v485
  %1655 = vmatpush.bf16.msra.mxu0 %v481
  %1656 = vmatpush.bf16.msra.mxu0 %v477
  %1657 = vmatpush.bf16.msra.mxu0 %v473
  %1658 = vmatpush.bf16.msra.mxu0 %v469
  %1659 = vmatmul.bf16.gmra.mxu0 %v1468
  %v1660 = vpop.f32.mrf.mxu0
  %v1661 = vadd.f32 0.0, %v1660
  %v1662 = vpop.f32.mrf.mxu0
  %1663 = vdwg.mxu0
  %1664 = vmatpush.bf16.msra.mxu0 %v498
  %1665 = vmatpush.bf16.msra.mxu0 %v494
  %1666 = vmatpush.bf16.msra.mxu0 %v490
  %1667 = vmatpush.bf16.msra.mxu0 %v486
  %1668 = vmatpush.bf16.msra.mxu0 %v482
  %1669 = vmatpush.bf16.msra.mxu0 %v478
  %1670 = vmatpush.bf16.msra.mxu0 %v474
  %1671 = vmatpush.bf16.msra.mxu0 %v470
  %1672 = vmatmul.bf16.gmra.mxu0 %v1468
  %v1673 = vpop.f32.mrf.mxu0
  %v1674 = vadd.f32 0.0, %v1673
  %v1675 = vpop.f32.mrf.mxu0
  %1676 = vdwg.mxu0
  %v1677 = vadd.f32 %v1621, %v1635
  %v1678 = vadd.f32 %v1622, %v1648
  %v1679 = vadd.f32 %v1623, %v1661
  %v1680 = vadd.f32 %v1624, %v1674
  %v1681 = vxor.u32 %v1677, 2147483648
  %v1682 = vmul.f32 %v1681, 1.442695
  %v1683 = vpow.pop %v1682
  %v1684 = vadd.f32 %v1683, 1.0
  %v1685 = vrcp.pop %v1684
  %v1686 = vmul.f32 %v1684, %v1685
  %v1687 = vsub.f32 1.0, %v1686
  %v1688 = vmul.f32 %v1685, %v1687
  %v1689 = vadd.f32 %v1685, %v1688
  %vm1690 = vweird.f32 %v1684
  %vm1691 = vweird.f32 %v1685
  %vm1692 = vmor %vm1690, %vm1691
  %v1693 = vsel %vm1692, %v1685, %v1689
  %v1694 = vand.u32 2147483647, %v1684
  %vm1695 = vcmp.eq.f32.partialorder %v1694, 8.507059e+37
  %v1696 = vand.u32 %v1684, 2147483648
  %v1697 = vor.u32 1.1754944e-38, %v1696
  %v1698 = vsel %vm1695, %v1697, %v1693
  %v1699 = vmul.f32 1.0, %v1698
  %v1700 = vxor.u32 %v1678, 2147483648
  %v1701 = vmul.f32 %v1700, 1.442695
  %v1702 = vpow.pop %v1701
  %v1703 = vadd.f32 %v1702, 1.0
  %v1704 = vrcp.pop %v1703
  %v1705 = vmul.f32 %v1703, %v1704
  %v1706 = vsub.f32 1.0, %v1705
  %v1707 = vmul.f32 %v1704, %v1706
  %v1708 = vadd.f32 %v1704, %v1707
  %vm1709 = vweird.f32 %v1703
  %vm1710 = vweird.f32 %v1704
  %vm1711 = vmor %vm1709, %vm1710
  %v1712 = vsel %vm1711, %v1704, %v1708
  %v1713 = vand.u32 2147483647, %v1703
  %vm1714 = vcmp.eq.f32.partialorder %v1713, 8.507059e+37
  %v1715 = vand.u32 %v1703, 2147483648
  %v1716 = vor.u32 1.1754944e-38, %v1715
  %v1717 = vsel %vm1714, %v1716, %v1712
  %v1718 = vmul.f32 1.0, %v1717
  %v1719 = vmul.f32 %v1699, %v1680
  %v1720 = vadd.f32 %v1679, %v1719
  %v1721 = vtanh.pop %v1720
  %v1722 = vsub.f32 1.0, %v1718
  %v1723 = vmul.f32 %v1722, %v1721
  %v1724 = vmul.f32 %v1718, %v1467
  %v1725 = vadd.f32 %v1723, %v1724
  %v1726 = vpack.c.bf16 %v1725, %v1725
  %v1727 = vpack.c.bf16 %v1618, %v1618
  %1728 = vmatpush.bf16.msra.mxu0 %v854
  %1729 = vmatpush.bf16.msra.mxu0 %v850
  %1730 = vmatpush.bf16.msra.mxu0 %v846
  %1731 = vmatpush.bf16.msra.mxu0 %v842
  %1732 = vmatpush.bf16.msra.mxu0 %v838
  %1733 = vmatpush.bf16.msra.mxu0 %v834
  %1734 = vmatpush.bf16.msra.mxu0 %v830
  %1735 = vmatpush.bf16.msra.mxu0 %v826
  %1736 = vmatmul.bf16.gmra.mxu0 %v1726
  %v1737 = vpop.f32.mrf.mxu0
  %v1738 = vadd.f32 0.0, %v1737
  %v1739 = vpop.f32.mrf.mxu0
  %1740 = vdwg.mxu0
  %1741 = vmatpush.bf16.msra.mxu0 %v886
  %1742 = vmatpush.bf16.msra.mxu0 %v882
  %1743 = vmatpush.bf16.msra.mxu0 %v878
  %1744 = vmatpush.bf16.msra.mxu0 %v874
  %1745 = vmatpush.bf16.msra.mxu0 %v870
  %1746 = vmatpush.bf16.msra.mxu0 %v866
  %1747 = vmatpush.bf16.msra.mxu0 %v862
  %1748 = vmatpush.bf16.msra.mxu0 %v858
  %1749 = vmatmul.bf16.gmra.mxu0 %v1727
  %v1750 = vpop.f32.mrf.mxu0
  %v1751 = vadd.f32 %v1738, %v1750
  %v1752 = vpop.f32.mrf.mxu0
  %1753 = vdwg.mxu0
  %1754 = vmatpush.bf16.msra.mxu0 %v855
  %1755 = vmatpush.bf16.msra.mxu0 %v851
  %1756 = vmatpush.bf16.msra.mxu0 %v847
  %1757 = vmatpush.bf16.msra.mxu0 %v843
  %1758 = vmatpush.bf16.msra.mxu0 %v839
  %1759 = vmatpush.bf16.msra.mxu0 %v835
  %1760 = vmatpush.bf16.msra.mxu0 %v831
  %1761 = vmatpush.bf16.msra.mxu0 %v827
  %1762 = vmatmul.bf16.gmra.mxu0 %v1726
  %v1763 = vpop.f32.mrf.mxu0
  %v1764 = vadd.f32 0.0, %v1763
  %v1765 = vpop.f32.mrf.mxu0
  %1766 = vdwg.mxu0
  %1767 = vmatpush.bf16.msra.mxu0 %v887
  %1768 = vmatpush.bf16.msra.mxu0 %v883
  %1769 = vmatpush.bf16.msra.mxu0 %v879
  %1770 = vmatpush.bf16.msra.mxu0 %v875
  %1771 = vmatpush.bf16.msra.mxu0 %v871
  %1772 = vmatpush.bf16.msra.mxu0 %v867
  %1773 = vmatpush.bf16.msra.mxu0 %v863
  %1774 = vmatpush.bf16.msra.mxu0 %v859
  %1775 = vmatmul.bf16.gmra.mxu0 %v1727
  %v1776 = vpop.f32.mrf.mxu0
  %v1777 = vadd.f32 %v1764, %v1776
  %v1778 = vpop.f32.mrf.mxu0
  %1779 = vdwg.mxu0
  %1780 = vmatpush.bf16.msra.mxu0 %v856
  %1781 = vmatpush.bf16.msra.mxu0 %v852
  %1782 = vmatpush.bf16.msra.mxu0 %v848
  %1783 = vmatpush.bf16.msra.mxu0 %v844
  %1784 = vmatpush.bf16.msra.mxu0 %v840
  %1785 = vmatpush.bf16.msra.mxu0 %v836
  %1786 = vmatpush.bf16.msra.mxu0 %v832
  %1787 = vmatpush.bf16.msra.mxu0 %v828
  %1788 = vmatmul.bf16.gmra.mxu0 %v1726
  %v1789 = vpop.f32.mrf.mxu0
  %v1790 = vadd.f32 0.0, %v1789
  %v1791 = vpop.f32.mrf.mxu0
  %1792 = vdwg.mxu0
  %1793 = vmatpush.bf16.msra.mxu0 %v888
  %1794 = vmatpush.bf16.msra.mxu0 %v884
  %1795 = vmatpush.bf16.msra.mxu0 %v880
  %1796 = vmatpush.bf16.msra.mxu0 %v876
  %1797 = vmatpush.bf16.msra.mxu0 %v872
  %1798 = vmatpush.bf16.msra.mxu0 %v868
  %1799 = vmatpush.bf16.msra.mxu0 %v864
  %1800 = vmatpush.bf16.msra.mxu0 %v860
  %1801 = vmatmul.bf16.gmra.mxu0 %v1727
  %v1802 = vpop.f32.mrf.mxu0
  %v1803 = vadd.f32 %v1790, %v1802
  %v1804 = vpop.f32.mrf.mxu0
  %1805 = vdwg.mxu0
  %1806 = vmatpush.bf16.msra.mxu0 %v857
  %1807 = vmatpush.bf16.msra.mxu0 %v853
  %1808 = vmatpush.bf16.msra.mxu0 %v849
  %1809 = vmatpush.bf16.msra.mxu0 %v845
  %1810 = vmatpush.bf16.msra.mxu0 %v841
  %1811 = vmatpush.bf16.msra.mxu0 %v837
  %1812 = vmatpush.bf16.msra.mxu0 %v833
  %1813 = vmatpush.bf16.msra.mxu0 %v829
  %1814 = vmatmul.bf16.gmra.mxu0 %v1726
  %v1815 = vpop.f32.mrf.mxu0
  %v1816 = vadd.f32 0.0, %v1815
  %v1817 = vpop.f32.mrf.mxu0
  %1818 = vdwg.mxu0
  %1819 = vmatpush.bf16.msra.mxu0 %v889
  %1820 = vmatpush.bf16.msra.mxu0 %v885
  %1821 = vmatpush.bf16.msra.mxu0 %v881
  %1822 = vmatpush.bf16.msra.mxu0 %v877
  %1823 = vmatpush.bf16.msra.mxu0 %v873
  %1824 = vmatpush.bf16.msra.mxu0 %v869
  %1825 = vmatpush.bf16.msra.mxu0 %v865
  %1826 = vmatpush.bf16.msra.mxu0 %v861
  %1827 = vmatmul.bf16.gmra.mxu0 %v1727
  %v1828 = vpop.f32.mrf.mxu0
  %v1829 = vadd.f32 %v1816, %v1828
  %v1830 = vpop.f32.mrf.mxu0
  %1831 = vdwg.mxu0
  %v1832 = vxor.u32 %v1751, 2147483648
  %v1833 = vmul.f32 %v1832, 1.442695
  %v1834 = vpow.pop %v1833
  %v1835 = vadd.f32 %v1834, 1.0
  %v1836 = vrcp.pop %v1835
  %v1837 = vmul.f32 %v1835, %v1836
  %v1838 = vsub.f32 1.0, %v1837
  %v1839 = vmul.f32 %v1836, %v1838
  %v1840 = vadd.f32 %v1836, %v1839
  %vm1841 = vweird.f32 %v1835
  %vm1842 = vweird.f32 %v1836
  %vm1843 = vmor %vm1841, %vm1842
  %v1844 = vsel %vm1843, %v1836, %v1840
  %v1845 = vand.u32 2147483647, %v1835
  %vm1846 = vcmp.eq.f32.partialorder %v1845, 8.507059e+37
  %v1847 = vand.u32 %v1835, 2147483648
  %v1848 = vor.u32 1.1754944e-38, %v1847
  %v1849 = vsel %vm1846, %v1848, %v1844
  %v1850 = vmul.f32 1.0, %v1849
  %v1851 = vxor.u32 %v1777, 2147483648
  %v1852 = vmul.f32 %v1851, 1.442695
  %v1853 = vpow.pop %v1852
  %v1854 = vadd.f32 %v1853, 1.0
  %v1855 = vrcp.pop %v1854
  %v1856 = vmul.f32 %v1854, %v1855
  %v1857 = vsub.f32 1.0, %v1856
  %v1858 = vmul.f32 %v1855, %v1857
  %v1859 = vadd.f32 %v1855, %v1858
  %vm1860 = vweird.f32 %v1854
  %vm1861 = vweird.f32 %v1855
  %vm1862 = vmor %vm1860, %vm1861
  %v1863 = vsel %vm1862, %v1855, %v1859
  %v1864 = vand.u32 2147483647, %v1854
  %vm1865 = vcmp.eq.f32.partialorder %v1864, 8.507059e+37
  %v1866 = vand.u32 %v1854, 2147483648
  %v1867 = vor.u32 1.1754944e-38, %v1866
  %v1868 = vsel %vm1865, %v1867, %v1863
  %v1869 = vmul.f32 1.0, %v1868
  %v1870 = vmul.f32 %v1850, %v1829
  %v1871 = vadd.f32 %v1803, %v1870
  %v1872 = vtanh.pop %v1871
  %v1873 = vsub.f32 1.0, %v1869
  %v1874 = vmul.f32 %v1873, %v1872
  %v1875 = vmul.f32 %v1869, %v1618
  %v1876 = vadd.f32 %v1874, %v1875
  %vm1877 = vcmp.eq.s32.totalorder %v366, 4
  %v1878 = vsel %vm1877, %v1876, %v1620
  %v1879 = vld [vmem:[#allocation2 + $0x80] sm:$0xff]
  %v1880 = vld [vmem:[#allocation2 + $0x88] sm:$0xff]
  %v1881 = vld [vmem:[#allocation2 + $0x90] sm:$0xff]
  %v1882 = vld [vmem:[#allocation2 + $0x98] sm:$0xff]
  %1883 = vmatpush.bf16.msra.mxu0 %v495
  %1884 = vmatpush.bf16.msra.mxu0 %v491
  %1885 = vmatpush.bf16.msra.mxu0 %v487
  %1886 = vmatpush.bf16.msra.mxu0 %v483
  %1887 = vmatpush.bf16.msra.mxu0 %v479
  %1888 = vmatpush.bf16.msra.mxu0 %v475
  %1889 = vmatpush.bf16.msra.mxu0 %v471
  %1890 = vmatpush.bf16.msra.mxu0 %v467
  %1891 = vmatmul.bf16.gmra.mxu0 %v1726
  %v1892 = vpop.f32.mrf.mxu0
  %v1893 = vadd.f32 0.0, %v1892
  %v1894 = vpop.f32.mrf.mxu0
  %1895 = vdwg.mxu0
  %1896 = vmatpush.bf16.msra.mxu0 %v496
  %1897 = vmatpush.bf16.msra.mxu0 %v492
  %1898 = vmatpush.bf16.msra.mxu0 %v488
  %1899 = vmatpush.bf16.msra.mxu0 %v484
  %1900 = vmatpush.bf16.msra.mxu0 %v480
  %1901 = vmatpush.bf16.msra.mxu0 %v476
  %1902 = vmatpush.bf16.msra.mxu0 %v472
  %1903 = vmatpush.bf16.msra.mxu0 %v468
  %1904 = vmatmul.bf16.gmra.mxu0 %v1726
  %v1905 = vpop.f32.mrf.mxu0
  %v1906 = vadd.f32 0.0, %v1905
  %v1907 = vpop.f32.mrf.mxu0
  %1908 = vdwg.mxu0
  %1909 = vmatpush.bf16.msra.mxu0 %v497
  %1910 = vmatpush.bf16.msra.mxu0 %v493
  %1911 = vmatpush.bf16.msra.mxu0 %v489
  %1912 = vmatpush.bf16.msra.mxu0 %v485
  %1913 = vmatpush.bf16.msra.mxu0 %v481
  %1914 = vmatpush.bf16.msra.mxu0 %v477
  %1915 = vmatpush.bf16.msra.mxu0 %v473
  %1916 = vmatpush.bf16.msra.mxu0 %v469
  %1917 = vmatmul.bf16.gmra.mxu0 %v1726
  %v1918 = vpop.f32.mrf.mxu0
  %v1919 = vadd.f32 0.0, %v1918
  %v1920 = vpop.f32.mrf.mxu0
  %1921 = vdwg.mxu0
  %1922 = vmatpush.bf16.msra.mxu0 %v498
  %1923 = vmatpush.bf16.msra.mxu0 %v494
  %1924 = vmatpush.bf16.msra.mxu0 %v490
  %1925 = vmatpush.bf16.msra.mxu0 %v486
  %1926 = vmatpush.bf16.msra.mxu0 %v482
  %1927 = vmatpush.bf16.msra.mxu0 %v478
  %1928 = vmatpush.bf16.msra.mxu0 %v474
  %1929 = vmatpush.bf16.msra.mxu0 %v470
  %1930 = vmatmul.bf16.gmra.mxu0 %v1726
  %v1931 = vpop.f32.mrf.mxu0
  %v1932 = vadd.f32 0.0, %v1931
  %v1933 = vpop.f32.mrf.mxu0
  %1934 = vdwg.mxu0
  %v1935 = vadd.f32 %v1879, %v1893
  %v1936 = vadd.f32 %v1880, %v1906
  %v1937 = vadd.f32 %v1881, %v1919
  %v1938 = vadd.f32 %v1882, %v1932
  %v1939 = vxor.u32 %v1935, 2147483648
  %v1940 = vmul.f32 %v1939, 1.442695
  %v1941 = vpow.pop %v1940
  %v1942 = vadd.f32 %v1941, 1.0
  %v1943 = vrcp.pop %v1942
  %v1944 = vmul.f32 %v1942, %v1943
  %v1945 = vsub.f32 1.0, %v1944
  %v1946 = vmul.f32 %v1943, %v1945
  %v1947 = vadd.f32 %v1943, %v1946
  %vm1948 = vweird.f32 %v1942
  %vm1949 = vweird.f32 %v1943
  %vm1950 = vmor %vm1948, %vm1949
  %v1951 = vsel %vm1950, %v1943, %v1947
  %v1952 = vand.u32 2147483647, %v1942
  %vm1953 = vcmp.eq.f32.partialorder %v1952, 8.507059e+37
  %v1954 = vand.u32 %v1942, 2147483648
  %v1955 = vor.u32 1.1754944e-38, %v1954
  %v1956 = vsel %vm1953, %v1955, %v1951
  %v1957 = vmul.f32 1.0, %v1956
  %v1958 = vxor.u32 %v1936, 2147483648
  %v1959 = vmul.f32 %v1958, 1.442695
  %v1960 = vpow.pop %v1959
  %v1961 = vadd.f32 %v1960, 1.0
  %v1962 = vrcp.pop %v1961
  %v1963 = vmul.f32 %v1961, %v1962
  %v1964 = vsub.f32 1.0, %v1963
  %v1965 = vmul.f32 %v1962, %v1964
  %v1966 = vadd.f32 %v1962, %v1965
  %vm1967 = vweird.f32 %v1961
  %vm1968 = vweird.f32 %v1962
  %vm1969 = vmor %vm1967, %vm1968
  %v1970 = vsel %vm1969, %v1962, %v1966
  %v1971 = vand.u32 2147483647, %v1961
  %vm1972 = vcmp.eq.f32.partialorder %v1971, 8.507059e+37
  %v1973 = vand.u32 %v1961, 2147483648
  %v1974 = vor.u32 1.1754944e-38, %v1973
  %v1975 = vsel %vm1972, %v1974, %v1970
  %v1976 = vmul.f32 1.0, %v1975
  %v1977 = vmul.f32 %v1957, %v1938
  %v1978 = vadd.f32 %v1937, %v1977
  %v1979 = vtanh.pop %v1978
  %v1980 = vsub.f32 1.0, %v1976
  %v1981 = vmul.f32 %v1980, %v1979
  %v1982 = vmul.f32 %v1976, %v1725
  %v1983 = vadd.f32 %v1981, %v1982
  %v1984 = vpack.c.bf16 %v1983, %v1983
  %v1985 = vpack.c.bf16 %v1876, %v1876
  %1986 = vmatpush.bf16.msra.mxu0 %v854
  %1987 = vmatpush.bf16.msra.mxu0 %v850
  %1988 = vmatpush.bf16.msra.mxu0 %v846
  %1989 = vmatpush.bf16.msra.mxu0 %v842
  %1990 = vmatpush.bf16.msra.mxu0 %v838
  %1991 = vmatpush.bf16.msra.mxu0 %v834
  %1992 = vmatpush.bf16.msra.mxu0 %v830
  %1993 = vmatpush.bf16.msra.mxu0 %v826
  %1994 = vmatmul.bf16.gmra.mxu0 %v1984
  %v1995 = vpop.f32.mrf.mxu0
  %v1996 = vadd.f32 0.0, %v1995
  %v1997 = vpop.f32.mrf.mxu0
  %1998 = vdwg.mxu0
  %1999 = vmatpush.bf16.msra.mxu0 %v886
  %2000 = vmatpush.bf16.msra.mxu0 %v882
  %2001 = vmatpush.bf16.msra.mxu0 %v878
  %2002 = vmatpush.bf16.msra.mxu0 %v874
  %2003 = vmatpush.bf16.msra.mxu0 %v870
  %2004 = vmatpush.bf16.msra.mxu0 %v866
  %2005 = vmatpush.bf16.msra.mxu0 %v862
  %2006 = vmatpush.bf16.msra.mxu0 %v858
  %2007 = vmatmul.bf16.gmra.mxu0 %v1985
  %v2008 = vpop.f32.mrf.mxu0
  %v2009 = vadd.f32 %v1996, %v2008
  %v2010 = vpop.f32.mrf.mxu0
  %2011 = vdwg.mxu0
  %2012 = vmatpush.bf16.msra.mxu0 %v855
  %2013 = vmatpush.bf16.msra.mxu0 %v851
  %2014 = vmatpush.bf16.msra.mxu0 %v847
  %2015 = vmatpush.bf16.msra.mxu0 %v843
  %2016 = vmatpush.bf16.msra.mxu0 %v839
  %2017 = vmatpush.bf16.msra.mxu0 %v835
  %2018 = vmatpush.bf16.msra.mxu0 %v831
  %2019 = vmatpush.bf16.msra.mxu0 %v827
  %2020 = vmatmul.bf16.gmra.mxu0 %v1984
  %v2021 = vpop.f32.mrf.mxu0
  %v2022 = vadd.f32 0.0, %v2021
  %v2023 = vpop.f32.mrf.mxu0
  %2024 = vdwg.mxu0
  %2025 = vmatpush.bf16.msra.mxu0 %v887
  %2026 = vmatpush.bf16.msra.mxu0 %v883
  %2027 = vmatpush.bf16.msra.mxu0 %v879
  %2028 = vmatpush.bf16.msra.mxu0 %v875
  %2029 = vmatpush.bf16.msra.mxu0 %v871
  %2030 = vmatpush.bf16.msra.mxu0 %v867
  %2031 = vmatpush.bf16.msra.mxu0 %v863
  %2032 = vmatpush.bf16.msra.mxu0 %v859
  %2033 = vmatmul.bf16.gmra.mxu0 %v1985
  %v2034 = vpop.f32.mrf.mxu0
  %v2035 = vadd.f32 %v2022, %v2034
  %v2036 = vpop.f32.mrf.mxu0
  %2037 = vdwg.mxu0
  %2038 = vmatpush.bf16.msra.mxu0 %v856
  %2039 = vmatpush.bf16.msra.mxu0 %v852
  %2040 = vmatpush.bf16.msra.mxu0 %v848
  %2041 = vmatpush.bf16.msra.mxu0 %v844
  %2042 = vmatpush.bf16.msra.mxu0 %v840
  %2043 = vmatpush.bf16.msra.mxu0 %v836
  %2044 = vmatpush.bf16.msra.mxu0 %v832
  %2045 = vmatpush.bf16.msra.mxu0 %v828
  %2046 = vmatmul.bf16.gmra.mxu0 %v1984
  %v2047 = vpop.f32.mrf.mxu0
  %v2048 = vadd.f32 0.0, %v2047
  %v2049 = vpop.f32.mrf.mxu0
  %2050 = vdwg.mxu0
  %2051 = vmatpush.bf16.msra.mxu0 %v888
  %2052 = vmatpush.bf16.msra.mxu0 %v884
  %2053 = vmatpush.bf16.msra.mxu0 %v880
  %2054 = vmatpush.bf16.msra.mxu0 %v876
  %2055 = vmatpush.bf16.msra.mxu0 %v872
  %2056 = vmatpush.bf16.msra.mxu0 %v868
  %2057 = vmatpush.bf16.msra.mxu0 %v864
  %2058 = vmatpush.bf16.msra.mxu0 %v860
  %2059 = vmatmul.bf16.gmra.mxu0 %v1985
  %v2060 = vpop.f32.mrf.mxu0
  %v2061 = vadd.f32 %v2048, %v2060
  %v2062 = vpop.f32.mrf.mxu0
  %2063 = vdwg.mxu0
  %2064 = vmatpush.bf16.msra.mxu0 %v857
  %2065 = vmatpush.bf16.msra.mxu0 %v853
  %2066 = vmatpush.bf16.msra.mxu0 %v849
  %2067 = vmatpush.bf16.msra.mxu0 %v845
  %2068 = vmatpush.bf16.msra.mxu0 %v841
  %2069 = vmatpush.bf16.msra.mxu0 %v837
  %2070 = vmatpush.bf16.msra.mxu0 %v833
  %2071 = vmatpush.bf16.msra.mxu0 %v829
  %2072 = vmatmul.bf16.gmra.mxu0 %v1984
  %v2073 = vpop.f32.mrf.mxu0
  %v2074 = vadd.f32 0.0, %v2073
  %v2075 = vpop.f32.mrf.mxu0
  %2076 = vdwg.mxu0
  %2077 = vmatpush.bf16.msra.mxu0 %v889
  %2078 = vmatpush.bf16.msra.mxu0 %v885
  %2079 = vmatpush.bf16.msra.mxu0 %v881
  %2080 = vmatpush.bf16.msra.mxu0 %v877
  %2081 = vmatpush.bf16.msra.mxu0 %v873
  %2082 = vmatpush.bf16.msra.mxu0 %v869
  %2083 = vmatpush.bf16.msra.mxu0 %v865
  %2084 = vmatpush.bf16.msra.mxu0 %v861
  %2085 = vmatmul.bf16.gmra.mxu0 %v1985
  %v2086 = vpop.f32.mrf.mxu0
  %v2087 = vadd.f32 %v2074, %v2086
  %v2088 = vpop.f32.mrf.mxu0
  %2089 = vdwg.mxu0
  %v2090 = vxor.u32 %v2009, 2147483648
  %v2091 = vmul.f32 %v2090, 1.442695
  %v2092 = vpow.pop %v2091
  %v2093 = vadd.f32 %v2092, 1.0
  %v2094 = vrcp.pop %v2093
  %v2095 = vmul.f32 %v2093, %v2094
  %v2096 = vsub.f32 1.0, %v2095
  %v2097 = vmul.f32 %v2094, %v2096
  %v2098 = vadd.f32 %v2094, %v2097
  %vm2099 = vweird.f32 %v2093
  %vm2100 = vweird.f32 %v2094
  %vm2101 = vmor %vm2099, %vm2100
  %v2102 = vsel %vm2101, %v2094, %v2098
  %v2103 = vand.u32 2147483647, %v2093
  %vm2104 = vcmp.eq.f32.partialorder %v2103, 8.507059e+37
  %v2105 = vand.u32 %v2093, 2147483648
  %v2106 = vor.u32 1.1754944e-38, %v2105
  %v2107 = vsel %vm2104, %v2106, %v2102
  %v2108 = vmul.f32 1.0, %v2107
  %v2109 = vxor.u32 %v2035, 2147483648
  %v2110 = vmul.f32 %v2109, 1.442695
  %v2111 = vpow.pop %v2110
  %v2112 = vadd.f32 %v2111, 1.0
  %v2113 = vrcp.pop %v2112
  %v2114 = vmul.f32 %v2112, %v2113
  %v2115 = vsub.f32 1.0, %v2114
  %v2116 = vmul.f32 %v2113, %v2115
  %v2117 = vadd.f32 %v2113, %v2116
  %vm2118 = vweird.f32 %v2112
  %vm2119 = vweird.f32 %v2113
  %vm2120 = vmor %vm2118, %vm2119
  %v2121 = vsel %vm2120, %v2113, %v2117
  %v2122 = vand.u32 2147483647, %v2112
  %vm2123 = vcmp.eq.f32.partialorder %v2122, 8.507059e+37
  %v2124 = vand.u32 %v2112, 2147483648
  %v2125 = vor.u32 1.1754944e-38, %v2124
  %v2126 = vsel %vm2123, %v2125, %v2121
  %v2127 = vmul.f32 1.0, %v2126
  %v2128 = vmul.f32 %v2108, %v2087
  %v2129 = vadd.f32 %v2061, %v2128
  %v2130 = vtanh.pop %v2129
  %v2131 = vsub.f32 1.0, %v2127
  %v2132 = vmul.f32 %v2131, %v2130
  %v2133 = vmul.f32 %v2127, %v1876
  %v2134 = vadd.f32 %v2132, %v2133
  %vm2135 = vcmp.eq.s32.totalorder %v366, 5
  %v2136 = vsel %vm2135, %v2134, %v1878
  %v2137 = vld [vmem:[#allocation2 + $0xa0] sm:$0xff]
  %v2138 = vld [vmem:[#allocation2 + $0xa8] sm:$0xff]
  %v2139 = vld [vmem:[#allocation2 + $0xb0] sm:$0xff]
  %v2140 = vld [vmem:[#allocation2 + $0xb8] sm:$0xff]
  %2141 = vmatpush.bf16.msra.mxu0 %v495
  %2142 = vmatpush.bf16.msra.mxu0 %v491
  %2143 = vmatpush.bf16.msra.mxu0 %v487
  %2144 = vmatpush.bf16.msra.mxu0 %v483
  %2145 = vmatpush.bf16.msra.mxu0 %v479
  %2146 = vmatpush.bf16.msra.mxu0 %v475
  %2147 = vmatpush.bf16.msra.mxu0 %v471
  %2148 = vmatpush.bf16.msra.mxu0 %v467
  %2149 = vmatmul.bf16.gmra.mxu0 %v1984
  %v2150 = vpop.f32.mrf.mxu0
  %v2151 = vadd.f32 0.0, %v2150
  %v2152 = vpop.f32.mrf.mxu0
  %2153 = vdwg.mxu0
  %2154 = vmatpush.bf16.msra.mxu0 %v496
  %2155 = vmatpush.bf16.msra.mxu0 %v492
  %2156 = vmatpush.bf16.msra.mxu0 %v488
  %2157 = vmatpush.bf16.msra.mxu0 %v484
  %2158 = vmatpush.bf16.msra.mxu0 %v480
  %2159 = vmatpush.bf16.msra.mxu0 %v476
  %2160 = vmatpush.bf16.msra.mxu0 %v472
  %2161 = vmatpush.bf16.msra.mxu0 %v468
  %2162 = vmatmul.bf16.gmra.mxu0 %v1984
  %v2163 = vpop.f32.mrf.mxu0
  %v2164 = vadd.f32 0.0, %v2163
  %v2165 = vpop.f32.mrf.mxu0
  %2166 = vdwg.mxu0
  %2167 = vmatpush.bf16.msra.mxu0 %v497
  %2168 = vmatpush.bf16.msra.mxu0 %v493
  %2169 = vmatpush.bf16.msra.mxu0 %v489
  %2170 = vmatpush.bf16.msra.mxu0 %v485
  %2171 = vmatpush.bf16.msra.mxu0 %v481
  %2172 = vmatpush.bf16.msra.mxu0 %v477
  %2173 = vmatpush.bf16.msra.mxu0 %v473
  %2174 = vmatpush.bf16.msra.mxu0 %v469
  %2175 = vmatmul.bf16.gmra.mxu0 %v1984
  %v2176 = vpop.f32.mrf.mxu0
  %v2177 = vadd.f32 0.0, %v2176
  %v2178 = vpop.f32.mrf.mxu0
  %2179 = vdwg.mxu0
  %2180 = vmatpush.bf16.msra.mxu0 %v498
  %2181 = vmatpush.bf16.msra.mxu0 %v494
  %2182 = vmatpush.bf16.msra.mxu0 %v490
  %2183 = vmatpush.bf16.msra.mxu0 %v486
  %2184 = vmatpush.bf16.msra.mxu0 %v482
  %2185 = vmatpush.bf16.msra.mxu0 %v478
  %2186 = vmatpush.bf16.msra.mxu0 %v474
  %2187 = vmatpush.bf16.msra.mxu0 %v470
  %2188 = vmatmul.bf16.gmra.mxu0 %v1984
  %v2189 = vpop.f32.mrf.mxu0
  %v2190 = vadd.f32 0.0, %v2189
  %v2191 = vpop.f32.mrf.mxu0
  %2192 = vdwg.mxu0
  %v2193 = vadd.f32 %v2137, %v2151
  %v2194 = vadd.f32 %v2138, %v2164
  %v2195 = vadd.f32 %v2139, %v2177
  %v2196 = vadd.f32 %v2140, %v2190
  %v2197 = vxor.u32 %v2193, 2147483648
  %v2198 = vmul.f32 %v2197, 1.442695
  %v2199 = vpow.pop %v2198
  %v2200 = vadd.f32 %v2199, 1.0
  %v2201 = vrcp.pop %v2200
  %v2202 = vmul.f32 %v2200, %v2201
  %v2203 = vsub.f32 1.0, %v2202
  %v2204 = vmul.f32 %v2201, %v2203
  %v2205 = vadd.f32 %v2201, %v2204
  %vm2206 = vweird.f32 %v2200
  %vm2207 = vweird.f32 %v2201
  %vm2208 = vmor %vm2206, %vm2207
  %v2209 = vsel %vm2208, %v2201, %v2205
  %v2210 = vand.u32 2147483647, %v2200
  %vm2211 = vcmp.eq.f32.partialorder %v2210, 8.507059e+37
  %v2212 = vand.u32 %v2200, 2147483648
  %v2213 = vor.u32 1.1754944e-38, %v2212
  %v2214 = vsel %vm2211, %v2213, %v2209
  %v2215 = vmul.f32 1.0, %v2214
  %v2216 = vxor.u32 %v2194, 2147483648
  %v2217 = vmul.f32 %v2216, 1.442695
  %v2218 = vpow.pop %v2217
  %v2219 = vadd.f32 %v2218, 1.0
  %v2220 = vrcp.pop %v2219
  %v2221 = vmul.f32 %v2219, %v2220
  %v2222 = vsub.f32 1.0, %v2221
  %v2223 = vmul.f32 %v2220, %v2222
  %v2224 = vadd.f32 %v2220, %v2223
  %vm2225 = vweird.f32 %v2219
  %vm2226 = vweird.f32 %v2220
  %vm2227 = vmor %vm2225, %vm2226
  %v2228 = vsel %vm2227, %v2220, %v2224
  %v2229 = vand.u32 2147483647, %v2219
  %vm2230 = vcmp.eq.f32.partialorder %v2229, 8.507059e+37
  %v2231 = vand.u32 %v2219, 2147483648
  %v2232 = vor.u32 1.1754944e-38, %v2231
  %v2233 = vsel %vm2230, %v2232, %v2228
  %v2234 = vmul.f32 1.0, %v2233
  %v2235 = vmul.f32 %v2215, %v2196
  %v2236 = vadd.f32 %v2195, %v2235
  %v2237 = vtanh.pop %v2236
  %v2238 = vsub.f32 1.0, %v2234
  %v2239 = vmul.f32 %v2238, %v2237
  %v2240 = vmul.f32 %v2234, %v1983
  %v2241 = vadd.f32 %v2239, %v2240
  %v2242 = vpack.c.bf16 %v2241, %v2241
  %v2243 = vpack.c.bf16 %v2134, %v2134
  %2244 = vmatpush.bf16.msra.mxu0 %v854
  %2245 = vmatpush.bf16.msra.mxu0 %v850
  %2246 = vmatpush.bf16.msra.mxu0 %v846
  %2247 = vmatpush.bf16.msra.mxu0 %v842
  %2248 = vmatpush.bf16.msra.mxu0 %v838
  %2249 = vmatpush.bf16.msra.mxu0 %v834
  %2250 = vmatpush.bf16.msra.mxu0 %v830
  %2251 = vmatpush.bf16.msra.mxu0 %v826
  %2252 = vmatmul.bf16.gmra.mxu0 %v2242
  %v2253 = vpop.f32.mrf.mxu0
  %v2254 = vadd.f32 0.0, %v2253
  %v2255 = vpop.f32.mrf.mxu0
  %2256 = vdwg.mxu0
  %2257 = vmatpush.bf16.msra.mxu0 %v886
  %2258 = vmatpush.bf16.msra.mxu0 %v882
  %2259 = vmatpush.bf16.msra.mxu0 %v878
  %2260 = vmatpush.bf16.msra.mxu0 %v874
  %2261 = vmatpush.bf16.msra.mxu0 %v870
  %2262 = vmatpush.bf16.msra.mxu0 %v866
  %2263 = vmatpush.bf16.msra.mxu0 %v862
  %2264 = vmatpush.bf16.msra.mxu0 %v858
  %2265 = vmatmul.bf16.gmra.mxu0 %v2243
  %v2266 = vpop.f32.mrf.mxu0
  %v2267 = vadd.f32 %v2254, %v2266
  %v2268 = vpop.f32.mrf.mxu0
  %2269 = vdwg.mxu0
  %2270 = vmatpush.bf16.msra.mxu0 %v855
  %2271 = vmatpush.bf16.msra.mxu0 %v851
  %2272 = vmatpush.bf16.msra.mxu0 %v847
  %2273 = vmatpush.bf16.msra.mxu0 %v843
  %2274 = vmatpush.bf16.msra.mxu0 %v839
  %2275 = vmatpush.bf16.msra.mxu0 %v835
  %2276 = vmatpush.bf16.msra.mxu0 %v831
  %2277 = vmatpush.bf16.msra.mxu0 %v827
  %2278 = vmatmul.bf16.gmra.mxu0 %v2242
  %v2279 = vpop.f32.mrf.mxu0
  %v2280 = vadd.f32 0.0, %v2279
  %v2281 = vpop.f32.mrf.mxu0
  %2282 = vdwg.mxu0
  %2283 = vmatpush.bf16.msra.mxu0 %v887
  %2284 = vmatpush.bf16.msra.mxu0 %v883
  %2285 = vmatpush.bf16.msra.mxu0 %v879
  %2286 = vmatpush.bf16.msra.mxu0 %v875
  %2287 = vmatpush.bf16.msra.mxu0 %v871
  %2288 = vmatpush.bf16.msra.mxu0 %v867
  %2289 = vmatpush.bf16.msra.mxu0 %v863
  %2290 = vmatpush.bf16.msra.mxu0 %v859
  %2291 = vmatmul.bf16.gmra.mxu0 %v2243
  %v2292 = vpop.f32.mrf.mxu0
  %v2293 = vadd.f32 %v2280, %v2292
  %v2294 = vpop.f32.mrf.mxu0
  %2295 = vdwg.mxu0
  %2296 = vmatpush.bf16.msra.mxu0 %v856
  %2297 = vmatpush.bf16.msra.mxu0 %v852
  %2298 = vmatpush.bf16.msra.mxu0 %v848
  %2299 = vmatpush.bf16.msra.mxu0 %v844
  %2300 = vmatpush.bf16.msra.mxu0 %v840
  %2301 = vmatpush.bf16.msra.mxu0 %v836
  %2302 = vmatpush.bf16.msra.mxu0 %v832
  %2303 = vmatpush.bf16.msra.mxu0 %v828
  %2304 = vmatmul.bf16.gmra.mxu0 %v2242
  %v2305 = vpop.f32.mrf.mxu0
  %v2306 = vadd.f32 0.0, %v2305
  %v2307 = vpop.f32.mrf.mxu0
  %2308 = vdwg.mxu0
  %2309 = vmatpush.bf16.msra.mxu0 %v888
  %2310 = vmatpush.bf16.msra.mxu0 %v884
  %2311 = vmatpush.bf16.msra.mxu0 %v880
  %2312 = vmatpush.bf16.msra.mxu0 %v876
  %2313 = vmatpush.bf16.msra.mxu0 %v872
  %2314 = vmatpush.bf16.msra.mxu0 %v868
  %2315 = vmatpush.bf16.msra.mxu0 %v864
  %2316 = vmatpush.bf16.msra.mxu0 %v860
  %2317 = vmatmul.bf16.gmra.mxu0 %v2243
  %v2318 = vpop.f32.mrf.mxu0
  %v2319 = vadd.f32 %v2306, %v2318
  %v2320 = vpop.f32.mrf.mxu0
  %2321 = vdwg.mxu0
  %2322 = vmatpush.bf16.msra.mxu0 %v857
  %2323 = vmatpush.bf16.msra.mxu0 %v853
  %2324 = vmatpush.bf16.msra.mxu0 %v849
  %2325 = vmatpush.bf16.msra.mxu0 %v845
  %2326 = vmatpush.bf16.msra.mxu0 %v841
  %2327 = vmatpush.bf16.msra.mxu0 %v837
  %2328 = vmatpush.bf16.msra.mxu0 %v833
  %2329 = vmatpush.bf16.msra.mxu0 %v829
  %2330 = vmatmul.bf16.gmra.mxu0 %v2242
  %v2331 = vpop.f32.mrf.mxu0
  %v2332 = vadd.f32 0.0, %v2331
  %v2333 = vpop.f32.mrf.mxu0
  %2334 = vdwg.mxu0
  %2335 = vmatpush.bf16.msra.mxu0 %v889
  %2336 = vmatpush.bf16.msra.mxu0 %v885
  %2337 = vmatpush.bf16.msra.mxu0 %v881
  %2338 = vmatpush.bf16.msra.mxu0 %v877
  %2339 = vmatpush.bf16.msra.mxu0 %v873
  %2340 = vmatpush.bf16.msra.mxu0 %v869
  %2341 = vmatpush.bf16.msra.mxu0 %v865
  %2342 = vmatpush.bf16.msra.mxu0 %v861
  %2343 = vmatmul.bf16.gmra.mxu0 %v2243
  %v2344 = vpop.f32.mrf.mxu0
  %v2345 = vadd.f32 %v2332, %v2344
  %v2346 = vpop.f32.mrf.mxu0
  %2347 = vdwg.mxu0
  %v2348 = vxor.u32 %v2267, 2147483648
  %v2349 = vmul.f32 %v2348, 1.442695
  %v2350 = vpow.pop %v2349
  %v2351 = vadd.f32 %v2350, 1.0
  %v2352 = vrcp.pop %v2351
  %v2353 = vmul.f32 %v2351, %v2352
  %v2354 = vsub.f32 1.0, %v2353
  %v2355 = vmul.f32 %v2352, %v2354
  %v2356 = vadd.f32 %v2352, %v2355
  %vm2357 = vweird.f32 %v2351
  %vm2358 = vweird.f32 %v2352
  %vm2359 = vmor %vm2357, %vm2358
  %v2360 = vsel %vm2359, %v2352, %v2356
  %v2361 = vand.u32 2147483647, %v2351
  %vm2362 = vcmp.eq.f32.partialorder %v2361, 8.507059e+37
  %v2363 = vand.u32 %v2351, 2147483648
  %v2364 = vor.u32 1.1754944e-38, %v2363
  %v2365 = vsel %vm2362, %v2364, %v2360
  %v2366 = vmul.f32 1.0, %v2365
  %v2367 = vxor.u32 %v2293, 2147483648
  %v2368 = vmul.f32 %v2367, 1.442695
  %v2369 = vpow.pop %v2368
  %v2370 = vadd.f32 %v2369, 1.0
  %v2371 = vrcp.pop %v2370
  %v2372 = vmul.f32 %v2370, %v2371
  %v2373 = vsub.f32 1.0, %v2372
  %v2374 = vmul.f32 %v2371, %v2373
  %v2375 = vadd.f32 %v2371, %v2374
  %vm2376 = vweird.f32 %v2370
  %vm2377 = vweird.f32 %v2371
  %vm2378 = vmor %vm2376, %vm2377
  %v2379 = vsel %vm2378, %v2371, %v2375
  %v2380 = vand.u32 2147483647, %v2370
  %vm2381 = vcmp.eq.f32.partialorder %v2380, 8.507059e+37
  %v2382 = vand.u32 %v2370, 2147483648
  %v2383 = vor.u32 1.1754944e-38, %v2382
  %v2384 = vsel %vm2381, %v2383, %v2379
  %v2385 = vmul.f32 1.0, %v2384
  %v2386 = vmul.f32 %v2366, %v2345
  %v2387 = vadd.f32 %v2319, %v2386
  %v2388 = vtanh.pop %v2387
  %v2389 = vsub.f32 1.0, %v2385
  %v2390 = vmul.f32 %v2389, %v2388
  %v2391 = vmul.f32 %v2385, %v2134
  %v2392 = vadd.f32 %v2390, %v2391
  %vm2393 = vcmp.eq.s32.totalorder %v366, 6
  %v2394 = vsel %vm2393, %v2392, %v2136
  %v2395 = vld [vmem:[#allocation2 + $0xc0] sm:$0xff]
  %v2396 = vld [vmem:[#allocation2 + $0xc8] sm:$0xff]
  %v2397 = vld [vmem:[#allocation2 + $0xd0] sm:$0xff]
  %v2398 = vld [vmem:[#allocation2 + $0xd8] sm:$0xff]
  %2399 = vmatpush.bf16.msra.mxu0 %v495
  %2400 = vmatpush.bf16.msra.mxu0 %v491
  %2401 = vmatpush.bf16.msra.mxu0 %v487
  %2402 = vmatpush.bf16.msra.mxu0 %v483
  %2403 = vmatpush.bf16.msra.mxu0 %v479
  %2404 = vmatpush.bf16.msra.mxu0 %v475
  %2405 = vmatpush.bf16.msra.mxu0 %v471
  %2406 = vmatpush.bf16.msra.mxu0 %v467
  %2407 = vmatmul.bf16.gmra.mxu0 %v2242
  %v2408 = vpop.f32.mrf.mxu0
  %v2409 = vadd.f32 0.0, %v2408
  %v2410 = vpop.f32.mrf.mxu0
  %2411 = vdwg.mxu0
  %2412 = vmatpush.bf16.msra.mxu0 %v496
  %2413 = vmatpush.bf16.msra.mxu0 %v492
  %2414 = vmatpush.bf16.msra.mxu0 %v488
  %2415 = vmatpush.bf16.msra.mxu0 %v484
  %2416 = vmatpush.bf16.msra.mxu0 %v480
  %2417 = vmatpush.bf16.msra.mxu0 %v476
  %2418 = vmatpush.bf16.msra.mxu0 %v472
  %2419 = vmatpush.bf16.msra.mxu0 %v468
  %2420 = vmatmul.bf16.gmra.mxu0 %v2242
  %v2421 = vpop.f32.mrf.mxu0
  %v2422 = vadd.f32 0.0, %v2421
  %v2423 = vpop.f32.mrf.mxu0
  %2424 = vdwg.mxu0
  %2425 = vmatpush.bf16.msra.mxu0 %v497
  %2426 = vmatpush.bf16.msra.mxu0 %v493
  %2427 = vmatpush.bf16.msra.mxu0 %v489
  %2428 = vmatpush.bf16.msra.mxu0 %v485
  %2429 = vmatpush.bf16.msra.mxu0 %v481
  %2430 = vmatpush.bf16.msra.mxu0 %v477
  %2431 = vmatpush.bf16.msra.mxu0 %v473
  %2432 = vmatpush.bf16.msra.mxu0 %v469
  %2433 = vmatmul.bf16.gmra.mxu0 %v2242
  %v2434 = vpop.f32.mrf.mxu0
  %v2435 = vadd.f32 0.0, %v2434
  %v2436 = vpop.f32.mrf.mxu0
  %2437 = vdwg.mxu0
  %2438 = vmatpush.bf16.msra.mxu0 %v498
  %2439 = vmatpush.bf16.msra.mxu0 %v494
  %2440 = vmatpush.bf16.msra.mxu0 %v490
  %2441 = vmatpush.bf16.msra.mxu0 %v486
  %2442 = vmatpush.bf16.msra.mxu0 %v482
  %2443 = vmatpush.bf16.msra.mxu0 %v478
  %2444 = vmatpush.bf16.msra.mxu0 %v474
  %2445 = vmatpush.bf16.msra.mxu0 %v470
  %2446 = vmatmul.bf16.gmra.mxu0 %v2242
  %v2447 = vpop.f32.mrf.mxu0
  %v2448 = vadd.f32 0.0, %v2447
  %v2449 = vpop.f32.mrf.mxu0
  %2450 = vdwg.mxu0
  %v2451 = vadd.f32 %v2395, %v2409
  %v2452 = vadd.f32 %v2396, %v2422
  %v2453 = vadd.f32 %v2397, %v2435
  %v2454 = vadd.f32 %v2398, %v2448
  %v2455 = vxor.u32 %v2451, 2147483648
  %v2456 = vmul.f32 %v2455, 1.442695
  %v2457 = vpow.pop %v2456
  %v2458 = vadd.f32 %v2457, 1.0
  %v2459 = vrcp.pop %v2458
  %v2460 = vmul.f32 %v2458, %v2459
  %v2461 = vsub.f32 1.0, %v2460
  %v2462 = vmul.f32 %v2459, %v2461
  %v2463 = vadd.f32 %v2459, %v2462
  %vm2464 = vweird.f32 %v2458
  %vm2465 = vweird.f32 %v2459
  %vm2466 = vmor %vm2464, %vm2465
  %v2467 = vsel %vm2466, %v2459, %v2463
  %v2468 = vand.u32 2147483647, %v2458
  %vm2469 = vcmp.eq.f32.partialorder %v2468, 8.507059e+37
  %v2470 = vand.u32 %v2458, 2147483648
  %v2471 = vor.u32 1.1754944e-38, %v2470
  %v2472 = vsel %vm2469, %v2471, %v2467
  %v2473 = vmul.f32 1.0, %v2472
  %v2474 = vxor.u32 %v2452, 2147483648
  %v2475 = vmul.f32 %v2474, 1.442695
  %v2476 = vpow.pop %v2475
  %v2477 = vadd.f32 %v2476, 1.0
  %v2478 = vrcp.pop %v2477
  %v2479 = vmul.f32 %v2477, %v2478
  %v2480 = vsub.f32 1.0, %v2479
  %v2481 = vmul.f32 %v2478, %v2480
  %v2482 = vadd.f32 %v2478, %v2481
  %vm2483 = vweird.f32 %v2477
  %vm2484 = vweird.f32 %v2478
  %vm2485 = vmor %vm2483, %vm2484
  %v2486 = vsel %vm2485, %v2478, %v2482
  %v2487 = vand.u32 2147483647, %v2477
  %vm2488 = vcmp.eq.f32.partialorder %v2487, 8.507059e+37
  %v2489 = vand.u32 %v2477, 2147483648
  %v2490 = vor.u32 1.1754944e-38, %v2489
  %v2491 = vsel %vm2488, %v2490, %v2486
  %v2492 = vmul.f32 1.0, %v2491
  %v2493 = vmul.f32 %v2473, %v2454
  %v2494 = vadd.f32 %v2453, %v2493
  %v2495 = vtanh.pop %v2494
  %v2496 = vsub.f32 1.0, %v2492
  %v2497 = vmul.f32 %v2496, %v2495
  %v2498 = vmul.f32 %v2492, %v2241
  %v2499 = vadd.f32 %v2497, %v2498
  %v2500 = vpack.c.bf16 %v2499, %v2499
  %v2501 = vpack.c.bf16 %v2392, %v2392
  %2502 = vmatpush.bf16.msra.mxu0 %v854
  %2503 = vmatpush.bf16.msra.mxu0 %v850
  %2504 = vmatpush.bf16.msra.mxu0 %v846
  %2505 = vmatpush.bf16.msra.mxu0 %v842
  %2506 = vmatpush.bf16.msra.mxu0 %v838
  %2507 = vmatpush.bf16.msra.mxu0 %v834
  %2508 = vmatpush.bf16.msra.mxu0 %v830
  %2509 = vmatpush.bf16.msra.mxu0 %v826
  %2510 = vmatmul.bf16.gmra.mxu0 %v2500
  %v2511 = vpop.f32.mrf.mxu0
  %v2512 = vadd.f32 0.0, %v2511
  %v2513 = vpop.f32.mrf.mxu0
  %2514 = vdwg.mxu0
  %2515 = vmatpush.bf16.msra.mxu0 %v886
  %2516 = vmatpush.bf16.msra.mxu0 %v882
  %2517 = vmatpush.bf16.msra.mxu0 %v878
  %2518 = vmatpush.bf16.msra.mxu0 %v874
  %2519 = vmatpush.bf16.msra.mxu0 %v870
  %2520 = vmatpush.bf16.msra.mxu0 %v866
  %2521 = vmatpush.bf16.msra.mxu0 %v862
  %2522 = vmatpush.bf16.msra.mxu0 %v858
  %2523 = vmatmul.bf16.gmra.mxu0 %v2501
  %v2524 = vpop.f32.mrf.mxu0
  %v2525 = vadd.f32 %v2512, %v2524
  %v2526 = vpop.f32.mrf.mxu0
  %2527 = vdwg.mxu0
  %2528 = vmatpush.bf16.msra.mxu0 %v855
  %2529 = vmatpush.bf16.msra.mxu0 %v851
  %2530 = vmatpush.bf16.msra.mxu0 %v847
  %2531 = vmatpush.bf16.msra.mxu0 %v843
  %2532 = vmatpush.bf16.msra.mxu0 %v839
  %2533 = vmatpush.bf16.msra.mxu0 %v835
  %2534 = vmatpush.bf16.msra.mxu0 %v831
  %2535 = vmatpush.bf16.msra.mxu0 %v827
  %2536 = vmatmul.bf16.gmra.mxu0 %v2500
  %v2537 = vpop.f32.mrf.mxu0
  %v2538 = vadd.f32 0.0, %v2537
  %v2539 = vpop.f32.mrf.mxu0
  %2540 = vdwg.mxu0
  %2541 = vmatpush.bf16.msra.mxu0 %v887
  %2542 = vmatpush.bf16.msra.mxu0 %v883
  %2543 = vmatpush.bf16.msra.mxu0 %v879
  %2544 = vmatpush.bf16.msra.mxu0 %v875
  %2545 = vmatpush.bf16.msra.mxu0 %v871
  %2546 = vmatpush.bf16.msra.mxu0 %v867
  %2547 = vmatpush.bf16.msra.mxu0 %v863
  %2548 = vmatpush.bf16.msra.mxu0 %v859
  %2549 = vmatmul.bf16.gmra.mxu0 %v2501
  %v2550 = vpop.f32.mrf.mxu0
  %v2551 = vadd.f32 %v2538, %v2550
  %v2552 = vpop.f32.mrf.mxu0
  %2553 = vdwg.mxu0
  %2554 = vmatpush.bf16.msra.mxu0 %v856
  %2555 = vmatpush.bf16.msra.mxu0 %v852
  %2556 = vmatpush.bf16.msra.mxu0 %v848
  %2557 = vmatpush.bf16.msra.mxu0 %v844
  %2558 = vmatpush.bf16.msra.mxu0 %v840
  %2559 = vmatpush.bf16.msra.mxu0 %v836
  %2560 = vmatpush.bf16.msra.mxu0 %v832
  %2561 = vmatpush.bf16.msra.mxu0 %v828
  %2562 = vmatmul.bf16.gmra.mxu0 %v2500
  %v2563 = vpop.f32.mrf.mxu0
  %v2564 = vadd.f32 0.0, %v2563
  %v2565 = vpop.f32.mrf.mxu0
  %2566 = vdwg.mxu0
  %2567 = vmatpush.bf16.msra.mxu0 %v888
  %2568 = vmatpush.bf16.msra.mxu0 %v884
  %2569 = vmatpush.bf16.msra.mxu0 %v880
  %2570 = vmatpush.bf16.msra.mxu0 %v876
  %2571 = vmatpush.bf16.msra.mxu0 %v872
  %2572 = vmatpush.bf16.msra.mxu0 %v868
  %2573 = vmatpush.bf16.msra.mxu0 %v864
  %2574 = vmatpush.bf16.msra.mxu0 %v860
  %2575 = vmatmul.bf16.gmra.mxu0 %v2501
  %v2576 = vpop.f32.mrf.mxu0
  %v2577 = vadd.f32 %v2564, %v2576
  %v2578 = vpop.f32.mrf.mxu0
  %2579 = vdwg.mxu0
  %2580 = vmatpush.bf16.msra.mxu0 %v857
  %2581 = vmatpush.bf16.msra.mxu0 %v853
  %2582 = vmatpush.bf16.msra.mxu0 %v849
  %2583 = vmatpush.bf16.msra.mxu0 %v845
  %2584 = vmatpush.bf16.msra.mxu0 %v841
  %2585 = vmatpush.bf16.msra.mxu0 %v837
  %2586 = vmatpush.bf16.msra.mxu0 %v833
  %2587 = vmatpush.bf16.msra.mxu0 %v829
  %2588 = vmatmul.bf16.gmra.mxu0 %v2500
  %v2589 = vpop.f32.mrf.mxu0
  %v2590 = vadd.f32 0.0, %v2589
  %v2591 = vpop.f32.mrf.mxu0
  %2592 = vdwg.mxu0
  %2593 = vmatpush.bf16.msra.mxu0 %v889
  %2594 = vmatpush.bf16.msra.mxu0 %v885
  %2595 = vmatpush.bf16.msra.mxu0 %v881
  %2596 = vmatpush.bf16.msra.mxu0 %v877
  %2597 = vmatpush.bf16.msra.mxu0 %v873
  %2598 = vmatpush.bf16.msra.mxu0 %v869
  %2599 = vmatpush.bf16.msra.mxu0 %v865
  %2600 = vmatpush.bf16.msra.mxu0 %v861
  %2601 = vmatmul.bf16.gmra.mxu0 %v2501
  %v2602 = vpop.f32.mrf.mxu0
  %v2603 = vadd.f32 %v2590, %v2602
  %v2604 = vpop.f32.mrf.mxu0
  %2605 = vdwg.mxu0
  %v2606 = vxor.u32 %v2525, 2147483648
  %v2607 = vmul.f32 %v2606, 1.442695
  %v2608 = vpow.pop %v2607
  %v2609 = vadd.f32 %v2608, 1.0
  %v2610 = vrcp.pop %v2609
  %v2611 = vmul.f32 %v2609, %v2610
  %v2612 = vsub.f32 1.0, %v2611
  %v2613 = vmul.f32 %v2610, %v2612
  %v2614 = vadd.f32 %v2610, %v2613
  %vm2615 = vweird.f32 %v2609
  %vm2616 = vweird.f32 %v2610
  %vm2617 = vmor %vm2615, %vm2616
  %v2618 = vsel %vm2617, %v2610, %v2614
  %v2619 = vand.u32 2147483647, %v2609
  %vm2620 = vcmp.eq.f32.partialorder %v2619, 8.507059e+37
  %v2621 = vand.u32 %v2609, 2147483648
  %v2622 = vor.u32 1.1754944e-38, %v2621
  %v2623 = vsel %vm2620, %v2622, %v2618
  %v2624 = vmul.f32 1.0, %v2623
  %v2625 = vxor.u32 %v2551, 2147483648
  %v2626 = vmul.f32 %v2625, 1.442695
  %v2627 = vpow.pop %v2626
  %v2628 = vadd.f32 %v2627, 1.0
  %v2629 = vrcp.pop %v2628
  %v2630 = vmul.f32 %v2628, %v2629
  %v2631 = vsub.f32 1.0, %v2630
  %v2632 = vmul.f32 %v2629, %v2631
  %v2633 = vadd.f32 %v2629, %v2632
  %vm2634 = vweird.f32 %v2628
  %vm2635 = vweird.f32 %v2629
  %vm2636 = vmor %vm2634, %vm2635
  %v2637 = vsel %vm2636, %v2629, %v2633
  %v2638 = vand.u32 2147483647, %v2628
  %vm2639 = vcmp.eq.f32.partialorder %v2638, 8.507059e+37
  %v2640 = vand.u32 %v2628, 2147483648
  %v2641 = vor.u32 1.1754944e-38, %v2640
  %v2642 = vsel %vm2639, %v2641, %v2637
  %v2643 = vmul.f32 1.0, %v2642
  %v2644 = vmul.f32 %v2624, %v2603
  %v2645 = vadd.f32 %v2577, %v2644
  %v2646 = vtanh.pop %v2645
  %v2647 = vsub.f32 1.0, %v2643
  %v2648 = vmul.f32 %v2647, %v2646
  %v2649 = vmul.f32 %v2643, %v2392
  %v2650 = vadd.f32 %v2648, %v2649
  %vm2651 = vcmp.eq.s32.totalorder %v366, 7
  %v2652 = vsel %vm2651, %v2650, %v2394
  %v2653 = vld [vmem:[#allocation2 + $0xe0] sm:$0xff]
  %v2654 = vld [vmem:[#allocation2 + $0xe8] sm:$0xff]
  %v2655 = vld [vmem:[#allocation2 + $0xf0] sm:$0xff]
  %v2656 = vld [vmem:[#allocation2 + $0xf8] sm:$0xff]
  %2657 = vmatpush.bf16.msra.mxu0 %v495
  %2658 = vmatpush.bf16.msra.mxu0 %v491
  %2659 = vmatpush.bf16.msra.mxu0 %v487
  %2660 = vmatpush.bf16.msra.mxu0 %v483
  %2661 = vmatpush.bf16.msra.mxu0 %v479
  %2662 = vmatpush.bf16.msra.mxu0 %v475
  %2663 = vmatpush.bf16.msra.mxu0 %v471
  %2664 = vmatpush.bf16.msra.mxu0 %v467
  %2665 = vmatmul.bf16.gmra.mxu0 %v2500
  %v2666 = vpop.f32.mrf.mxu0
  %v2667 = vadd.f32 0.0, %v2666
  %v2668 = vpop.f32.mrf.mxu0
  %2669 = vdwg.mxu0
  %2670 = vmatpush.bf16.msra.mxu0 %v496
  %2671 = vmatpush.bf16.msra.mxu0 %v492
  %2672 = vmatpush.bf16.msra.mxu0 %v488
  %2673 = vmatpush.bf16.msra.mxu0 %v484
  %2674 = vmatpush.bf16.msra.mxu0 %v480
  %2675 = vmatpush.bf16.msra.mxu0 %v476
  %2676 = vmatpush.bf16.msra.mxu0 %v472
  %2677 = vmatpush.bf16.msra.mxu0 %v468
  %2678 = vmatmul.bf16.gmra.mxu0 %v2500
  %v2679 = vpop.f32.mrf.mxu0
  %v2680 = vadd.f32 0.0, %v2679
  %v2681 = vpop.f32.mrf.mxu0
  %2682 = vdwg.mxu0
  %2683 = vmatpush.bf16.msra.mxu0 %v497
  %2684 = vmatpush.bf16.msra.mxu0 %v493
  %2685 = vmatpush.bf16.msra.mxu0 %v489
  %2686 = vmatpush.bf16.msra.mxu0 %v485
  %2687 = vmatpush.bf16.msra.mxu0 %v481
  %2688 = vmatpush.bf16.msra.mxu0 %v477
  %2689 = vmatpush.bf16.msra.mxu0 %v473
  %2690 = vmatpush.bf16.msra.mxu0 %v469
  %2691 = vmatmul.bf16.gmra.mxu0 %v2500
  %v2692 = vpop.f32.mrf.mxu0
  %v2693 = vadd.f32 0.0, %v2692
  %v2694 = vpop.f32.mrf.mxu0
  %2695 = vdwg.mxu0
  %2696 = vmatpush.bf16.msra.mxu0 %v498
  %2697 = vmatpush.bf16.msra.mxu0 %v494
  %2698 = vmatpush.bf16.msra.mxu0 %v490
  %2699 = vmatpush.bf16.msra.mxu0 %v486
  %2700 = vmatpush.bf16.msra.mxu0 %v482
  %2701 = vmatpush.bf16.msra.mxu0 %v478
  %2702 = vmatpush.bf16.msra.mxu0 %v474
  %2703 = vmatpush.bf16.msra.mxu0 %v470
  %2704 = vmatmul.bf16.gmra.mxu0 %v2500
  %v2705 = vpop.f32.mrf.mxu0
  %v2706 = vadd.f32 0.0, %v2705
  %v2707 = vpop.f32.mrf.mxu0
  %2708 = vdwg.mxu0
  %v2709 = vadd.f32 %v2653, %v2667
  %v2710 = vadd.f32 %v2654, %v2680
  %v2711 = vadd.f32 %v2655, %v2693
  %v2712 = vadd.f32 %v2656, %v2706
  %v2713 = vxor.u32 %v2709, 2147483648
  %v2714 = vmul.f32 %v2713, 1.442695
  %v2715 = vpow.pop %v2714
  %v2716 = vadd.f32 %v2715, 1.0
  %v2717 = vrcp.pop %v2716
  %v2718 = vmul.f32 %v2716, %v2717
  %v2719 = vsub.f32 1.0, %v2718
  %v2720 = vmul.f32 %v2717, %v2719
  %v2721 = vadd.f32 %v2717, %v2720
  %vm2722 = vweird.f32 %v2716
  %vm2723 = vweird.f32 %v2717
  %vm2724 = vmor %vm2722, %vm2723
  %v2725 = vsel %vm2724, %v2717, %v2721
  %v2726 = vand.u32 2147483647, %v2716
  %vm2727 = vcmp.eq.f32.partialorder %v2726, 8.507059e+37
  %v2728 = vand.u32 %v2716, 2147483648
  %v2729 = vor.u32 1.1754944e-38, %v2728
  %v2730 = vsel %vm2727, %v2729, %v2725
  %v2731 = vmul.f32 1.0, %v2730
  %v2732 = vxor.u32 %v2710, 2147483648
  %v2733 = vmul.f32 %v2732, 1.442695
  %v2734 = vpow.pop %v2733
  %v2735 = vadd.f32 %v2734, 1.0
  %v2736 = vrcp.pop %v2735
  %v2737 = vmul.f32 %v2735, %v2736
  %v2738 = vsub.f32 1.0, %v2737
  %v2739 = vmul.f32 %v2736, %v2738
  %v2740 = vadd.f32 %v2736, %v2739
  %vm2741 = vweird.f32 %v2735
  %vm2742 = vweird.f32 %v2736
  %vm2743 = vmor %vm2741, %vm2742
  %v2744 = vsel %vm2743, %v2736, %v2740
  %v2745 = vand.u32 2147483647, %v2735
  %vm2746 = vcmp.eq.f32.partialorder %v2745, 8.507059e+37
  %v2747 = vand.u32 %v2735, 2147483648
  %v2748 = vor.u32 1.1754944e-38, %v2747
  %v2749 = vsel %vm2746, %v2748, %v2744
  %v2750 = vmul.f32 1.0, %v2749
  %v2751 = vmul.f32 %v2731, %v2712
  %v2752 = vadd.f32 %v2711, %v2751
  %v2753 = vtanh.pop %v2752
  %v2754 = vsub.f32 1.0, %v2750
  %v2755 = vmul.f32 %v2754, %v2753
  %v2756 = vmul.f32 %v2750, %v2499
  %v2757 = vadd.f32 %v2755, %v2756
  %v2758 = vpack.c.bf16 %v2757, %v2757
  %v2759 = vpack.c.bf16 %v2650, %v2650
  %2760 = vmatpush.bf16.msra.mxu0 %v854
  %2761 = vmatpush.bf16.msra.mxu0 %v850
  %2762 = vmatpush.bf16.msra.mxu0 %v846
  %2763 = vmatpush.bf16.msra.mxu0 %v842
  %2764 = vmatpush.bf16.msra.mxu0 %v838
  %2765 = vmatpush.bf16.msra.mxu0 %v834
  %2766 = vmatpush.bf16.msra.mxu0 %v830
  %2767 = vmatpush.bf16.msra.mxu0 %v826
  %2768 = vmatmul.bf16.gmra.mxu0 %v2758
  %v2769 = vpop.f32.mrf.mxu0
  %v2770 = vadd.f32 0.0, %v2769
  %v2771 = vpop.f32.mrf.mxu0
  %2772 = vdwg.mxu0
  %2773 = vmatpush.bf16.msra.mxu0 %v886
  %2774 = vmatpush.bf16.msra.mxu0 %v882
  %2775 = vmatpush.bf16.msra.mxu0 %v878
  %2776 = vmatpush.bf16.msra.mxu0 %v874
  %2777 = vmatpush.bf16.msra.mxu0 %v870
  %2778 = vmatpush.bf16.msra.mxu0 %v866
  %2779 = vmatpush.bf16.msra.mxu0 %v862
  %2780 = vmatpush.bf16.msra.mxu0 %v858
  %2781 = vmatmul.bf16.gmra.mxu0 %v2759
  %v2782 = vpop.f32.mrf.mxu0
  %v2783 = vadd.f32 %v2770, %v2782
  %v2784 = vpop.f32.mrf.mxu0
  %2785 = vdwg.mxu0
  %2786 = vmatpush.bf16.msra.mxu0 %v855
  %2787 = vmatpush.bf16.msra.mxu0 %v851
  %2788 = vmatpush.bf16.msra.mxu0 %v847
  %2789 = vmatpush.bf16.msra.mxu0 %v843
  %2790 = vmatpush.bf16.msra.mxu0 %v839
  %2791 = vmatpush.bf16.msra.mxu0 %v835
  %2792 = vmatpush.bf16.msra.mxu0 %v831
  %2793 = vmatpush.bf16.msra.mxu0 %v827
  %2794 = vmatmul.bf16.gmra.mxu0 %v2758
  %v2795 = vpop.f32.mrf.mxu0
  %v2796 = vadd.f32 0.0, %v2795
  %v2797 = vpop.f32.mrf.mxu0
  %2798 = vdwg.mxu0
  %2799 = vmatpush.bf16.msra.mxu0 %v887
  %2800 = vmatpush.bf16.msra.mxu0 %v883
  %2801 = vmatpush.bf16.msra.mxu0 %v879
  %2802 = vmatpush.bf16.msra.mxu0 %v875
  %2803 = vmatpush.bf16.msra.mxu0 %v871
  %2804 = vmatpush.bf16.msra.mxu0 %v867
  %2805 = vmatpush.bf16.msra.mxu0 %v863
  %2806 = vmatpush.bf16.msra.mxu0 %v859
  %2807 = vmatmul.bf16.gmra.mxu0 %v2759
  %v2808 = vpop.f32.mrf.mxu0
  %v2809 = vadd.f32 %v2796, %v2808
  %v2810 = vpop.f32.mrf.mxu0
  %2811 = vdwg.mxu0
  %2812 = vmatpush.bf16.msra.mxu0 %v856
  %2813 = vmatpush.bf16.msra.mxu0 %v852
  %2814 = vmatpush.bf16.msra.mxu0 %v848
  %2815 = vmatpush.bf16.msra.mxu0 %v844
  %2816 = vmatpush.bf16.msra.mxu0 %v840
  %2817 = vmatpush.bf16.msra.mxu0 %v836
  %2818 = vmatpush.bf16.msra.mxu0 %v832
  %2819 = vmatpush.bf16.msra.mxu0 %v828
  %2820 = vmatmul.bf16.gmra.mxu0 %v2758
  %v2821 = vpop.f32.mrf.mxu0
  %v2822 = vadd.f32 0.0, %v2821
  %v2823 = vpop.f32.mrf.mxu0
  %2824 = vdwg.mxu0
  %2825 = vmatpush.bf16.msra.mxu0 %v888
  %2826 = vmatpush.bf16.msra.mxu0 %v884
  %2827 = vmatpush.bf16.msra.mxu0 %v880
  %2828 = vmatpush.bf16.msra.mxu0 %v876
  %2829 = vmatpush.bf16.msra.mxu0 %v872
  %2830 = vmatpush.bf16.msra.mxu0 %v868
  %2831 = vmatpush.bf16.msra.mxu0 %v864
  %2832 = vmatpush.bf16.msra.mxu0 %v860
  %2833 = vmatmul.bf16.gmra.mxu0 %v2759
  %v2834 = vpop.f32.mrf.mxu0
  %v2835 = vadd.f32 %v2822, %v2834
  %v2836 = vpop.f32.mrf.mxu0
  %2837 = vdwg.mxu0
  %2838 = vmatpush.bf16.msra.mxu0 %v857
  %2839 = vmatpush.bf16.msra.mxu0 %v853
  %2840 = vmatpush.bf16.msra.mxu0 %v849
  %2841 = vmatpush.bf16.msra.mxu0 %v845
  %2842 = vmatpush.bf16.msra.mxu0 %v841
  %2843 = vmatpush.bf16.msra.mxu0 %v837
  %2844 = vmatpush.bf16.msra.mxu0 %v833
  %2845 = vmatpush.bf16.msra.mxu0 %v829
  %2846 = vmatmul.bf16.gmra.mxu0 %v2758
  %v2847 = vpop.f32.mrf.mxu0
  %v2848 = vadd.f32 0.0, %v2847
  %v2849 = vpop.f32.mrf.mxu0
  %2850 = vdwg.mxu0
  %2851 = vmatpush.bf16.msra.mxu0 %v889
  %2852 = vmatpush.bf16.msra.mxu0 %v885
  %2853 = vmatpush.bf16.msra.mxu0 %v881
  %2854 = vmatpush.bf16.msra.mxu0 %v877
  %2855 = vmatpush.bf16.msra.mxu0 %v873
  %2856 = vmatpush.bf16.msra.mxu0 %v869
  %2857 = vmatpush.bf16.msra.mxu0 %v865
  %2858 = vmatpush.bf16.msra.mxu0 %v861
  %2859 = vmatmul.bf16.gmra.mxu0 %v2759
  %v2860 = vpop.f32.mrf.mxu0
  %v2861 = vadd.f32 %v2848, %v2860
  %v2862 = vpop.f32.mrf.mxu0
  %2863 = vdwg.mxu0
  %v2864 = vxor.u32 %v2783, 2147483648
  %v2865 = vmul.f32 %v2864, 1.442695
  %v2866 = vpow.pop %v2865
  %v2867 = vadd.f32 %v2866, 1.0
  %v2868 = vrcp.pop %v2867
  %v2869 = vmul.f32 %v2867, %v2868
  %v2870 = vsub.f32 1.0, %v2869
  %v2871 = vmul.f32 %v2868, %v2870
  %v2872 = vadd.f32 %v2868, %v2871
  %vm2873 = vweird.f32 %v2867
  %vm2874 = vweird.f32 %v2868
  %vm2875 = vmor %vm2873, %vm2874
  %v2876 = vsel %vm2875, %v2868, %v2872
  %v2877 = vand.u32 2147483647, %v2867
  %vm2878 = vcmp.eq.f32.partialorder %v2877, 8.507059e+37
  %v2879 = vand.u32 %v2867, 2147483648
  %v2880 = vor.u32 1.1754944e-38, %v2879
  %v2881 = vsel %vm2878, %v2880, %v2876
  %v2882 = vmul.f32 1.0, %v2881
  %v2883 = vxor.u32 %v2809, 2147483648
  %v2884 = vmul.f32 %v2883, 1.442695
  %v2885 = vpow.pop %v2884
  %v2886 = vadd.f32 %v2885, 1.0
  %v2887 = vrcp.pop %v2886
  %v2888 = vmul.f32 %v2886, %v2887
  %v2889 = vsub.f32 1.0, %v2888
  %v2890 = vmul.f32 %v2887, %v2889
  %v2891 = vadd.f32 %v2887, %v2890
  %vm2892 = vweird.f32 %v2886
  %vm2893 = vweird.f32 %v2887
  %vm2894 = vmor %vm2892, %vm2893
  %v2895 = vsel %vm2894, %v2887, %v2891
  %v2896 = vand.u32 2147483647, %v2886
  %vm2897 = vcmp.eq.f32.partialorder %v2896, 8.507059e+37
  %v2898 = vand.u32 %v2886, 2147483648
  %v2899 = vor.u32 1.1754944e-38, %v2898
  %v2900 = vsel %vm2897, %v2899, %v2895
  %v2901 = vmul.f32 1.0, %v2900
  %v2902 = vmul.f32 %v2882, %v2861
  %v2903 = vadd.f32 %v2835, %v2902
  %v2904 = vtanh.pop %v2903
  %v2905 = vsub.f32 1.0, %v2901
  %v2906 = vmul.f32 %v2905, %v2904
  %v2907 = vmul.f32 %v2901, %v2650
  %v2908 = vadd.f32 %v2906, %v2907
  %vm2909 = vcmp.eq.s32.totalorder %v366, 8
  %v2910 = vsel %vm2909, %v2908, %v2652
  %v2911 = vpack.c.bf16 %v2910, %v2910
  %v2928 = vunpack.c.l.b16 %v119
  %v2929 = vunpack.c.l.b16 %v120
  %v2930 = vunpack.c.l.b16 %v121
  %v2931 = vunpack.c.l.b16 %v122
  %v2932 = vunpack.c.l.b16 %v123
  %v2933 = vunpack.c.l.b16 %v124
  %v2934 = vunpack.c.l.b16 %v125
  %v2935 = vunpack.c.l.b16 %v126
  %v2936 = vunpack.c.l.b16 %v127
  %v2937 = vunpack.c.l.b16 %v128
  %v2938 = vunpack.c.l.b16 %v129
  %v2939 = vunpack.c.l.b16 %v130
  %v2940 = vunpack.c.l.b16 %v131
  %v2941 = vunpack.c.l.b16 %v132
  %v2942 = vunpack.c.l.b16 %v133
  %v2943 = vunpack.c.l.b16 %v134
  %v2944 = vpack.c.b16 %v2929, %v2928
  %v2945 = vpack.c.b16 %v2931, %v2930
  %v2946 = vpack.c.b16 %v2933, %v2932
  %v2947 = vpack.c.b16 %v2935, %v2934
  %v2948 = vpack.c.b16 %v2937, %v2936
  %v2949 = vpack.c.b16 %v2939, %v2938
  %v2950 = vpack.c.b16 %v2941, %v2940
  %v2951 = vpack.c.b16 %v2943, %v2942
  %2960 = vmatpush.bf16.msra.mxu0 %v2951
  %2961 = vmatpush.bf16.msra.mxu0 %v2950
  %2962 = vmatpush.bf16.msra.mxu0 %v2949
  %2963 = vmatpush.bf16.msra.mxu0 %v2948
  %2964 = vmatpush.bf16.msra.mxu0 %v2947
  %2965 = vmatpush.bf16.msra.mxu0 %v2946
  %2966 = vmatpush.bf16.msra.mxu0 %v2945
  %2967 = vmatpush.bf16.msra.mxu0 %v2944
  %2968 = vmatmul.bf16.gmra.mxu0 %v2911
  %v2969 = vpop.f32.mrf.mxu0
  %v2970 = vadd.f32 %v136, %v2969
  %v2971 = vpop.f32.mrf.mxu0
  %2972 = vdwg.mxu0
  %2973 = vst [vmem:[%s3] sm:$0xff] %v2970
  // Predicated region
  $region14: #{user_gru4rec_forward.1} parent=0 // pred_check
    _
  $region15: #{user_gru4rec_forward.1} parent=0 // pred_check_branch
    %2975 = sbr.rel (0) target = $region17
  $region16: #{user_gru4rec_forward.1} parent=0 // pred_region
    _
  $region17: #{user_gru4rec_forward.1} parent=0 // pred_fallthru
    _
  // Predicated region
  $region18: #{user_gru4rec_forward.1} parent=0 // pred_check
    _
  $region19: #{user_gru4rec_forward.1} parent=0 // pred_check_branch
    %2977 = sbr.rel (0) target = $region21
  $region20: #{user_gru4rec_forward.1} parent=0 // pred_region
    _
  $region21: #{user_gru4rec_forward.1} parent=0 // pred_fallthru
    _

</llo_original>
